<compile_context>
chip_gen: v7x
topology: tpu7x:2x2x1
jax: 0.10.0
libtpu: 0.0.40
codegen_flags: <defaults>
</compile_context>

<pallas_src>
import jax
import jax.numpy as jnp
from jax import lax
from jax.experimental import pallas as pl
from jax.experimental.pallas import tpu as pltpu

_SUB = 8          # f32 sublane tile
_CHUNKS = 2       # independent recurrence chains interleaved per grid block
_BB = _SUB * _CHUNKS  # batch rows per grid program


def lstm_predictor_kernel(x_ref, wih_ref, whh_ref, b_ref,
                          wreg_ref, breg_ref, out_ref):
    T, BB, I = x_ref.shape
    HP = whh_ref.shape[0]          # per-gate lane-padded hidden size (mult of 128)
    NCH = BB // _SUB               # independent (8, HP) chains in this block

    # ---- Hoisted input projection: one MXU call for the whole block. ----
    x_flat = x_ref[...].reshape(T * BB, I)                       # (T*BB, I)
    xproj = (jnp.dot(x_flat, wih_ref[...],
                     preferred_element_type=jnp.float32)
             + b_ref[...])                                       # (T*BB, 4*HP)

    # ---- Hoisted invariant loads. ----
    whh = whh_ref[...]                                           # (HP, 4*HP)

    h = [jnp.zeros((_SUB, HP), jnp.float32) for _ in range(NCH)]
    c = [jnp.zeros((_SUB, HP), jnp.float32) for _ in range(NCH)]

    # ---- Fully unrolled serial recurrence (small static T). ----
    # PyTorch gate order along the 4*HP axis: [i, f, g, o]; every gate slice
    # below is 128-lane-tile aligned thanks to the wrapper-side HP padding.
    for t in range(T):
        for k in range(NCH):       # independent chains -> MXU/EUP latency overlap
            r0 = t * BB + k * _SUB
            gates = xproj[r0:r0 + _SUB, :] + jnp.dot(
                h[k], whh, preferred_element_type=jnp.float32)   # (8, 4*HP)
            sig = jax.nn.sigmoid(gates)                          # one EUP pass
            g_g = jnp.tanh(gates[:, 2 * HP:3 * HP])
            i_g = sig[:, 0 * HP:1 * HP]
            f_g = sig[:, 1 * HP:2 * HP]
            o_g = sig[:, 3 * HP:4 * HP]
            c[k] = f_g * c[k] + i_g * g_g
            h[k] = o_g * jnp.tanh(c[k])

    # ---- Regression head (output_size == 1): VPU/XLU reduce, no MXU. ----
    h_fin = jnp.concatenate(h, axis=0)                           # (BB, HP)
    y = jnp.sum(h_fin * wreg_ref[...], axis=-1, keepdims=True)   # (BB, 1)
    y = y + breg_ref[...]
    out_ref[0] = y                                               # (1, BB, 1)


def lstm_predictor_with_hidden(seq, w_ih, w_hh, b_ih, b_hh, w_reg, b_reg,
                               *, matmul_dtype=jnp.float32):
    """seq: (T, B, I) float32.  Returns (num_layers=1, B, output_size=1)."""
    T, B, I = seq.shape
    H = w_ih.shape[0] // 4
    O = w_reg.shape[0]
    assert O == 1, "reduce-based regression head assumes output_size == 1"

    f32 = jnp.float32
    HP = ((H + 127) // 128) * 128          # per-gate hidden padded to lane tile
    nb = max(1, pl.cdiv(B, _BB))           # batch grid blocks (parallel axis)
    B_pad = nb * _BB

    # --- Wrapper-side glue: pad batch, lane-pad gates, fold biases. ---
    seq_pad = jnp.pad(seq.astype(f32), ((0, 0), (0, B_pad - B), (0, 0)))

    def pad_gate_cols(w_t):                 # (rows, 4H) -> (rows, 4*HP)
        rows = w_t.shape[0]
        out = jnp.zeros((rows, 4 * HP), f32)
        for g in range(4):
            out = out.at[:, g * HP:g * HP + H].set(w_t[:, g * H:(g + 1) * H])
        return out

    wih_p = pad_gate_cols(jnp.transpose(w_ih).astype(f32))          # (I, 4*HP)
    whh_p = jnp.zeros((HP, 4 * HP), f32).at[:H, :].set(
        pad_gate_cols(jnp.transpose(w_hh).astype(f32)))             # (HP, 4*HP)
    bias_p = pad_gate_cols((b_ih + b_hh).astype(f32).reshape(1, 4 * H))
    wreg_row = jnp.zeros((1, HP), f32).at[0, :H].set(
        w_reg.astype(f32).reshape(-1))                              # (1, HP)
    breg = b_reg.astype(f32).reshape(1, O)                          # (1, 1)

    if matmul_dtype != jnp.float32:
        # bf16 MXU path for the hoisted input projection (accumulate in f32);
        # gate/state elementwise math stays f32 (v5e has no bf16 VPU/EUP).
        seq_pad = seq_pad.astype(matmul_dtype)
        wih_p = wih_p.astype(matmul_dtype)

    # --- VMEM budget: block IO (double-buffered) + weights + working set. ---
    isz = jnp.dtype(seq_pad.dtype).itemsize
    block_io = 2 * (T * _BB * I * isz + _BB * O * 4)
    weight_b = 2 * (wih_p.size * isz
                    + (whh_p.size + bias_p.size + wreg_row.size + breg.size) * 4)
    working = (T * _BB * 4 * HP + 8 * _BB * 4 * HP) * 4             # xproj + temps
    vmem_limit = int(min(48 << 20, max(16 << 20, 2 * (block_io + weight_b + working))))

    out_pad = pl.pallas_call(
        lstm_predictor_kernel,
        out_shape=jax.ShapeDtypeStruct((1, B_pad, O), f32),
        grid=(nb,),
        in_specs=[
            pl.BlockSpec((T, _BB, I), lambda b: (0, b, 0)),
            pl.BlockSpec(wih_p.shape, lambda b: (0, 0)),
            pl.BlockSpec(whh_p.shape, lambda b: (0, 0)),
            pl.BlockSpec(bias_p.shape, lambda b: (0, 0)),
            pl.BlockSpec(wreg_row.shape, lambda b: (0, 0)),
            pl.BlockSpec(breg.shape, lambda b: (0, 0)),
        ],
        out_specs=pl.BlockSpec((1, _BB, O), lambda b: (0, b, 0)),
        compiler_params=pltpu.CompilerParams(
            dimension_semantics=("parallel",),
            vmem_limit_bytes=vmem_limit),
    )(seq_pad, wih_p, whh_p, bias_p, wreg_row, breg)

    return out_pad[:, :B, :]


def _reference(seq, w_ih, w_hh, b_ih, b_hh, w_reg, b_reg):
    """Pure-JAX replication of the PyTorch forward for validation."""
    T, B, I = seq.shape
    H = w_hh.shape[1]

    def step(carry, x_t):
        h, c = carry
        gates = x_t @ w_ih.T + b_ih + h @ w_hh.T + b_hh
        i_g = jax.nn.sigmoid(gates[:, 0 * H:1 * H])
        f_g = jax.nn.sigmoid(gates[:, 1 * H:2 * H])
        g_g = jnp.tanh(gates[:, 2 * H:3 * H])
        o_g = jax.nn.sigmoid(gates[:, 3 * H:4 * H])
        c_new = f_g * c + i_g * g_g
        h_new = o_g * jnp.tanh(c_new)
        return (h_new, c_new), None

    h0 = jnp.zeros((B, H), jnp.float32)
    c0 = jnp.zeros((B, H), jnp.float32)
    (h_final, _), _ = lax.scan(step, (h0, c0), seq)
    y = h_final @ w_reg.T + b_reg
    return y[None]                                           # (1, B, O)


if __name__ == "__main__":
    # Small shapes consistent with the module: seq=(T, B, input_size).
    T, I, H, O = 8, 4, 32, 1

    key = jax.random.PRNGKey(0)
    ks = jax.random.split(key, 7)
    bound = 1.0 / (H ** 0.5)  # PyTorch LSTM/Linear default init range

    w_ih = jax.random.uniform(ks[1], (4 * H, I), minval=-bound, maxval=bound)
    w_hh = jax.random.uniform(ks[2], (4 * H, H), minval=-bound, maxval=bound)
    b_ih = jax.random.uniform(ks[3], (4 * H,), minval=-bound, maxval=bound)
    b_hh = jax.random.uniform(ks[4], (4 * H,), minval=-bound, maxval=bound)
    w_reg = jax.random.uniform(ks[5], (O, H), minval=-bound, maxval=bound)
    b_reg = jax.random.uniform(ks[6], (O,), minval=-bound, maxval=bound)

    # B=2 exercises the single-block path; B=20 pads to 32 rows -> 2 grid
    # blocks, exercising the batch-parallel grid axis (v7x 2-TC sharding).
    for B in (2, 20):
        seq = jax.random.normal(jax.random.fold_in(ks[0], B), (T, B, I),
                                dtype=jnp.float32)
        out = lstm_predictor_with_hidden(seq, w_ih, w_hh, b_ih, b_hh,
                                         w_reg, b_reg)
        out = jax.block_until_ready(out)

        ref = _reference(seq, w_ih, w_hh, b_ih, b_hh, w_reg, b_reg)
        assert out.shape == (1, B, O), out.shape
        assert jnp.allclose(out, ref, atol=2e-5, rtol=2e-5), (out, ref)

    print("KERNEL_OK")
</pallas_src>

<mosaic_0001>
module attributes {stable_mosaic.version = 11 : i64} {
  func.func @lstm_predictor_kernel(%arg0: i32, %arg1: memref<8x16x4xf32, #tpu.memory_space<vmem>>, %arg2: memref<4x512xf32, #tpu.memory_space<vmem>>, %arg3: memref<128x512xf32, #tpu.memory_space<vmem>>, %arg4: memref<1x512xf32, #tpu.memory_space<vmem>>, %arg5: memref<1x128xf32, #tpu.memory_space<vmem>>, %arg6: memref<1x1xf32, #tpu.memory_space<vmem>>, %arg7: memref<1x16x1xf32, #tpu.memory_space<vmem>>) attributes {dimension_semantics = [#tpu.dimension_semantics<parallel>], iteration_bounds = array<i64: 1>, scalar_prefetch = 0 : i64, scratch_operands = 0 : i64, tpu.core_type = #tpu.core_type<tc>, window_params = [{transform_indices = @transform_0, window_bounds = array<i64: 8, 16, 4>}, {pipeline_mode = #tpu.pipeline_mode<synchronous>, transform_indices = @transform_1, window_bounds = array<i64: 4, 512>}, {pipeline_mode = #tpu.pipeline_mode<synchronous>, transform_indices = @transform_2, window_bounds = array<i64: 128, 512>}, {pipeline_mode = #tpu.pipeline_mode<synchronous>, transform_indices = @transform_3, window_bounds = array<i64: 1, 512>}, {pipeline_mode = #tpu.pipeline_mode<synchronous>, transform_indices = @transform_4, window_bounds = array<i64: 1, 128>}, {pipeline_mode = #tpu.pipeline_mode<synchronous>, transform_indices = @transform_5, window_bounds = array<i64: 1, 1>}, {transform_indices = @transform_6, window_bounds = array<i64: 1, 16, 1>}]} {
    %c0 = arith.constant 0 : index
    %c0_0 = arith.constant 0 : index
    %c0_1 = arith.constant 0 : index
    %0 = vector.load %arg1[%c0, %c0_0, %c0_1] : memref<8x16x4xf32, #tpu.memory_space<vmem>>, vector<8x16x4xf32>
    %1 = vector.shape_cast %0 : vector<8x16x4xf32> to vector<128x4xf32>
    %c0_2 = arith.constant 0 : index
    %c0_3 = arith.constant 0 : index
    %2 = vector.load %arg2[%c0_2, %c0_3] : memref<4x512xf32, #tpu.memory_space<vmem>>, vector<4x512xf32>
    %cst = arith.constant dense<0.000000e+00> : vector<128x512xf32>
    %3 = tpu.matmul %1, %2, %cst {dimension_numbers = #tpu.dot_dimension_numbers<[1], [0], [0], [1], [0, 0, 1, 1], [], []>} : vector<128x4xf32>, vector<4x512xf32>, vector<128x512xf32> -> vector<128x512xf32>
    %c0_4 = arith.constant 0 : index
    %c0_5 = arith.constant 0 : index
    %4 = vector.load %arg4[%c0_4, %c0_5] : memref<1x512xf32, #tpu.memory_space<vmem>>, vector<1x512xf32>
    %5 = vector.broadcast %4 : vector<1x512xf32> to vector<128x512xf32>
    %6 = arith.addf %3, %5 : vector<128x512xf32>
    %c0_6 = arith.constant 0 : index
    %c0_7 = arith.constant 0 : index
    %7 = vector.load %arg3[%c0_6, %c0_7] : memref<128x512xf32, #tpu.memory_space<vmem>>, vector<128x512xf32>
    %cst_8 = arith.constant 0.000000e+00 : f32
    %8 = vector.broadcast %cst_8 : f32 to vector<8x128xf32>
    %cst_9 = arith.constant 0.000000e+00 : f32
    %9 = vector.broadcast %cst_9 : f32 to vector<8x128xf32>
    %cst_10 = arith.constant 0.000000e+00 : f32
    %10 = vector.broadcast %cst_10 : f32 to vector<8x128xf32>
    %cst_11 = arith.constant 0.000000e+00 : f32
    %11 = vector.broadcast %cst_11 : f32 to vector<8x128xf32>
    %12 = vector.extract_strided_slice %6 {offsets = [0, 0], sizes = [8, 512], strides = [1, 1]} : vector<128x512xf32> to vector<8x512xf32>
    %cst_12 = arith.constant dense<0.000000e+00> : vector<8x512xf32>
    %13 = tpu.matmul %8, %7, %cst_12 {dimension_numbers = #tpu.dot_dimension_numbers<[1], [0], [0], [1], [0, 0, 1, 1], [], []>} : vector<8x128xf32>, vector<128x512xf32>, vector<8x512xf32> -> vector<8x512xf32>
    %14 = arith.addf %12, %13 : vector<8x512xf32>
    %15 = arith.negf %14 : vector<8x512xf32>
    %16 = math.exp %15 : vector<8x512xf32>
    %cst_13 = arith.constant 1.000000e+00 : f32
    %17 = vector.broadcast %cst_13 : f32 to vector<8x512xf32>
    %18 = arith.addf %17, %16 : vector<8x512xf32>
    %19 = arith.divf %17, %18 : vector<8x512xf32>
    %20 = vector.extract_strided_slice %14 {offsets = [0, 256], sizes = [8, 128], strides = [1, 1]} : vector<8x512xf32> to vector<8x128xf32>
    %21 = math.tanh %20 : vector<8x128xf32>
    %22 = vector.extract_strided_slice %19 {offsets = [0, 0], sizes = [8, 128], strides = [1, 1]} : vector<8x512xf32> to vector<8x128xf32>
    %23 = vector.extract_strided_slice %19 {offsets = [0, 128], sizes = [8, 128], strides = [1, 1]} : vector<8x512xf32> to vector<8x128xf32>
    %24 = vector.extract_strided_slice %19 {offsets = [0, 384], sizes = [8, 128], strides = [1, 1]} : vector<8x512xf32> to vector<8x128xf32>
    %25 = arith.mulf %23, %10 : vector<8x128xf32>
    %26 = arith.mulf %22, %21 : vector<8x128xf32>
    %27 = arith.addf %25, %26 : vector<8x128xf32>
    %28 = math.tanh %27 : vector<8x128xf32>
    %29 = arith.mulf %24, %28 : vector<8x128xf32>
    %30 = vector.extract_strided_slice %6 {offsets = [8, 0], sizes = [8, 512], strides = [1, 1]} : vector<128x512xf32> to vector<8x512xf32>
    %cst_14 = arith.constant dense<0.000000e+00> : vector<8x512xf32>
    %31 = tpu.matmul %9, %7, %cst_14 {dimension_numbers = #tpu.dot_dimension_numbers<[1], [0], [0], [1], [0, 0, 1, 1], [], []>} : vector<8x128xf32>, vector<128x512xf32>, vector<8x512xf32> -> vector<8x512xf32>
    %32 = arith.addf %30, %31 : vector<8x512xf32>
    %33 = arith.negf %32 : vector<8x512xf32>
    %34 = math.exp %33 : vector<8x512xf32>
    %cst_15 = arith.constant 1.000000e+00 : f32
    %35 = vector.broadcast %cst_15 : f32 to vector<8x512xf32>
    %36 = arith.addf %35, %34 : vector<8x512xf32>
    %37 = arith.divf %35, %36 : vector<8x512xf32>
    %38 = vector.extract_strided_slice %32 {offsets = [0, 256], sizes = [8, 128], strides = [1, 1]} : vector<8x512xf32> to vector<8x128xf32>
    %39 = math.tanh %38 : vector<8x128xf32>
    %40 = vector.extract_strided_slice %37 {offsets = [0, 0], sizes = [8, 128], strides = [1, 1]} : vector<8x512xf32> to vector<8x128xf32>
    %41 = vector.extract_strided_slice %37 {offsets = [0, 128], sizes = [8, 128], strides = [1, 1]} : vector<8x512xf32> to vector<8x128xf32>
    %42 = vector.extract_strided_slice %37 {offsets = [0, 384], sizes = [8, 128], strides = [1, 1]} : vector<8x512xf32> to vector<8x128xf32>
    %43 = arith.mulf %41, %11 : vector<8x128xf32>
    %44 = arith.mulf %40, %39 : vector<8x128xf32>
    %45 = arith.addf %43, %44 : vector<8x128xf32>
    %46 = math.tanh %45 : vector<8x128xf32>
    %47 = arith.mulf %42, %46 : vector<8x128xf32>
    %48 = vector.extract_strided_slice %6 {offsets = [16, 0], sizes = [8, 512], strides = [1, 1]} : vector<128x512xf32> to vector<8x512xf32>
    %cst_16 = arith.constant dense<0.000000e+00> : vector<8x512xf32>
    %49 = tpu.matmul %29, %7, %cst_16 {dimension_numbers = #tpu.dot_dimension_numbers<[1], [0], [0], [1], [0, 0, 1, 1], [], []>} : vector<8x128xf32>, vector<128x512xf32>, vector<8x512xf32> -> vector<8x512xf32>
    %50 = arith.addf %48, %49 : vector<8x512xf32>
    %51 = arith.negf %50 : vector<8x512xf32>
    %52 = math.exp %51 : vector<8x512xf32>
    %cst_17 = arith.constant 1.000000e+00 : f32
    %53 = vector.broadcast %cst_17 : f32 to vector<8x512xf32>
    %54 = arith.addf %53, %52 : vector<8x512xf32>
    %55 = arith.divf %53, %54 : vector<8x512xf32>
    %56 = vector.extract_strided_slice %50 {offsets = [0, 256], sizes = [8, 128], strides = [1, 1]} : vector<8x512xf32> to vector<8x128xf32>
    %57 = math.tanh %56 : vector<8x128xf32>
    %58 = vector.extract_strided_slice %55 {offsets = [0, 0], sizes = [8, 128], strides = [1, 1]} : vector<8x512xf32> to vector<8x128xf32>
    %59 = vector.extract_strided_slice %55 {offsets = [0, 128], sizes = [8, 128], strides = [1, 1]} : vector<8x512xf32> to vector<8x128xf32>
    %60 = vector.extract_strided_slice %55 {offsets = [0, 384], sizes = [8, 128], strides = [1, 1]} : vector<8x512xf32> to vector<8x128xf32>
    %61 = arith.mulf %59, %27 : vector<8x128xf32>
    %62 = arith.mulf %58, %57 : vector<8x128xf32>
    %63 = arith.addf %61, %62 : vector<8x128xf32>
    %64 = math.tanh %63 : vector<8x128xf32>
    %65 = arith.mulf %60, %64 : vector<8x128xf32>
    %66 = vector.extract_strided_slice %6 {offsets = [24, 0], sizes = [8, 512], strides = [1, 1]} : vector<128x512xf32> to vector<8x512xf32>
    %cst_18 = arith.constant dense<0.000000e+00> : vector<8x512xf32>
    %67 = tpu.matmul %47, %7, %cst_18 {dimension_numbers = #tpu.dot_dimension_numbers<[1], [0], [0], [1], [0, 0, 1, 1], [], []>} : vector<8x128xf32>, vector<128x512xf32>, vector<8x512xf32> -> vector<8x512xf32>
    %68 = arith.addf %66, %67 : vector<8x512xf32>
    %69 = arith.negf %68 : vector<8x512xf32>
    %70 = math.exp %69 : vector<8x512xf32>
    %cst_19 = arith.constant 1.000000e+00 : f32
    %71 = vector.broadcast %cst_19 : f32 to vector<8x512xf32>
    %72 = arith.addf %71, %70 : vector<8x512xf32>
    %73 = arith.divf %71, %72 : vector<8x512xf32>
    %74 = vector.extract_strided_slice %68 {offsets = [0, 256], sizes = [8, 128], strides = [1, 1]} : vector<8x512xf32> to vector<8x128xf32>
    %75 = math.tanh %74 : vector<8x128xf32>
    %76 = vector.extract_strided_slice %73 {offsets = [0, 0], sizes = [8, 128], strides = [1, 1]} : vector<8x512xf32> to vector<8x128xf32>
    %77 = vector.extract_strided_slice %73 {offsets = [0, 128], sizes = [8, 128], strides = [1, 1]} : vector<8x512xf32> to vector<8x128xf32>
    %78 = vector.extract_strided_slice %73 {offsets = [0, 384], sizes = [8, 128], strides = [1, 1]} : vector<8x512xf32> to vector<8x128xf32>
    %79 = arith.mulf %77, %45 : vector<8x128xf32>
    %80 = arith.mulf %76, %75 : vector<8x128xf32>
    %81 = arith.addf %79, %80 : vector<8x128xf32>
    %82 = math.tanh %81 : vector<8x128xf32>
    %83 = arith.mulf %78, %82 : vector<8x128xf32>
    %84 = vector.extract_strided_slice %6 {offsets = [32, 0], sizes = [8, 512], strides = [1, 1]} : vector<128x512xf32> to vector<8x512xf32>
    %cst_20 = arith.constant dense<0.000000e+00> : vector<8x512xf32>
    %85 = tpu.matmul %65, %7, %cst_20 {dimension_numbers = #tpu.dot_dimension_numbers<[1], [0], [0], [1], [0, 0, 1, 1], [], []>} : vector<8x128xf32>, vector<128x512xf32>, vector<8x512xf32> -> vector<8x512xf32>
    %86 = arith.addf %84, %85 : vector<8x512xf32>
    %87 = arith.negf %86 : vector<8x512xf32>
    %88 = math.exp %87 : vector<8x512xf32>
    %cst_21 = arith.constant 1.000000e+00 : f32
    %89 = vector.broadcast %cst_21 : f32 to vector<8x512xf32>
    %90 = arith.addf %89, %88 : vector<8x512xf32>
    %91 = arith.divf %89, %90 : vector<8x512xf32>
    %92 = vector.extract_strided_slice %86 {offsets = [0, 256], sizes = [8, 128], strides = [1, 1]} : vector<8x512xf32> to vector<8x128xf32>
    %93 = math.tanh %92 : vector<8x128xf32>
    %94 = vector.extract_strided_slice %91 {offsets = [0, 0], sizes = [8, 128], strides = [1, 1]} : vector<8x512xf32> to vector<8x128xf32>
    %95 = vector.extract_strided_slice %91 {offsets = [0, 128], sizes = [8, 128], strides = [1, 1]} : vector<8x512xf32> to vector<8x128xf32>
    %96 = vector.extract_strided_slice %91 {offsets = [0, 384], sizes = [8, 128], strides = [1, 1]} : vector<8x512xf32> to vector<8x128xf32>
    %97 = arith.mulf %95, %63 : vector<8x128xf32>
    %98 = arith.mulf %94, %93 : vector<8x128xf32>
    %99 = arith.addf %97, %98 : vector<8x128xf32>
    %100 = math.tanh %99 : vector<8x128xf32>
    %101 = arith.mulf %96, %100 : vector<8x128xf32>
    %102 = vector.extract_strided_slice %6 {offsets = [40, 0], sizes = [8, 512], strides = [1, 1]} : vector<128x512xf32> to vector<8x512xf32>
    %cst_22 = arith.constant dense<0.000000e+00> : vector<8x512xf32>
    %103 = tpu.matmul %83, %7, %cst_22 {dimension_numbers = #tpu.dot_dimension_numbers<[1], [0], [0], [1], [0, 0, 1, 1], [], []>} : vector<8x128xf32>, vector<128x512xf32>, vector<8x512xf32> -> vector<8x512xf32>
    %104 = arith.addf %102, %103 : vector<8x512xf32>
    %105 = arith.negf %104 : vector<8x512xf32>
    %106 = math.exp %105 : vector<8x512xf32>
    %cst_23 = arith.constant 1.000000e+00 : f32
    %107 = vector.broadcast %cst_23 : f32 to vector<8x512xf32>
    %108 = arith.addf %107, %106 : vector<8x512xf32>
    %109 = arith.divf %107, %108 : vector<8x512xf32>
    %110 = vector.extract_strided_slice %104 {offsets = [0, 256], sizes = [8, 128], strides = [1, 1]} : vector<8x512xf32> to vector<8x128xf32>
    %111 = math.tanh %110 : vector<8x128xf32>
    %112 = vector.extract_strided_slice %109 {offsets = [0, 0], sizes = [8, 128], strides = [1, 1]} : vector<8x512xf32> to vector<8x128xf32>
    %113 = vector.extract_strided_slice %109 {offsets = [0, 128], sizes = [8, 128], strides = [1, 1]} : vector<8x512xf32> to vector<8x128xf32>
    %114 = vector.extract_strided_slice %109 {offsets = [0, 384], sizes = [8, 128], strides = [1, 1]} : vector<8x512xf32> to vector<8x128xf32>
    %115 = arith.mulf %113, %81 : vector<8x128xf32>
    %116 = arith.mulf %112, %111 : vector<8x128xf32>
    %117 = arith.addf %115, %116 : vector<8x128xf32>
    %118 = math.tanh %117 : vector<8x128xf32>
    %119 = arith.mulf %114, %118 : vector<8x128xf32>
    %120 = vector.extract_strided_slice %6 {offsets = [48, 0], sizes = [8, 512], strides = [1, 1]} : vector<128x512xf32> to vector<8x512xf32>
    %cst_24 = arith.constant dense<0.000000e+00> : vector<8x512xf32>
    %121 = tpu.matmul %101, %7, %cst_24 {dimension_numbers = #tpu.dot_dimension_numbers<[1], [0], [0], [1], [0, 0, 1, 1], [], []>} : vector<8x128xf32>, vector<128x512xf32>, vector<8x512xf32> -> vector<8x512xf32>
    %122 = arith.addf %120, %121 : vector<8x512xf32>
    %123 = arith.negf %122 : vector<8x512xf32>
    %124 = math.exp %123 : vector<8x512xf32>
    %cst_25 = arith.constant 1.000000e+00 : f32
    %125 = vector.broadcast %cst_25 : f32 to vector<8x512xf32>
    %126 = arith.addf %125, %124 : vector<8x512xf32>
    %127 = arith.divf %125, %126 : vector<8x512xf32>
    %128 = vector.extract_strided_slice %122 {offsets = [0, 256], sizes = [8, 128], strides = [1, 1]} : vector<8x512xf32> to vector<8x128xf32>
    %129 = math.tanh %128 : vector<8x128xf32>
    %130 = vector.extract_strided_slice %127 {offsets = [0, 0], sizes = [8, 128], strides = [1, 1]} : vector<8x512xf32> to vector<8x128xf32>
    %131 = vector.extract_strided_slice %127 {offsets = [0, 128], sizes = [8, 128], strides = [1, 1]} : vector<8x512xf32> to vector<8x128xf32>
    %132 = vector.extract_strided_slice %127 {offsets = [0, 384], sizes = [8, 128], strides = [1, 1]} : vector<8x512xf32> to vector<8x128xf32>
    %133 = arith.mulf %131, %99 : vector<8x128xf32>
    %134 = arith.mulf %130, %129 : vector<8x128xf32>
    %135 = arith.addf %133, %134 : vector<8x128xf32>
    %136 = math.tanh %135 : vector<8x128xf32>
    %137 = arith.mulf %132, %136 : vector<8x128xf32>
    %138 = vector.extract_strided_slice %6 {offsets = [56, 0], sizes = [8, 512], strides = [1, 1]} : vector<128x512xf32> to vector<8x512xf32>
    %cst_26 = arith.constant dense<0.000000e+00> : vector<8x512xf32>
    %139 = tpu.matmul %119, %7, %cst_26 {dimension_numbers = #tpu.dot_dimension_numbers<[1], [0], [0], [1], [0, 0, 1, 1], [], []>} : vector<8x128xf32>, vector<128x512xf32>, vector<8x512xf32> -> vector<8x512xf32>
    %140 = arith.addf %138, %139 : vector<8x512xf32>
    %141 = arith.negf %140 : vector<8x512xf32>
    %142 = math.exp %141 : vector<8x512xf32>
    %cst_27 = arith.constant 1.000000e+00 : f32
    %143 = vector.broadcast %cst_27 : f32 to vector<8x512xf32>
    %144 = arith.addf %143, %142 : vector<8x512xf32>
    %145 = arith.divf %143, %144 : vector<8x512xf32>
    %146 = vector.extract_strided_slice %140 {offsets = [0, 256], sizes = [8, 128], strides = [1, 1]} : vector<8x512xf32> to vector<8x128xf32>
    %147 = math.tanh %146 : vector<8x128xf32>
    %148 = vector.extract_strided_slice %145 {offsets = [0, 0], sizes = [8, 128], strides = [1, 1]} : vector<8x512xf32> to vector<8x128xf32>
    %149 = vector.extract_strided_slice %145 {offsets = [0, 128], sizes = [8, 128], strides = [1, 1]} : vector<8x512xf32> to vector<8x128xf32>
    %150 = vector.extract_strided_slice %145 {offsets = [0, 384], sizes = [8, 128], strides = [1, 1]} : vector<8x512xf32> to vector<8x128xf32>
    %151 = arith.mulf %149, %117 : vector<8x128xf32>
    %152 = arith.mulf %148, %147 : vector<8x128xf32>
    %153 = arith.addf %151, %152 : vector<8x128xf32>
    %154 = math.tanh %153 : vector<8x128xf32>
    %155 = arith.mulf %150, %154 : vector<8x128xf32>
    %156 = vector.extract_strided_slice %6 {offsets = [64, 0], sizes = [8, 512], strides = [1, 1]} : vector<128x512xf32> to vector<8x512xf32>
    %cst_28 = arith.constant dense<0.000000e+00> : vector<8x512xf32>
    %157 = tpu.matmul %137, %7, %cst_28 {dimension_numbers = #tpu.dot_dimension_numbers<[1], [0], [0], [1], [0, 0, 1, 1], [], []>} : vector<8x128xf32>, vector<128x512xf32>, vector<8x512xf32> -> vector<8x512xf32>
    %158 = arith.addf %156, %157 : vector<8x512xf32>
    %159 = arith.negf %158 : vector<8x512xf32>
    %160 = math.exp %159 : vector<8x512xf32>
    %cst_29 = arith.constant 1.000000e+00 : f32
    %161 = vector.broadcast %cst_29 : f32 to vector<8x512xf32>
    %162 = arith.addf %161, %160 : vector<8x512xf32>
    %163 = arith.divf %161, %162 : vector<8x512xf32>
    %164 = vector.extract_strided_slice %158 {offsets = [0, 256], sizes = [8, 128], strides = [1, 1]} : vector<8x512xf32> to vector<8x128xf32>
    %165 = math.tanh %164 : vector<8x128xf32>
    %166 = vector.extract_strided_slice %163 {offsets = [0, 0], sizes = [8, 128], strides = [1, 1]} : vector<8x512xf32> to vector<8x128xf32>
    %167 = vector.extract_strided_slice %163 {offsets = [0, 128], sizes = [8, 128], strides = [1, 1]} : vector<8x512xf32> to vector<8x128xf32>
    %168 = vector.extract_strided_slice %163 {offsets = [0, 384], sizes = [8, 128], strides = [1, 1]} : vector<8x512xf32> to vector<8x128xf32>
    %169 = arith.mulf %167, %135 : vector<8x128xf32>
    %170 = arith.mulf %166, %165 : vector<8x128xf32>
    %171 = arith.addf %169, %170 : vector<8x128xf32>
    %172 = math.tanh %171 : vector<8x128xf32>
    %173 = arith.mulf %168, %172 : vector<8x128xf32>
    %174 = vector.extract_strided_slice %6 {offsets = [72, 0], sizes = [8, 512], strides = [1, 1]} : vector<128x512xf32> to vector<8x512xf32>
    %cst_30 = arith.constant dense<0.000000e+00> : vector<8x512xf32>
    %175 = tpu.matmul %155, %7, %cst_30 {dimension_numbers = #tpu.dot_dimension_numbers<[1], [0], [0], [1], [0, 0, 1, 1], [], []>} : vector<8x128xf32>, vector<128x512xf32>, vector<8x512xf32> -> vector<8x512xf32>
    %176 = arith.addf %174, %175 : vector<8x512xf32>
    %177 = arith.negf %176 : vector<8x512xf32>
    %178 = math.exp %177 : vector<8x512xf32>
    %cst_31 = arith.constant 1.000000e+00 : f32
    %179 = vector.broadcast %cst_31 : f32 to vector<8x512xf32>
    %180 = arith.addf %179, %178 : vector<8x512xf32>
    %181 = arith.divf %179, %180 : vector<8x512xf32>
    %182 = vector.extract_strided_slice %176 {offsets = [0, 256], sizes = [8, 128], strides = [1, 1]} : vector<8x512xf32> to vector<8x128xf32>
    %183 = math.tanh %182 : vector<8x128xf32>
    %184 = vector.extract_strided_slice %181 {offsets = [0, 0], sizes = [8, 128], strides = [1, 1]} : vector<8x512xf32> to vector<8x128xf32>
    %185 = vector.extract_strided_slice %181 {offsets = [0, 128], sizes = [8, 128], strides = [1, 1]} : vector<8x512xf32> to vector<8x128xf32>
    %186 = vector.extract_strided_slice %181 {offsets = [0, 384], sizes = [8, 128], strides = [1, 1]} : vector<8x512xf32> to vector<8x128xf32>
    %187 = arith.mulf %185, %153 : vector<8x128xf32>
    %188 = arith.mulf %184, %183 : vector<8x128xf32>
    %189 = arith.addf %187, %188 : vector<8x128xf32>
    %190 = math.tanh %189 : vector<8x128xf32>
    %191 = arith.mulf %186, %190 : vector<8x128xf32>
    %192 = vector.extract_strided_slice %6 {offsets = [80, 0], sizes = [8, 512], strides = [1, 1]} : vector<128x512xf32> to vector<8x512xf32>
    %cst_32 = arith.constant dense<0.000000e+00> : vector<8x512xf32>
    %193 = tpu.matmul %173, %7, %cst_32 {dimension_numbers = #tpu.dot_dimension_numbers<[1], [0], [0], [1], [0, 0, 1, 1], [], []>} : vector<8x128xf32>, vector<128x512xf32>, vector<8x512xf32> -> vector<8x512xf32>
    %194 = arith.addf %192, %193 : vector<8x512xf32>
    %195 = arith.negf %194 : vector<8x512xf32>
    %196 = math.exp %195 : vector<8x512xf32>
    %cst_33 = arith.constant 1.000000e+00 : f32
    %197 = vector.broadcast %cst_33 : f32 to vector<8x512xf32>
    %198 = arith.addf %197, %196 : vector<8x512xf32>
    %199 = arith.divf %197, %198 : vector<8x512xf32>
    %200 = vector.extract_strided_slice %194 {offsets = [0, 256], sizes = [8, 128], strides = [1, 1]} : vector<8x512xf32> to vector<8x128xf32>
    %201 = math.tanh %200 : vector<8x128xf32>
    %202 = vector.extract_strided_slice %199 {offsets = [0, 0], sizes = [8, 128], strides = [1, 1]} : vector<8x512xf32> to vector<8x128xf32>
    %203 = vector.extract_strided_slice %199 {offsets = [0, 128], sizes = [8, 128], strides = [1, 1]} : vector<8x512xf32> to vector<8x128xf32>
    %204 = vector.extract_strided_slice %199 {offsets = [0, 384], sizes = [8, 128], strides = [1, 1]} : vector<8x512xf32> to vector<8x128xf32>
    %205 = arith.mulf %203, %171 : vector<8x128xf32>
    %206 = arith.mulf %202, %201 : vector<8x128xf32>
    %207 = arith.addf %205, %206 : vector<8x128xf32>
    %208 = math.tanh %207 : vector<8x128xf32>
    %209 = arith.mulf %204, %208 : vector<8x128xf32>
    %210 = vector.extract_strided_slice %6 {offsets = [88, 0], sizes = [8, 512], strides = [1, 1]} : vector<128x512xf32> to vector<8x512xf32>
    %cst_34 = arith.constant dense<0.000000e+00> : vector<8x512xf32>
    %211 = tpu.matmul %191, %7, %cst_34 {dimension_numbers = #tpu.dot_dimension_numbers<[1], [0], [0], [1], [0, 0, 1, 1], [], []>} : vector<8x128xf32>, vector<128x512xf32>, vector<8x512xf32> -> vector<8x512xf32>
    %212 = arith.addf %210, %211 : vector<8x512xf32>
    %213 = arith.negf %212 : vector<8x512xf32>
    %214 = math.exp %213 : vector<8x512xf32>
    %cst_35 = arith.constant 1.000000e+00 : f32
    %215 = vector.broadcast %cst_35 : f32 to vector<8x512xf32>
    %216 = arith.addf %215, %214 : vector<8x512xf32>
    %217 = arith.divf %215, %216 : vector<8x512xf32>
    %218 = vector.extract_strided_slice %212 {offsets = [0, 256], sizes = [8, 128], strides = [1, 1]} : vector<8x512xf32> to vector<8x128xf32>
    %219 = math.tanh %218 : vector<8x128xf32>
    %220 = vector.extract_strided_slice %217 {offsets = [0, 0], sizes = [8, 128], strides = [1, 1]} : vector<8x512xf32> to vector<8x128xf32>
    %221 = vector.extract_strided_slice %217 {offsets = [0, 128], sizes = [8, 128], strides = [1, 1]} : vector<8x512xf32> to vector<8x128xf32>
    %222 = vector.extract_strided_slice %217 {offsets = [0, 384], sizes = [8, 128], strides = [1, 1]} : vector<8x512xf32> to vector<8x128xf32>
    %223 = arith.mulf %221, %189 : vector<8x128xf32>
    %224 = arith.mulf %220, %219 : vector<8x128xf32>
    %225 = arith.addf %223, %224 : vector<8x128xf32>
    %226 = math.tanh %225 : vector<8x128xf32>
    %227 = arith.mulf %222, %226 : vector<8x128xf32>
    %228 = vector.extract_strided_slice %6 {offsets = [96, 0], sizes = [8, 512], strides = [1, 1]} : vector<128x512xf32> to vector<8x512xf32>
    %cst_36 = arith.constant dense<0.000000e+00> : vector<8x512xf32>
    %229 = tpu.matmul %209, %7, %cst_36 {dimension_numbers = #tpu.dot_dimension_numbers<[1], [0], [0], [1], [0, 0, 1, 1], [], []>} : vector<8x128xf32>, vector<128x512xf32>, vector<8x512xf32> -> vector<8x512xf32>
    %230 = arith.addf %228, %229 : vector<8x512xf32>
    %231 = arith.negf %230 : vector<8x512xf32>
    %232 = math.exp %231 : vector<8x512xf32>
    %cst_37 = arith.constant 1.000000e+00 : f32
    %233 = vector.broadcast %cst_37 : f32 to vector<8x512xf32>
    %234 = arith.addf %233, %232 : vector<8x512xf32>
    %235 = arith.divf %233, %234 : vector<8x512xf32>
    %236 = vector.extract_strided_slice %230 {offsets = [0, 256], sizes = [8, 128], strides = [1, 1]} : vector<8x512xf32> to vector<8x128xf32>
    %237 = math.tanh %236 : vector<8x128xf32>
    %238 = vector.extract_strided_slice %235 {offsets = [0, 0], sizes = [8, 128], strides = [1, 1]} : vector<8x512xf32> to vector<8x128xf32>
    %239 = vector.extract_strided_slice %235 {offsets = [0, 128], sizes = [8, 128], strides = [1, 1]} : vector<8x512xf32> to vector<8x128xf32>
    %240 = vector.extract_strided_slice %235 {offsets = [0, 384], sizes = [8, 128], strides = [1, 1]} : vector<8x512xf32> to vector<8x128xf32>
    %241 = arith.mulf %239, %207 : vector<8x128xf32>
    %242 = arith.mulf %238, %237 : vector<8x128xf32>
    %243 = arith.addf %241, %242 : vector<8x128xf32>
    %244 = math.tanh %243 : vector<8x128xf32>
    %245 = arith.mulf %240, %244 : vector<8x128xf32>
    %246 = vector.extract_strided_slice %6 {offsets = [104, 0], sizes = [8, 512], strides = [1, 1]} : vector<128x512xf32> to vector<8x512xf32>
    %cst_38 = arith.constant dense<0.000000e+00> : vector<8x512xf32>
    %247 = tpu.matmul %227, %7, %cst_38 {dimension_numbers = #tpu.dot_dimension_numbers<[1], [0], [0], [1], [0, 0, 1, 1], [], []>} : vector<8x128xf32>, vector<128x512xf32>, vector<8x512xf32> -> vector<8x512xf32>
    %248 = arith.addf %246, %247 : vector<8x512xf32>
    %249 = arith.negf %248 : vector<8x512xf32>
    %250 = math.exp %249 : vector<8x512xf32>
    %cst_39 = arith.constant 1.000000e+00 : f32
    %251 = vector.broadcast %cst_39 : f32 to vector<8x512xf32>
    %252 = arith.addf %251, %250 : vector<8x512xf32>
    %253 = arith.divf %251, %252 : vector<8x512xf32>
    %254 = vector.extract_strided_slice %248 {offsets = [0, 256], sizes = [8, 128], strides = [1, 1]} : vector<8x512xf32> to vector<8x128xf32>
    %255 = math.tanh %254 : vector<8x128xf32>
    %256 = vector.extract_strided_slice %253 {offsets = [0, 0], sizes = [8, 128], strides = [1, 1]} : vector<8x512xf32> to vector<8x128xf32>
    %257 = vector.extract_strided_slice %253 {offsets = [0, 128], sizes = [8, 128], strides = [1, 1]} : vector<8x512xf32> to vector<8x128xf32>
    %258 = vector.extract_strided_slice %253 {offsets = [0, 384], sizes = [8, 128], strides = [1, 1]} : vector<8x512xf32> to vector<8x128xf32>
    %259 = arith.mulf %257, %225 : vector<8x128xf32>
    %260 = arith.mulf %256, %255 : vector<8x128xf32>
    %261 = arith.addf %259, %260 : vector<8x128xf32>
    %262 = math.tanh %261 : vector<8x128xf32>
    %263 = arith.mulf %258, %262 : vector<8x128xf32>
    %264 = vector.extract_strided_slice %6 {offsets = [112, 0], sizes = [8, 512], strides = [1, 1]} : vector<128x512xf32> to vector<8x512xf32>
    %cst_40 = arith.constant dense<0.000000e+00> : vector<8x512xf32>
    %265 = tpu.matmul %245, %7, %cst_40 {dimension_numbers = #tpu.dot_dimension_numbers<[1], [0], [0], [1], [0, 0, 1, 1], [], []>} : vector<8x128xf32>, vector<128x512xf32>, vector<8x512xf32> -> vector<8x512xf32>
    %266 = arith.addf %264, %265 : vector<8x512xf32>
    %267 = arith.negf %266 : vector<8x512xf32>
    %268 = math.exp %267 : vector<8x512xf32>
    %cst_41 = arith.constant 1.000000e+00 : f32
    %269 = vector.broadcast %cst_41 : f32 to vector<8x512xf32>
    %270 = arith.addf %269, %268 : vector<8x512xf32>
    %271 = arith.divf %269, %270 : vector<8x512xf32>
    %272 = vector.extract_strided_slice %266 {offsets = [0, 256], sizes = [8, 128], strides = [1, 1]} : vector<8x512xf32> to vector<8x128xf32>
    %273 = math.tanh %272 : vector<8x128xf32>
    %274 = vector.extract_strided_slice %271 {offsets = [0, 0], sizes = [8, 128], strides = [1, 1]} : vector<8x512xf32> to vector<8x128xf32>
    %275 = vector.extract_strided_slice %271 {offsets = [0, 128], sizes = [8, 128], strides = [1, 1]} : vector<8x512xf32> to vector<8x128xf32>
    %276 = vector.extract_strided_slice %271 {offsets = [0, 384], sizes = [8, 128], strides = [1, 1]} : vector<8x512xf32> to vector<8x128xf32>
    %277 = arith.mulf %275, %243 : vector<8x128xf32>
    %278 = arith.mulf %274, %273 : vector<8x128xf32>
    %279 = arith.addf %277, %278 : vector<8x128xf32>
    %280 = math.tanh %279 : vector<8x128xf32>
    %281 = arith.mulf %276, %280 : vector<8x128xf32>
    %282 = vector.extract_strided_slice %6 {offsets = [120, 0], sizes = [8, 512], strides = [1, 1]} : vector<128x512xf32> to vector<8x512xf32>
    %cst_42 = arith.constant dense<0.000000e+00> : vector<8x512xf32>
    %283 = tpu.matmul %263, %7, %cst_42 {dimension_numbers = #tpu.dot_dimension_numbers<[1], [0], [0], [1], [0, 0, 1, 1], [], []>} : vector<8x128xf32>, vector<128x512xf32>, vector<8x512xf32> -> vector<8x512xf32>
    %284 = arith.addf %282, %283 : vector<8x512xf32>
    %285 = arith.negf %284 : vector<8x512xf32>
    %286 = math.exp %285 : vector<8x512xf32>
    %cst_43 = arith.constant 1.000000e+00 : f32
    %287 = vector.broadcast %cst_43 : f32 to vector<8x512xf32>
    %288 = arith.addf %287, %286 : vector<8x512xf32>
    %289 = arith.divf %287, %288 : vector<8x512xf32>
    %290 = vector.extract_strided_slice %284 {offsets = [0, 256], sizes = [8, 128], strides = [1, 1]} : vector<8x512xf32> to vector<8x128xf32>
    %291 = math.tanh %290 : vector<8x128xf32>
    %292 = vector.extract_strided_slice %289 {offsets = [0, 0], sizes = [8, 128], strides = [1, 1]} : vector<8x512xf32> to vector<8x128xf32>
    %293 = vector.extract_strided_slice %289 {offsets = [0, 128], sizes = [8, 128], strides = [1, 1]} : vector<8x512xf32> to vector<8x128xf32>
    %294 = vector.extract_strided_slice %289 {offsets = [0, 384], sizes = [8, 128], strides = [1, 1]} : vector<8x512xf32> to vector<8x128xf32>
    %295 = arith.mulf %293, %261 : vector<8x128xf32>
    %296 = arith.mulf %292, %291 : vector<8x128xf32>
    %297 = arith.addf %295, %296 : vector<8x128xf32>
    %298 = math.tanh %297 : vector<8x128xf32>
    %299 = arith.mulf %294, %298 : vector<8x128xf32>
    %300 = tpu.concatenate %281, %299 in 0 : vector<8x128xf32>, vector<8x128xf32> -> vector<16x128xf32>
    %c0_44 = arith.constant 0 : index
    %c0_45 = arith.constant 0 : index
    %301 = vector.load %arg5[%c0_44, %c0_45] : memref<1x128xf32, #tpu.memory_space<vmem>>, vector<1x128xf32>
    %302 = vector.broadcast %301 : vector<1x128xf32> to vector<16x128xf32>
    %303 = arith.mulf %300, %302 : vector<16x128xf32>
    %cst_46 = arith.constant dense<0.000000e+00> : vector<16xf32>
    %304 = vector.multi_reduction <add>, %303, %cst_46 [1] : vector<16x128xf32> to vector<16xf32>
    %305 = vector.shape_cast %304 : vector<16xf32> to vector<16x1xf32>
    %c0_47 = arith.constant 0 : index
    %c0_48 = arith.constant 0 : index
    %306 = vector.load %arg6[%c0_47, %c0_48] : memref<1x1xf32, #tpu.memory_space<vmem>>, vector<1x1xf32>
    %307 = vector.broadcast %306 : vector<1x1xf32> to vector<16x1xf32>
    %308 = arith.addf %305, %307 : vector<16x1xf32>
    %c0_49 = arith.constant 0 : index
    %c0_50 = arith.constant 0 : index
    %c0_51 = arith.constant 0 : index
    %309 = vector.load %arg7[%c0_49, %c0_50, %c0_51] : memref<1x16x1xf32, #tpu.memory_space<vmem>>, vector<1x16x1xf32>
    %310 = vector.shape_cast %309 : vector<1x16x1xf32> to vector<16x1xf32>
    %311 = vector.shape_cast %308 : vector<16x1xf32> to vector<1x16x1xf32>
    tpu.vector_store %arg7[%c0_49, %c0_50, %c0_51], %311 {strides = array<i32>} : memref<1x16x1xf32, #tpu.memory_space<vmem>>, vector<1x16x1xf32>,
    return
  }
  func.func @transform_0(%arg0: i32) -> (i32, i32, i32) {
    %c0_i32 = arith.constant 0 : i32
    %c0_i32_0 = arith.constant 0 : i32
    %c0_i32_1 = arith.constant 0 : i32
    return %c0_i32, %arg0, %c0_i32_0 : i32, i32, i32
  }
  func.func @transform_1(%arg0: i32) -> (i32, i32) {
    %c0_i32 = arith.constant 0 : i32
    %c0_i32_0 = arith.constant 0 : i32
    %c0_i32_1 = arith.constant 0 : i32
    return %c0_i32, %c0_i32_0 : i32, i32
  }
  func.func @transform_2(%arg0: i32) -> (i32, i32) {
    %c0_i32 = arith.constant 0 : i32
    %c0_i32_0 = arith.constant 0 : i32
    %c0_i32_1 = arith.constant 0 : i32
    return %c0_i32, %c0_i32_0 : i32, i32
  }
  func.func @transform_3(%arg0: i32) -> (i32, i32) {
    %c0_i32 = arith.constant 0 : i32
    %c0_i32_0 = arith.constant 0 : i32
    %c0_i32_1 = arith.constant 0 : i32
    return %c0_i32, %c0_i32_0 : i32, i32
  }
  func.func @transform_4(%arg0: i32) -> (i32, i32) {
    %c0_i32 = arith.constant 0 : i32
    %c0_i32_0 = arith.constant 0 : i32
    %c0_i32_1 = arith.constant 0 : i32
    return %c0_i32, %c0_i32_0 : i32, i32
  }
  func.func @transform_5(%arg0: i32) -> (i32, i32) {
    %c0_i32 = arith.constant 0 : i32
    %c0_i32_0 = arith.constant 0 : i32
    %c0_i32_1 = arith.constant 0 : i32
    return %c0_i32, %c0_i32_0 : i32, i32
  }
  func.func @transform_6(%arg0: i32) -> (i32, i32, i32) {
    %c0_i32 = arith.constant 0 : i32
    %c0_i32_0 = arith.constant 0 : i32
    %c0_i32_1 = arith.constant 0 : i32
    return %c0_i32, %arg0, %c0_i32_0 : i32, i32, i32
  }
}

</mosaic_0001>

<llo_original>
// kernel: tpu_custom_call.1
$region0: #{tpu_custom_call.1}
  #allocation0 [shape = 'u32[]', space=smem, size = 0x4, offset = 0x4, fixed_abs, tag = 'smem constant byte address 0x4 - core index']
  #allocation1 [shape = 'u32[144,128]{1,0:T(1,128)}', space=vmem, size = 0x12000, scoped, tag = 'internal scratch']
  #allocation2 [shape = 'f32[1,1]{1,0:T(1,128)S(1)}', space=vmem, size = 0x200, scoped, tag = 'scoped memory for tpu_custom_call.1']
  %s0 = inlined_call_operand.vmem [shape: f32[8,16,4], index: 0, kind: input, shape index: {}]
  %s1 = inlined_call_operand.vmem [shape: f32[4,512], index: 1, kind: input, shape index: {}]
  %s2 = inlined_call_operand.hbm [shape: f32[128,512], index: 2, kind: input, shape index: {}]
  %s3 = inlined_call_operand.vmem [shape: f32[1,512], index: 3, kind: input, shape index: {}]
  %s4 = inlined_call_operand.vmem [shape: f32[1,128], index: 4, kind: input, shape index: {}]
  %s5 = inlined_call_operand.<no memory space> [shape: f32[1,1], index: 5, kind: input, shape index: {}]
  %s6 = inlined_call_operand.vmem [shape: f32[1,16,1], index: 6, kind: output, shape index: {}]
  %s7 = sld [smem:[#allocation0]]
  $region38: #{tpu_custom_call.1} parent=0
    _
  %s9 = ssub.s32 1, %s7
  %s10 = scalar_select 0, %s9, %s7
  %v11 = vstv %s5
  %12 = vst [vmem:[#allocation2] sm:$0x1] %v11
  $region1: #{tpu_custom_call.1} parent=0
    #allocation3 [shape = 'u8[262144]{0}', space=vmem, size = 0x40000, scoped, tag = 'input window, operand 2, single buffered']
    #allocation4 [shape = 's32[1]{0}', space=sflag, size = 0x4, scoped, tag = 'scoped memory for tpu_custom_call.1']
    %13 = vsyncpa [#allocation4], 0
    // Predicated region
    $region2: #{tpu_custom_call.1} parent=1 // pred_check
      _
    $region3: #{tpu_custom_call.1} parent=1 // pred_check_branch
      %15 = sbr.rel (0) target = $region5
    $region4: #{tpu_custom_call.1} parent=1 // pred_region
      _
    $region5: #{tpu_custom_call.1} parent=1 // pred_fallthru
      _
    // Predicated region
    $region6: #{tpu_custom_call.1} parent=1 // pred_check
      _
    $region7: #{tpu_custom_call.1} parent=1 // pred_check_branch
      %17 = sbr.rel (0) target = $region9
    $region8: #{tpu_custom_call.1} parent=1 // pred_region
      _
    $region9: #{tpu_custom_call.1} parent=1 // pred_fallthru
      _
    // Predicated region
    $region10: #{tpu_custom_call.1} parent=1 // pred_check
      _
    $region11: #{tpu_custom_call.1} parent=1 // pred_check_branch
      %19 = sbr.rel (0) target = $region13
    $region12: #{tpu_custom_call.1} parent=1 // pred_region
      %s21 = ssub.s32 8192, 8192
      %22 = vsyncadd [#allocation4], %s21
      %s23 = sshll.u32 [#allocation3], 4
      %s24 = int_to_ptr.vmem [resolvable:$true] %s23
      %29 = dma.hbm_to_vmem [thread:$0]  %s2, 8192, %s24, [#allocation4], 512, 512, 32
    $region13: #{tpu_custom_call.1} parent=1 // pred_fallthru
      _
    // Predicated region
    $region14: #{tpu_custom_call.1} parent=1 // pred_check
      _
    $region15: #{tpu_custom_call.1} parent=1 // pred_check_branch
      %31 = sbr.rel (0) target = $region17
    $region16: #{tpu_custom_call.1} parent=1 // pred_region
      _
    $region17: #{tpu_custom_call.1} parent=1 // pred_fallthru
      _
    // Predicated region
    $region18: #{tpu_custom_call.1} parent=1 // pred_check
      _
    $region19: #{tpu_custom_call.1} parent=1 // pred_check_branch
      %33 = sbr.rel (0) target = $region21
    $region20: #{tpu_custom_call.1} parent=1 // pred_region
      _
    $region21: #{tpu_custom_call.1} parent=1 // pred_fallthru
      _
    // Predicated region
    $region22: #{tpu_custom_call.1} parent=1 // pred_check
      _
    $region23: #{tpu_custom_call.1} parent=1 // pred_check_branch
      %35 = sbr.rel (0) target = $region25
    $region24: #{tpu_custom_call.1} parent=1 // pred_region
      _
    $region25: #{tpu_custom_call.1} parent=1 // pred_fallthru
      _
    // Predicated region
    $region26: #{tpu_custom_call.1} parent=1 // pred_check
      _
    $region27: #{tpu_custom_call.1} parent=1 // pred_check_branch
      %37 = sbr.rel (0) target = $region29
    $region28: #{tpu_custom_call.1} parent=1 // pred_region
      %38 = dma.done [#allocation4], 8192
    $region29: #{tpu_custom_call.1} parent=1 // pred_fallthru
      _
    %v39 = vld [vmem:[%s0] sm:$0xff]
    %v40 = vld [vmem:[%s0 + $0x8] sm:$0xff]
    %v41 = vld [vmem:[%s0 + $0x10] sm:$0xff]
    %v42 = vld [vmem:[%s0 + $0x18] sm:$0xff]
    %v43 = vld [vmem:[%s0 + $0x20] sm:$0xff]
    %v44 = vld [vmem:[%s0 + $0x28] sm:$0xff]
    %v45 = vld [vmem:[%s0 + $0x30] sm:$0xff]
    %v46 = vld [vmem:[%s0 + $0x38] sm:$0xff]
    %v47 = vld [vmem:[%s0 + $0x40] sm:$0xff]
    %v48 = vld [vmem:[%s0 + $0x48] sm:$0xff]
    %v49 = vld [vmem:[%s0 + $0x50] sm:$0xff]
    %v50 = vld [vmem:[%s0 + $0x58] sm:$0xff]
    %v51 = vld [vmem:[%s0 + $0x60] sm:$0xff]
    %v52 = vld [vmem:[%s0 + $0x68] sm:$0xff]
    %v53 = vld [vmem:[%s0 + $0x70] sm:$0xff]
    %v54 = vld [vmem:[%s0 + $0x78] sm:$0xff]
    %v55 = vld [vmem:[%s1] sm:$0xff]
    %v56 = vld [vmem:[%s1 + $0x8] sm:$0xff]
    %v57 = vld [vmem:[%s3] sm:$0xf]
    %v59 = vlaneseq
    %v60 = vshrl.u32 %v59, 7
    %v61 = vsub.s32 0, %v60
    %v62 = vrot.slane %v57, %v61
    %v63 = vlaneseq
    %v64 = vshrl.u32 %v63, 7
    %v65 = vsub.s32 1, %v64
    %v66 = vrot.slane %v57, %v65
    %v67 = vlaneseq
    %v68 = vshrl.u32 %v67, 7
    %v69 = vsub.s32 2, %v68
    %v70 = vrot.slane %v57, %v69
    %v71 = vlaneseq
    %v72 = vshrl.u32 %v71, 7
    %v73 = vsub.s32 3, %v72
    %v74 = vrot.slane %v57, %v73
    %v81 = vcombine.high %v55, %v55
    %v82 = vcombine.high %v56, %v56
    %vm83 = vcmask 31744
    %v85 = vsel %vm83, %v39, 0
    %v88 = vsel %vm83, %v40, 0
    %v91 = vsel %vm83, %v41, 0
    %v94 = vsel %vm83, %v42, 0
    %v97 = vsel %vm83, %v43, 0
    %v100 = vsel %vm83, %v44, 0
    %v103 = vsel %vm83, %v45, 0
    %v106 = vsel %vm83, %v46, 0
    %v109 = vsel %vm83, %v47, 0
    %v112 = vsel %vm83, %v48, 0
    %v115 = vsel %vm83, %v49, 0
    %v118 = vsel %vm83, %v50, 0
    %v121 = vsel %vm83, %v51, 0
    %v124 = vsel %vm83, %v52, 0
    %v127 = vsel %vm83, %v53, 0
    %v130 = vsel %vm83, %v54, 0
    %vm132 = vcmask 1043456
    %v133 = vsel %vm132, %v55, 0
    %v135 = vsel %vm132, %v81, 0
    %v137 = vsel %vm132, %v56, 0
    %v139 = vsel %vm132, %v82, 0
    %141 = vmatprep.subr.mxu0 %v135
    %142 = vmatpush1.msra.mxu0 %v133
    %143 = vmatprep.subr.mxu0 0.0
    %144 = vmatpush1.msra.mxu0 0.0
    %145 = vmatprep.subr.mxu0 0.0
    %146 = vmatpush1.msra.mxu0 0.0
    %147 = vmatprep.subr.mxu0 0.0
    %148 = vmatpush1.msra.mxu0 0.0
    %149 = vmatprep.subr.mxu0 0.0
    %150 = vmatpush1.msra.mxu0 0.0
    %151 = vmatprep.subr.mxu0 0.0
    %152 = vmatpush1.msra.mxu0 0.0
    %153 = vmatprep.subr.mxu0 0.0
    %154 = vmatpush1.msra.mxu0 0.0
    %155 = vmatprep.subr.mxu0 0.0
    %156 = vmatpush1.msra.mxu0 0.0
    %157 = vmatprep.subr.mxu0 0.0
    %158 = vmatpush1.msra.mxu0 0.0
    %159 = vmatprep.subr.mxu0 0.0
    %160 = vmatpush1.msra.mxu0 0.0
    %161 = vmatprep.subr.mxu0 0.0
    %162 = vmatpush1.msra.mxu0 0.0
    %163 = vmatprep.subr.mxu0 0.0
    %164 = vmatpush1.msra.mxu0 0.0
    %165 = vmatprep.subr.mxu0 0.0
    %166 = vmatpush1.msra.mxu0 0.0
    %167 = vmatprep.subr.mxu0 0.0
    %168 = vmatpush1.msra.mxu0 0.0
    %169 = vmatprep.subr.mxu0 0.0
    %170 = vmatpush1.msra.mxu0 0.0
    %171 = vmatprep.subr.mxu0 0.0
    %172 = vmatpush1.msra.mxu0 0.0
    %173 = vmatprep.subr.mxu0 0.0
    %174 = vmatpush1.msra.mxu0 0.0
    %175 = vmatprep.subr.mxu0 0.0
    %176 = vmatpush1.msra.mxu0 0.0
    %177 = vmatprep.subr.mxu0 0.0
    %178 = vmatpush1.msra.mxu0 0.0
    %179 = vmatprep.subr.mxu0 0.0
    %180 = vmatpush1.msra.mxu0 0.0
    %181 = vmatprep.subr.mxu0 0.0
    %182 = vmatpush1.msra.mxu0 0.0
    %183 = vmatprep.subr.mxu0 0.0
    %184 = vmatpush1.msra.mxu0 0.0
    %185 = vmatprep.subr.mxu0 0.0
    %186 = vmatpush1.msra.mxu0 0.0
    %187 = vmatprep.subr.mxu0 0.0
    %188 = vmatpush1.msra.mxu0 0.0
    %189 = vmatprep.subr.mxu0 0.0
    %190 = vmatpush1.msra.mxu0 0.0
    %191 = vmatprep.subr.mxu0 0.0
    %192 = vmatpush1.msra.mxu0 0.0
    %193 = vmatprep.subr.mxu0 0.0
    %194 = vmatpush1.msra.mxu0 0.0
    %195 = vmatprep.subr.mxu0 0.0
    %196 = vmatpush1.msra.mxu0 0.0
    %197 = vmatprep.subr.mxu0 0.0
    %198 = vmatpush1.msra.mxu0 0.0
    %199 = vmatprep.subr.mxu0 0.0
    %200 = vmatpush1.msra.mxu0 0.0
    %201 = vmatprep.subr.mxu0 0.0
    %202 = vmatpush1.msra.mxu0 0.0
    %203 = vmatprep.subr.mxu0 0.0
    %204 = vmatpush1.msra.mxu0 0.0
    %205 = vmatprep.mubr.f32.mxu0 0.0
    %206 = vmatmul.mubr.f32.gmra.mrb[0].mxu0 %v85
    %v207 = vpop.f32.mrb[0].mxu0
    %v208 = vadd.f32 %v62, %v207
    %v209 = vpop.f32.mrb[0].mxu0
    %v210 = vadd.f32 %v66, %v209
    %211 = vmatprep.mubr.f32.mxu0 0.0
    %212 = vmatmul.mubr.f32.gmra.mrb[0].mxu0 %v88
    %v213 = vpop.f32.mrb[0].mxu0
    %v214 = vadd.f32 %v62, %v213
    %v215 = vpop.f32.mrb[0].mxu0
    %v216 = vadd.f32 %v66, %v215
    %217 = vmatprep.mubr.f32.mxu0 0.0
    %218 = vmatmul.mubr.f32.gmra.mrb[0].mxu0 %v91
    %v219 = vpop.f32.mrb[0].mxu0
    %v220 = vadd.f32 %v62, %v219
    %v221 = vpop.f32.mrb[0].mxu0
    %v222 = vadd.f32 %v66, %v221
    %223 = vmatprep.mubr.f32.mxu0 0.0
    %224 = vmatmul.mubr.f32.gmra.mrb[0].mxu0 %v94
    %v225 = vpop.f32.mrb[0].mxu0
    %v226 = vadd.f32 %v62, %v225
    %v227 = vpop.f32.mrb[0].mxu0
    %v228 = vadd.f32 %v66, %v227
    %229 = vmatprep.mubr.f32.mxu0 0.0
    %230 = vmatmul.mubr.f32.gmra.mrb[0].mxu0 %v97
    %v231 = vpop.f32.mrb[0].mxu0
    %v232 = vadd.f32 %v62, %v231
    %v233 = vpop.f32.mrb[0].mxu0
    %v234 = vadd.f32 %v66, %v233
    %235 = vmatprep.mubr.f32.mxu0 0.0
    %236 = vmatmul.mubr.f32.gmra.mrb[0].mxu0 %v100
    %v237 = vpop.f32.mrb[0].mxu0
    %v238 = vadd.f32 %v62, %v237
    %v239 = vpop.f32.mrb[0].mxu0
    %v240 = vadd.f32 %v66, %v239
    %241 = vmatprep.mubr.f32.mxu0 0.0
    %242 = vmatmul.mubr.f32.gmra.mrb[0].mxu0 %v103
    %v243 = vpop.f32.mrb[0].mxu0
    %v244 = vadd.f32 %v62, %v243
    %v245 = vpop.f32.mrb[0].mxu0
    %v246 = vadd.f32 %v66, %v245
    %247 = vmatprep.mubr.f32.mxu0 0.0
    %248 = vmatmul.mubr.f32.gmra.mrb[0].mxu0 %v106
    %v249 = vpop.f32.mrb[0].mxu0
    %v250 = vadd.f32 %v62, %v249
    %v251 = vpop.f32.mrb[0].mxu0
    %v252 = vadd.f32 %v66, %v251
    %253 = vmatprep.mubr.f32.mxu0 0.0
    %254 = vmatmul.mubr.f32.gmra.mrb[0].mxu0 %v109
    %v255 = vpop.f32.mrb[0].mxu0
    %v256 = vadd.f32 %v62, %v255
    %v257 = vpop.f32.mrb[0].mxu0
    %v258 = vadd.f32 %v66, %v257
    %259 = vmatprep.mubr.f32.mxu0 0.0
    %260 = vmatmul.mubr.f32.gmra.mrb[0].mxu0 %v112
    %v261 = vpop.f32.mrb[0].mxu0
    %v262 = vadd.f32 %v62, %v261
    %v263 = vpop.f32.mrb[0].mxu0
    %v264 = vadd.f32 %v66, %v263
    %265 = vmatprep.mubr.f32.mxu0 0.0
    %266 = vmatmul.mubr.f32.gmra.mrb[0].mxu0 %v115
    %v267 = vpop.f32.mrb[0].mxu0
    %v268 = vadd.f32 %v62, %v267
    %v269 = vpop.f32.mrb[0].mxu0
    %v270 = vadd.f32 %v66, %v269
    %271 = vmatprep.mubr.f32.mxu0 0.0
    %272 = vmatmul.mubr.f32.gmra.mrb[0].mxu0 %v118
    %v273 = vpop.f32.mrb[0].mxu0
    %v274 = vadd.f32 %v62, %v273
    %v275 = vpop.f32.mrb[0].mxu0
    %v276 = vadd.f32 %v66, %v275
    %277 = vmatprep.mubr.f32.mxu0 0.0
    %278 = vmatmul.mubr.f32.gmra.mrb[0].mxu0 %v121
    %v279 = vpop.f32.mrb[0].mxu0
    %v280 = vadd.f32 %v62, %v279
    %v281 = vpop.f32.mrb[0].mxu0
    %v282 = vadd.f32 %v66, %v281
    %283 = vmatprep.mubr.f32.mxu0 0.0
    %284 = vmatmul.mubr.f32.gmra.mrb[0].mxu0 %v124
    %v285 = vpop.f32.mrb[0].mxu0
    %v286 = vadd.f32 %v62, %v285
    %v287 = vpop.f32.mrb[0].mxu0
    %v288 = vadd.f32 %v66, %v287
    %289 = vmatprep.mubr.f32.mxu0 0.0
    %290 = vmatmul.mubr.f32.gmra.mrb[0].mxu0 %v127
    %v291 = vpop.f32.mrb[0].mxu0
    %v292 = vadd.f32 %v62, %v291
    %v293 = vpop.f32.mrb[0].mxu0
    %v294 = vadd.f32 %v66, %v293
    %295 = vmatprep.mubr.f32.mxu0 0.0
    %296 = vmatmul.mubr.f32.gmra.mrb[0].mxu0 %v130
    %v297 = vpop.f32.mrb[0].mxu0
    %v298 = vadd.f32 %v62, %v297
    %v299 = vpop.f32.mrb[0].mxu0
    %v300 = vadd.f32 %v66, %v299
    %301 = vdwg.mxu0
    %302 = vmatprep.subr.mxu0 %v139
    %303 = vmatpush1.msra.mxu0 %v137
    %304 = vmatprep.subr.mxu0 0.0
    %305 = vmatpush1.msra.mxu0 0.0
    %306 = vmatprep.subr.mxu0 0.0
    %307 = vmatpush1.msra.mxu0 0.0
    %308 = vmatprep.subr.mxu0 0.0
    %309 = vmatpush1.msra.mxu0 0.0
    %310 = vmatprep.subr.mxu0 0.0
    %311 = vmatpush1.msra.mxu0 0.0
    %312 = vmatprep.subr.mxu0 0.0
    %313 = vmatpush1.msra.mxu0 0.0
    %314 = vmatprep.subr.mxu0 0.0
    %315 = vmatpush1.msra.mxu0 0.0
    %316 = vmatprep.subr.mxu0 0.0
    %317 = vmatpush1.msra.mxu0 0.0
    %318 = vmatprep.subr.mxu0 0.0
    %319 = vmatpush1.msra.mxu0 0.0
    %320 = vmatprep.subr.mxu0 0.0
    %321 = vmatpush1.msra.mxu0 0.0
    %322 = vmatprep.subr.mxu0 0.0
    %323 = vmatpush1.msra.mxu0 0.0
    %324 = vmatprep.subr.mxu0 0.0
    %325 = vmatpush1.msra.mxu0 0.0
    %326 = vmatprep.subr.mxu0 0.0
    %327 = vmatpush1.msra.mxu0 0.0
    %328 = vmatprep.subr.mxu0 0.0
    %329 = vmatpush1.msra.mxu0 0.0
    %330 = vmatprep.subr.mxu0 0.0
    %331 = vmatpush1.msra.mxu0 0.0
    %332 = vmatprep.subr.mxu0 0.0
    %333 = vmatpush1.msra.mxu0 0.0
    %334 = vmatprep.subr.mxu0 0.0
    %335 = vmatpush1.msra.mxu0 0.0
    %336 = vmatprep.subr.mxu0 0.0
    %337 = vmatpush1.msra.mxu0 0.0
    %338 = vmatprep.subr.mxu0 0.0
    %339 = vmatpush1.msra.mxu0 0.0
    %340 = vmatprep.subr.mxu0 0.0
    %341 = vmatpush1.msra.mxu0 0.0
    %342 = vmatprep.subr.mxu0 0.0
    %343 = vmatpush1.msra.mxu0 0.0
    %344 = vmatprep.subr.mxu0 0.0
    %345 = vmatpush1.msra.mxu0 0.0
    %346 = vmatprep.subr.mxu0 0.0
    %347 = vmatpush1.msra.mxu0 0.0
    %348 = vmatprep.subr.mxu0 0.0
    %349 = vmatpush1.msra.mxu0 0.0
    %350 = vmatprep.subr.mxu0 0.0
    %351 = vmatpush1.msra.mxu0 0.0
    %352 = vmatprep.subr.mxu0 0.0
    %353 = vmatpush1.msra.mxu0 0.0
    %354 = vmatprep.subr.mxu0 0.0
    %355 = vmatpush1.msra.mxu0 0.0
    %356 = vmatprep.subr.mxu0 0.0
    %357 = vmatpush1.msra.mxu0 0.0
    %358 = vmatprep.subr.mxu0 0.0
    %359 = vmatpush1.msra.mxu0 0.0
    %360 = vmatprep.subr.mxu0 0.0
    %361 = vmatpush1.msra.mxu0 0.0
    %362 = vmatprep.subr.mxu0 0.0
    %363 = vmatpush1.msra.mxu0 0.0
    %364 = vmatprep.subr.mxu0 0.0
    %365 = vmatpush1.msra.mxu0 0.0
    %366 = vmatprep.mubr.f32.mxu0 0.0
    %367 = vmatmul.mubr.f32.gmra.mrb[0].mxu0 %v85
    %v368 = vpop.f32.mrb[0].mxu0
    %v369 = vadd.f32 %v70, %v368
    %v370 = vpop.f32.mrb[0].mxu0
    %v371 = vadd.f32 %v74, %v370
    %372 = vmatprep.mubr.f32.mxu0 0.0
    %373 = vmatmul.mubr.f32.gmra.mrb[0].mxu0 %v88
    %v374 = vpop.f32.mrb[0].mxu0
    %v375 = vadd.f32 %v70, %v374
    %v376 = vpop.f32.mrb[0].mxu0
    %v377 = vadd.f32 %v74, %v376
    %378 = vmatprep.mubr.f32.mxu0 0.0
    %379 = vmatmul.mubr.f32.gmra.mrb[0].mxu0 %v91
    %v380 = vpop.f32.mrb[0].mxu0
    %v381 = vadd.f32 %v70, %v380
    %v382 = vpop.f32.mrb[0].mxu0
    %v383 = vadd.f32 %v74, %v382
    %384 = vmatprep.mubr.f32.mxu0 0.0
    %385 = vmatmul.mubr.f32.gmra.mrb[0].mxu0 %v94
    %v386 = vpop.f32.mrb[0].mxu0
    %v387 = vadd.f32 %v70, %v386
    %v388 = vpop.f32.mrb[0].mxu0
    %v389 = vadd.f32 %v74, %v388
    %390 = vmatprep.mubr.f32.mxu0 0.0
    %391 = vmatmul.mubr.f32.gmra.mrb[0].mxu0 %v97
    %v392 = vpop.f32.mrb[0].mxu0
    %v393 = vadd.f32 %v70, %v392
    %v394 = vpop.f32.mrb[0].mxu0
    %v395 = vadd.f32 %v74, %v394
    %396 = vmatprep.mubr.f32.mxu0 0.0
    %397 = vmatmul.mubr.f32.gmra.mrb[0].mxu0 %v100
    %v398 = vpop.f32.mrb[0].mxu0
    %v399 = vadd.f32 %v70, %v398
    %v400 = vpop.f32.mrb[0].mxu0
    %v401 = vadd.f32 %v74, %v400
    %402 = vmatprep.mubr.f32.mxu0 0.0
    %403 = vmatmul.mubr.f32.gmra.mrb[0].mxu0 %v103
    %v404 = vpop.f32.mrb[0].mxu0
    %v405 = vadd.f32 %v70, %v404
    %v406 = vpop.f32.mrb[0].mxu0
    %v407 = vadd.f32 %v74, %v406
    %408 = vmatprep.mubr.f32.mxu0 0.0
    %409 = vmatmul.mubr.f32.gmra.mrb[0].mxu0 %v106
    %v410 = vpop.f32.mrb[0].mxu0
    %v411 = vadd.f32 %v70, %v410
    %v412 = vpop.f32.mrb[0].mxu0
    %v413 = vadd.f32 %v74, %v412
    %414 = vmatprep.mubr.f32.mxu0 0.0
    %415 = vmatmul.mubr.f32.gmra.mrb[0].mxu0 %v109
    %v416 = vpop.f32.mrb[0].mxu0
    %v417 = vadd.f32 %v70, %v416
    %v418 = vpop.f32.mrb[0].mxu0
    %v419 = vadd.f32 %v74, %v418
    %420 = vmatprep.mubr.f32.mxu0 0.0
    %421 = vmatmul.mubr.f32.gmra.mrb[0].mxu0 %v112
    %v422 = vpop.f32.mrb[0].mxu0
    %v423 = vadd.f32 %v70, %v422
    %v424 = vpop.f32.mrb[0].mxu0
    %v425 = vadd.f32 %v74, %v424
    %426 = vmatprep.mubr.f32.mxu0 0.0
    %427 = vmatmul.mubr.f32.gmra.mrb[0].mxu0 %v115
    %v428 = vpop.f32.mrb[0].mxu0
    %v429 = vadd.f32 %v70, %v428
    %v430 = vpop.f32.mrb[0].mxu0
    %v431 = vadd.f32 %v74, %v430
    %432 = vmatprep.mubr.f32.mxu0 0.0
    %433 = vmatmul.mubr.f32.gmra.mrb[0].mxu0 %v118
    %v434 = vpop.f32.mrb[0].mxu0
    %v435 = vadd.f32 %v70, %v434
    %v436 = vpop.f32.mrb[0].mxu0
    %v437 = vadd.f32 %v74, %v436
    %438 = vmatprep.mubr.f32.mxu0 0.0
    %439 = vmatmul.mubr.f32.gmra.mrb[0].mxu0 %v121
    %v440 = vpop.f32.mrb[0].mxu0
    %v441 = vadd.f32 %v70, %v440
    %v442 = vpop.f32.mrb[0].mxu0
    %v443 = vadd.f32 %v74, %v442
    %444 = vmatprep.mubr.f32.mxu0 0.0
    %445 = vmatmul.mubr.f32.gmra.mrb[0].mxu0 %v124
    %v446 = vpop.f32.mrb[0].mxu0
    %v447 = vadd.f32 %v70, %v446
    %v448 = vpop.f32.mrb[0].mxu0
    %v449 = vadd.f32 %v74, %v448
    %450 = vmatprep.mubr.f32.mxu0 0.0
    %451 = vmatmul.mubr.f32.gmra.mrb[0].mxu0 %v127
    %v452 = vpop.f32.mrb[0].mxu0
    %v453 = vadd.f32 %v70, %v452
    %v454 = vpop.f32.mrb[0].mxu0
    %v455 = vadd.f32 %v74, %v454
    %456 = vmatprep.mubr.f32.mxu0 0.0
    %457 = vmatmul.mubr.f32.gmra.mrb[0].mxu0 %v130
    %v458 = vpop.f32.mrb[0].mxu0
    %v459 = vadd.f32 %v70, %v458
    %v460 = vpop.f32.mrb[0].mxu0
    %v461 = vadd.f32 %v74, %v460
    %462 = vdwg.mxu0
    %v463 = vld [vmem:[#allocation3] sm:$0xff]
    %v464 = vld [vmem:[#allocation3 + $0x8] sm:$0xff]
    %v465 = vld [vmem:[#allocation3 + $0x10] sm:$0xff]
    %v466 = vld [vmem:[#allocation3 + $0x18] sm:$0xff]
    %v467 = vld [vmem:[#allocation3 + $0x20] sm:$0xff]
    %v468 = vld [vmem:[#allocation3 + $0x28] sm:$0xff]
    %v469 = vld [vmem:[#allocation3 + $0x30] sm:$0xff]
    %v470 = vld [vmem:[#allocation3 + $0x38] sm:$0xff]
    %v471 = vld [vmem:[#allocation3 + $0x40] sm:$0xff]
    %v472 = vld [vmem:[#allocation3 + $0x48] sm:$0xff]
    %v473 = vld [vmem:[#allocation3 + $0x50] sm:$0xff]
    %v474 = vld [vmem:[#allocation3 + $0x58] sm:$0xff]
    %v475 = vld [vmem:[#allocation3 + $0x60] sm:$0xff]
    %v476 = vld [vmem:[#allocation3 + $0x68] sm:$0xff]
    %v477 = vld [vmem:[#allocation3 + $0x70] sm:$0xff]
    %v478 = vld [vmem:[#allocation3 + $0x78] sm:$0xff]
    %v479 = vld [vmem:[#allocation3 + $0x80] sm:$0xff]
    %v480 = vld [vmem:[#allocation3 + $0x88] sm:$0xff]
    %v481 = vld [vmem:[#allocation3 + $0x90] sm:$0xff]
    %v482 = vld [vmem:[#allocation3 + $0x98] sm:$0xff]
    %v483 = vld [vmem:[#allocation3 + $0xa0] sm:$0xff]
    %v484 = vld [vmem:[#allocation3 + $0xa8] sm:$0xff]
    %v485 = vld [vmem:[#allocation3 + $0xb0] sm:$0xff]
    %v486 = vld [vmem:[#allocation3 + $0xb8] sm:$0xff]
    %v487 = vld [vmem:[#allocation3 + $0xc0] sm:$0xff]
    %v488 = vld [vmem:[#allocation3 + $0xc8] sm:$0xff]
    %v489 = vld [vmem:[#allocation3 + $0xd0] sm:$0xff]
    %v490 = vld [vmem:[#allocation3 + $0xd8] sm:$0xff]
    %v491 = vld [vmem:[#allocation3 + $0xe0] sm:$0xff]
    %v492 = vld [vmem:[#allocation3 + $0xe8] sm:$0xff]
    %v493 = vld [vmem:[#allocation3 + $0xf0] sm:$0xff]
    %v494 = vld [vmem:[#allocation3 + $0xf8] sm:$0xff]
    %v495 = vld [vmem:[#allocation3 + $0x100] sm:$0xff]
    %v496 = vld [vmem:[#allocation3 + $0x108] sm:$0xff]
    %v497 = vld [vmem:[#allocation3 + $0x110] sm:$0xff]
    %v498 = vld [vmem:[#allocation3 + $0x118] sm:$0xff]
    %v499 = vld [vmem:[#allocation3 + $0x120] sm:$0xff]
    %v500 = vld [vmem:[#allocation3 + $0x128] sm:$0xff]
    %v501 = vld [vmem:[#allocation3 + $0x130] sm:$0xff]
    %v502 = vld [vmem:[#allocation3 + $0x138] sm:$0xff]
    %v503 = vld [vmem:[#allocation3 + $0x140] sm:$0xff]
    %v504 = vld [vmem:[#allocation3 + $0x148] sm:$0xff]
    %v505 = vld [vmem:[#allocation3 + $0x150] sm:$0xff]
    %v506 = vld [vmem:[#allocation3 + $0x158] sm:$0xff]
    %v507 = vld [vmem:[#allocation3 + $0x160] sm:$0xff]
    %v508 = vld [vmem:[#allocation3 + $0x168] sm:$0xff]
    %v509 = vld [vmem:[#allocation3 + $0x170] sm:$0xff]
    %v510 = vld [vmem:[#allocation3 + $0x178] sm:$0xff]
    %v511 = vld [vmem:[#allocation3 + $0x180] sm:$0xff]
    %v512 = vld [vmem:[#allocation3 + $0x188] sm:$0xff]
    %v513 = vld [vmem:[#allocation3 + $0x190] sm:$0xff]
    %v514 = vld [vmem:[#allocation3 + $0x198] sm:$0xff]
    %v515 = vld [vmem:[#allocation3 + $0x1a0] sm:$0xff]
    %v516 = vld [vmem:[#allocation3 + $0x1a8] sm:$0xff]
    %v517 = vld [vmem:[#allocation3 + $0x1b0] sm:$0xff]
    %v518 = vld [vmem:[#allocation3 + $0x1b8] sm:$0xff]
    %v519 = vld [vmem:[#allocation3 + $0x1c0] sm:$0xff]
    %v520 = vld [vmem:[#allocation3 + $0x1c8] sm:$0xff]
    %v521 = vld [vmem:[#allocation3 + $0x1d0] sm:$0xff]
    %v522 = vld [vmem:[#allocation3 + $0x1d8] sm:$0xff]
    %v523 = vld [vmem:[#allocation3 + $0x1e0] sm:$0xff]
    %v524 = vld [vmem:[#allocation3 + $0x1e8] sm:$0xff]
    %v525 = vld [vmem:[#allocation3 + $0x1f0] sm:$0xff]
    %v526 = vld [vmem:[#allocation3 + $0x1f8] sm:$0xff]
    %527 = vmatprep.subr.mxu0 %v464
    %528 = vmatpush1.msra.mxu0 %v463
    %529 = vmatprep.subr.mxu0 %v468
    %530 = vmatpush1.msra.mxu0 %v467
    %531 = vmatprep.subr.mxu0 %v472
    %532 = vmatpush1.msra.mxu0 %v471
    %533 = vmatprep.subr.mxu0 %v476
    %534 = vmatpush1.msra.mxu0 %v475
    %535 = vmatprep.subr.mxu0 %v480
    %536 = vmatpush1.msra.mxu0 %v479
    %537 = vmatprep.subr.mxu0 %v484
    %538 = vmatpush1.msra.mxu0 %v483
    %539 = vmatprep.subr.mxu0 %v488
    %540 = vmatpush1.msra.mxu0 %v487
    %541 = vmatprep.subr.mxu0 %v492
    %542 = vmatpush1.msra.mxu0 %v491
    %543 = vmatprep.subr.mxu0 %v496
    %544 = vmatpush1.msra.mxu0 %v495
    %545 = vmatprep.subr.mxu0 %v500
    %546 = vmatpush1.msra.mxu0 %v499
    %547 = vmatprep.subr.mxu0 %v504
    %548 = vmatpush1.msra.mxu0 %v503
    %549 = vmatprep.subr.mxu0 %v508
    %550 = vmatpush1.msra.mxu0 %v507
    %551 = vmatprep.subr.mxu0 %v512
    %552 = vmatpush1.msra.mxu0 %v511
    %553 = vmatprep.subr.mxu0 %v516
    %554 = vmatpush1.msra.mxu0 %v515
    %555 = vmatprep.subr.mxu0 %v520
    %556 = vmatpush1.msra.mxu0 %v519
    %557 = vmatprep.subr.mxu0 %v524
    %558 = vmatpush1.msra.mxu0 %v523
    %559 = vmatprep.subr.mxu0 0.0
    %560 = vmatpush1.msra.mxu0 0.0
    %561 = vmatprep.subr.mxu0 0.0
    %562 = vmatpush1.msra.mxu0 0.0
    %563 = vmatprep.subr.mxu0 0.0
    %564 = vmatpush1.msra.mxu0 0.0
    %565 = vmatprep.subr.mxu0 0.0
    %566 = vmatpush1.msra.mxu0 0.0
    %567 = vmatprep.subr.mxu0 0.0
    %568 = vmatpush1.msra.mxu0 0.0
    %569 = vmatprep.subr.mxu0 0.0
    %570 = vmatpush1.msra.mxu0 0.0
    %571 = vmatprep.subr.mxu0 0.0
    %572 = vmatpush1.msra.mxu0 0.0
    %573 = vmatprep.subr.mxu0 0.0
    %574 = vmatpush1.msra.mxu0 0.0
    %575 = vmatprep.subr.mxu0 0.0
    %576 = vmatpush1.msra.mxu0 0.0
    %577 = vmatprep.subr.mxu0 0.0
    %578 = vmatpush1.msra.mxu0 0.0
    %579 = vmatprep.subr.mxu0 0.0
    %580 = vmatpush1.msra.mxu0 0.0
    %581 = vmatprep.subr.mxu0 0.0
    %582 = vmatpush1.msra.mxu0 0.0
    %583 = vmatprep.subr.mxu0 0.0
    %584 = vmatpush1.msra.mxu0 0.0
    %585 = vmatprep.subr.mxu0 0.0
    %586 = vmatpush1.msra.mxu0 0.0
    %587 = vmatprep.subr.mxu0 0.0
    %588 = vmatpush1.msra.mxu0 0.0
    %589 = vmatprep.subr.mxu0 0.0
    %590 = vmatpush1.msra.mxu0 0.0
    %591 = vmatprep.mubr.f32.mxu0 0.0
    %592 = vmatmul.mubr.f32.gmra.mrb[0].mxu0 0.0
    %v593 = vpop.f32.mrb[0].mxu0
    %v594 = vadd.f32 0.0, %v593
    %v595 = vpop.f32.mrb[0].mxu0
    %v596 = vadd.f32 0.0, %v595
    %597 = vdwg.mxu0
    %598 = vmatprep.subr.mxu0 %v466
    %599 = vmatpush1.msra.mxu0 %v465
    %600 = vmatprep.subr.mxu0 %v470
    %601 = vmatpush1.msra.mxu0 %v469
    %602 = vmatprep.subr.mxu0 %v474
    %603 = vmatpush1.msra.mxu0 %v473
    %604 = vmatprep.subr.mxu0 %v478
    %605 = vmatpush1.msra.mxu0 %v477
    %606 = vmatprep.subr.mxu0 %v482
    %607 = vmatpush1.msra.mxu0 %v481
    %608 = vmatprep.subr.mxu0 %v486
    %609 = vmatpush1.msra.mxu0 %v485
    %610 = vmatprep.subr.mxu0 %v490
    %611 = vmatpush1.msra.mxu0 %v489
    %612 = vmatprep.subr.mxu0 %v494
    %613 = vmatpush1.msra.mxu0 %v493
    %614 = vmatprep.subr.mxu0 %v498
    %615 = vmatpush1.msra.mxu0 %v497
    %616 = vmatprep.subr.mxu0 %v502
    %617 = vmatpush1.msra.mxu0 %v501
    %618 = vmatprep.subr.mxu0 %v506
    %619 = vmatpush1.msra.mxu0 %v505
    %620 = vmatprep.subr.mxu0 %v510
    %621 = vmatpush1.msra.mxu0 %v509
    %622 = vmatprep.subr.mxu0 %v514
    %623 = vmatpush1.msra.mxu0 %v513
    %624 = vmatprep.subr.mxu0 %v518
    %625 = vmatpush1.msra.mxu0 %v517
    %626 = vmatprep.subr.mxu0 %v522
    %627 = vmatpush1.msra.mxu0 %v521
    %628 = vmatprep.subr.mxu0 %v526
    %629 = vmatpush1.msra.mxu0 %v525
    %630 = vmatprep.subr.mxu0 0.0
    %631 = vmatpush1.msra.mxu0 0.0
    %632 = vmatprep.subr.mxu0 0.0
    %633 = vmatpush1.msra.mxu0 0.0
    %634 = vmatprep.subr.mxu0 0.0
    %635 = vmatpush1.msra.mxu0 0.0
    %636 = vmatprep.subr.mxu0 0.0
    %637 = vmatpush1.msra.mxu0 0.0
    %638 = vmatprep.subr.mxu0 0.0
    %639 = vmatpush1.msra.mxu0 0.0
    %640 = vmatprep.subr.mxu0 0.0
    %641 = vmatpush1.msra.mxu0 0.0
    %642 = vmatprep.subr.mxu0 0.0
    %643 = vmatpush1.msra.mxu0 0.0
    %644 = vmatprep.subr.mxu0 0.0
    %645 = vmatpush1.msra.mxu0 0.0
    %646 = vmatprep.subr.mxu0 0.0
    %647 = vmatpush1.msra.mxu0 0.0
    %648 = vmatprep.subr.mxu0 0.0
    %649 = vmatpush1.msra.mxu0 0.0
    %650 = vmatprep.subr.mxu0 0.0
    %651 = vmatpush1.msra.mxu0 0.0
    %652 = vmatprep.subr.mxu0 0.0
    %653 = vmatpush1.msra.mxu0 0.0
    %654 = vmatprep.subr.mxu0 0.0
    %655 = vmatpush1.msra.mxu0 0.0
    %656 = vmatprep.subr.mxu0 0.0
    %657 = vmatpush1.msra.mxu0 0.0
    %658 = vmatprep.subr.mxu0 0.0
    %659 = vmatpush1.msra.mxu0 0.0
    %660 = vmatprep.subr.mxu0 0.0
    %661 = vmatpush1.msra.mxu0 0.0
    %662 = vmatprep.mubr.f32.mxu0 0.0
    %663 = vmatmul.mubr.f32.gmra.mrb[0].mxu0 0.0
    %v664 = vpop.f32.mrb[0].mxu0
    %v665 = vadd.f32 0.0, %v664
    %v666 = vpop.f32.mrb[0].mxu0
    %v667 = vadd.f32 0.0, %v666
    %668 = vdwg.mxu0
    %v669 = vadd.f32 %v208, %v594
    %v670 = vadd.f32 %v210, %v596
    %v671 = vadd.f32 %v369, %v665
    %v672 = vadd.f32 %v371, %v667
    %v673 = vxor.u32 %v669, 2147483648
    %v674 = vxor.u32 %v670, 2147483648
    %v675 = vxor.u32 %v672, 2147483648
    %v676 = vmul.f32 %v673, 1.442695
    %v677 = vpow.pop %v676
    %v678 = vmul.f32 %v674, 1.442695
    %v679 = vpow.pop %v678
    %v680 = vmul.f32 %v675, 1.442695
    %v681 = vpow.pop %v680
    %v682 = vadd.f32 %v677, 1.0
    %v683 = vadd.f32 %v679, 1.0
    %v684 = vadd.f32 %v681, 1.0
    %v685 = vrcp.pop %v682
    %v686 = vmul.f32 1.0, %v685
    %v687 = vrcp.pop %v683
    %v688 = vmul.f32 1.0, %v687
    %v689 = vrcp.pop %v684
    %v690 = vmul.f32 1.0, %v689
    %v691 = vtanh.pop %v671
    %v692 = vmul.f32 %v688, 0.0
    %v693 = vmul.f32 %v686, %v691
    %v694 = vadd.f32 %v692, %v693
    %v695 = vtanh.pop %v694
    %v696 = vmul.f32 %v690, %v695
    %v697 = vadd.f32 %v214, %v594
    %v698 = vadd.f32 %v216, %v596
    %v699 = vadd.f32 %v375, %v665
    %v700 = vadd.f32 %v377, %v667
    %v701 = vxor.u32 %v697, 2147483648
    %v702 = vxor.u32 %v698, 2147483648
    %v703 = vxor.u32 %v700, 2147483648
    %v704 = vmul.f32 %v701, 1.442695
    %v705 = vpow.pop %v704
    %v706 = vmul.f32 %v702, 1.442695
    %v707 = vpow.pop %v706
    %v708 = vmul.f32 %v703, 1.442695
    %v709 = vpow.pop %v708
    %v710 = vadd.f32 %v705, 1.0
    %v711 = vadd.f32 %v707, 1.0
    %v712 = vadd.f32 %v709, 1.0
    %v713 = vrcp.pop %v710
    %v714 = vmul.f32 1.0, %v713
    %v715 = vrcp.pop %v711
    %v716 = vmul.f32 1.0, %v715
    %v717 = vrcp.pop %v712
    %v718 = vmul.f32 1.0, %v717
    %v719 = vtanh.pop %v699
    %v720 = vmul.f32 %v716, 0.0
    %v721 = vmul.f32 %v714, %v719
    %v722 = vadd.f32 %v720, %v721
    %v723 = vtanh.pop %v722
    %v724 = vmul.f32 %v718, %v723
    %725 = vmatprep.subr.mxu0 %v464
    %726 = vmatpush1.msra.mxu0 %v463
    %727 = vmatprep.subr.mxu0 %v468
    %728 = vmatpush1.msra.mxu0 %v467
    %729 = vmatprep.subr.mxu0 %v472
    %730 = vmatpush1.msra.mxu0 %v471
    %731 = vmatprep.subr.mxu0 %v476
    %732 = vmatpush1.msra.mxu0 %v475
    %733 = vmatprep.subr.mxu0 %v480
    %734 = vmatpush1.msra.mxu0 %v479
    %735 = vmatprep.subr.mxu0 %v484
    %736 = vmatpush1.msra.mxu0 %v483
    %737 = vmatprep.subr.mxu0 %v488
    %738 = vmatpush1.msra.mxu0 %v487
    %739 = vmatprep.subr.mxu0 %v492
    %740 = vmatpush1.msra.mxu0 %v491
    %741 = vmatprep.subr.mxu0 %v496
    %742 = vmatpush1.msra.mxu0 %v495
    %743 = vmatprep.subr.mxu0 %v500
    %744 = vmatpush1.msra.mxu0 %v499
    %745 = vmatprep.subr.mxu0 %v504
    %746 = vmatpush1.msra.mxu0 %v503
    %747 = vmatprep.subr.mxu0 %v508
    %748 = vmatpush1.msra.mxu0 %v507
    %749 = vmatprep.subr.mxu0 %v512
    %750 = vmatpush1.msra.mxu0 %v511
    %751 = vmatprep.subr.mxu0 %v516
    %752 = vmatpush1.msra.mxu0 %v515
    %753 = vmatprep.subr.mxu0 %v520
    %754 = vmatpush1.msra.mxu0 %v519
    %755 = vmatprep.subr.mxu0 %v524
    %756 = vmatpush1.msra.mxu0 %v523
    %757 = vmatprep.subr.mxu0 0.0
    %758 = vmatpush1.msra.mxu0 0.0
    %759 = vmatprep.subr.mxu0 0.0
    %760 = vmatpush1.msra.mxu0 0.0
    %761 = vmatprep.subr.mxu0 0.0
    %762 = vmatpush1.msra.mxu0 0.0
    %763 = vmatprep.subr.mxu0 0.0
    %764 = vmatpush1.msra.mxu0 0.0
    %765 = vmatprep.subr.mxu0 0.0
    %766 = vmatpush1.msra.mxu0 0.0
    %767 = vmatprep.subr.mxu0 0.0
    %768 = vmatpush1.msra.mxu0 0.0
    %769 = vmatprep.subr.mxu0 0.0
    %770 = vmatpush1.msra.mxu0 0.0
    %771 = vmatprep.subr.mxu0 0.0
    %772 = vmatpush1.msra.mxu0 0.0
    %773 = vmatprep.subr.mxu0 0.0
    %774 = vmatpush1.msra.mxu0 0.0
    %775 = vmatprep.subr.mxu0 0.0
    %776 = vmatpush1.msra.mxu0 0.0
    %777 = vmatprep.subr.mxu0 0.0
    %778 = vmatpush1.msra.mxu0 0.0
    %779 = vmatprep.subr.mxu0 0.0
    %780 = vmatpush1.msra.mxu0 0.0
    %781 = vmatprep.subr.mxu0 0.0
    %782 = vmatpush1.msra.mxu0 0.0
    %783 = vmatprep.subr.mxu0 0.0
    %784 = vmatpush1.msra.mxu0 0.0
    %785 = vmatprep.subr.mxu0 0.0
    %786 = vmatpush1.msra.mxu0 0.0
    %787 = vmatprep.subr.mxu0 0.0
    %788 = vmatpush1.msra.mxu0 0.0
    %789 = vmatprep.mubr.f32.mxu0 0.0
    %790 = vmatmul.mubr.f32.gmra.mrb[0].mxu0 %v696
    %v791 = vpop.f32.mrb[0].mxu0
    %v792 = vadd.f32 0.0, %v791
    %v793 = vpop.f32.mrb[0].mxu0
    %v794 = vadd.f32 0.0, %v793
    %795 = vdwg.mxu0
    %796 = vmatprep.subr.mxu0 %v466
    %797 = vmatpush1.msra.mxu0 %v465
    %798 = vmatprep.subr.mxu0 %v470
    %799 = vmatpush1.msra.mxu0 %v469
    %800 = vmatprep.subr.mxu0 %v474
    %801 = vmatpush1.msra.mxu0 %v473
    %802 = vmatprep.subr.mxu0 %v478
    %803 = vmatpush1.msra.mxu0 %v477
    %804 = vmatprep.subr.mxu0 %v482
    %805 = vmatpush1.msra.mxu0 %v481
    %806 = vmatprep.subr.mxu0 %v486
    %807 = vmatpush1.msra.mxu0 %v485
    %808 = vmatprep.subr.mxu0 %v490
    %809 = vmatpush1.msra.mxu0 %v489
    %810 = vmatprep.subr.mxu0 %v494
    %811 = vmatpush1.msra.mxu0 %v493
    %812 = vmatprep.subr.mxu0 %v498
    %813 = vmatpush1.msra.mxu0 %v497
    %814 = vmatprep.subr.mxu0 %v502
    %815 = vmatpush1.msra.mxu0 %v501
    %816 = vmatprep.subr.mxu0 %v506
    %817 = vmatpush1.msra.mxu0 %v505
    %818 = vmatprep.subr.mxu0 %v510
    %819 = vmatpush1.msra.mxu0 %v509
    %820 = vmatprep.subr.mxu0 %v514
    %821 = vmatpush1.msra.mxu0 %v513
    %822 = vmatprep.subr.mxu0 %v518
    %823 = vmatpush1.msra.mxu0 %v517
    %824 = vmatprep.subr.mxu0 %v522
    %825 = vmatpush1.msra.mxu0 %v521
    %826 = vmatprep.subr.mxu0 %v526
    %827 = vmatpush1.msra.mxu0 %v525
    %828 = vmatprep.subr.mxu0 0.0
    %829 = vmatpush1.msra.mxu0 0.0
    %830 = vmatprep.subr.mxu0 0.0
    %831 = vmatpush1.msra.mxu0 0.0
    %832 = vmatprep.subr.mxu0 0.0
    %833 = vmatpush1.msra.mxu0 0.0
    %834 = vmatprep.subr.mxu0 0.0
    %835 = vmatpush1.msra.mxu0 0.0
    %836 = vmatprep.subr.mxu0 0.0
    %837 = vmatpush1.msra.mxu0 0.0
    %838 = vmatprep.subr.mxu0 0.0
    %839 = vmatpush1.msra.mxu0 0.0
    %840 = vmatprep.subr.mxu0 0.0
    %841 = vmatpush1.msra.mxu0 0.0
    %842 = vmatprep.subr.mxu0 0.0
    %843 = vmatpush1.msra.mxu0 0.0
    %844 = vmatprep.subr.mxu0 0.0
    %845 = vmatpush1.msra.mxu0 0.0
    %846 = vmatprep.subr.mxu0 0.0
    %847 = vmatpush1.msra.mxu0 0.0
    %848 = vmatprep.subr.mxu0 0.0
    %849 = vmatpush1.msra.mxu0 0.0
    %850 = vmatprep.subr.mxu0 0.0
    %851 = vmatpush1.msra.mxu0 0.0
    %852 = vmatprep.subr.mxu0 0.0
    %853 = vmatpush1.msra.mxu0 0.0
    %854 = vmatprep.subr.mxu0 0.0
    %855 = vmatpush1.msra.mxu0 0.0
    %856 = vmatprep.subr.mxu0 0.0
    %857 = vmatpush1.msra.mxu0 0.0
    %858 = vmatprep.subr.mxu0 0.0
    %859 = vmatpush1.msra.mxu0 0.0
    %860 = vmatprep.mubr.f32.mxu0 0.0
    %861 = vmatmul.mubr.f32.gmra.mrb[0].mxu0 %v696
    %v862 = vpop.f32.mrb[0].mxu0
    %v863 = vadd.f32 0.0, %v862
    %v864 = vpop.f32.mrb[0].mxu0
    %v865 = vadd.f32 0.0, %v864
    %866 = vdwg.mxu0
    %v867 = vadd.f32 %v220, %v792
    %v868 = vadd.f32 %v222, %v794
    %v869 = vadd.f32 %v381, %v863
    %v870 = vadd.f32 %v383, %v865
    %v871 = vxor.u32 %v867, 2147483648
    %v872 = vxor.u32 %v868, 2147483648
    %v873 = vxor.u32 %v870, 2147483648
    %v874 = vmul.f32 %v871, 1.442695
    %v875 = vpow.pop %v874
    %v876 = vmul.f32 %v872, 1.442695
    %v877 = vpow.pop %v876
    %v878 = vmul.f32 %v873, 1.442695
    %v879 = vpow.pop %v878
    %v880 = vadd.f32 %v875, 1.0
    %v881 = vadd.f32 %v877, 1.0
    %v882 = vadd.f32 %v879, 1.0
    %v883 = vrcp.pop %v880
    %v884 = vmul.f32 1.0, %v883
    %v885 = vrcp.pop %v881
    %v886 = vmul.f32 1.0, %v885
    %v887 = vrcp.pop %v882
    %v888 = vmul.f32 1.0, %v887
    %v889 = vtanh.pop %v869
    %v890 = vmul.f32 %v886, %v694
    %v891 = vmul.f32 %v884, %v889
    %v892 = vadd.f32 %v890, %v891
    %v893 = vtanh.pop %v892
    %v894 = vmul.f32 %v888, %v893
    %895 = vmatprep.subr.mxu0 %v464
    %896 = vmatpush1.msra.mxu0 %v463
    %897 = vmatprep.subr.mxu0 %v468
    %898 = vmatpush1.msra.mxu0 %v467
    %899 = vmatprep.subr.mxu0 %v472
    %900 = vmatpush1.msra.mxu0 %v471
    %901 = vmatprep.subr.mxu0 %v476
    %902 = vmatpush1.msra.mxu0 %v475
    %903 = vmatprep.subr.mxu0 %v480
    %904 = vmatpush1.msra.mxu0 %v479
    %905 = vmatprep.subr.mxu0 %v484
    %906 = vmatpush1.msra.mxu0 %v483
    %907 = vmatprep.subr.mxu0 %v488
    %908 = vmatpush1.msra.mxu0 %v487
    %909 = vmatprep.subr.mxu0 %v492
    %910 = vmatpush1.msra.mxu0 %v491
    %911 = vmatprep.subr.mxu0 %v496
    %912 = vmatpush1.msra.mxu0 %v495
    %913 = vmatprep.subr.mxu0 %v500
    %914 = vmatpush1.msra.mxu0 %v499
    %915 = vmatprep.subr.mxu0 %v504
    %916 = vmatpush1.msra.mxu0 %v503
    %917 = vmatprep.subr.mxu0 %v508
    %918 = vmatpush1.msra.mxu0 %v507
    %919 = vmatprep.subr.mxu0 %v512
    %920 = vmatpush1.msra.mxu0 %v511
    %921 = vmatprep.subr.mxu0 %v516
    %922 = vmatpush1.msra.mxu0 %v515
    %923 = vmatprep.subr.mxu0 %v520
    %924 = vmatpush1.msra.mxu0 %v519
    %925 = vmatprep.subr.mxu0 %v524
    %926 = vmatpush1.msra.mxu0 %v523
    %927 = vmatprep.subr.mxu0 0.0
    %928 = vmatpush1.msra.mxu0 0.0
    %929 = vmatprep.subr.mxu0 0.0
    %930 = vmatpush1.msra.mxu0 0.0
    %931 = vmatprep.subr.mxu0 0.0
    %932 = vmatpush1.msra.mxu0 0.0
    %933 = vmatprep.subr.mxu0 0.0
    %934 = vmatpush1.msra.mxu0 0.0
    %935 = vmatprep.subr.mxu0 0.0
    %936 = vmatpush1.msra.mxu0 0.0
    %937 = vmatprep.subr.mxu0 0.0
    %938 = vmatpush1.msra.mxu0 0.0
    %939 = vmatprep.subr.mxu0 0.0
    %940 = vmatpush1.msra.mxu0 0.0
    %941 = vmatprep.subr.mxu0 0.0
    %942 = vmatpush1.msra.mxu0 0.0
    %943 = vmatprep.subr.mxu0 0.0
    %944 = vmatpush1.msra.mxu0 0.0
    %945 = vmatprep.subr.mxu0 0.0
    %946 = vmatpush1.msra.mxu0 0.0
    %947 = vmatprep.subr.mxu0 0.0
    %948 = vmatpush1.msra.mxu0 0.0
    %949 = vmatprep.subr.mxu0 0.0
    %950 = vmatpush1.msra.mxu0 0.0
    %951 = vmatprep.subr.mxu0 0.0
    %952 = vmatpush1.msra.mxu0 0.0
    %953 = vmatprep.subr.mxu0 0.0
    %954 = vmatpush1.msra.mxu0 0.0
    %955 = vmatprep.subr.mxu0 0.0
    %956 = vmatpush1.msra.mxu0 0.0
    %957 = vmatprep.subr.mxu0 0.0
    %958 = vmatpush1.msra.mxu0 0.0
    %959 = vmatprep.mubr.f32.mxu0 0.0
    %960 = vmatmul.mubr.f32.gmra.mrb[0].mxu0 %v724
    %v961 = vpop.f32.mrb[0].mxu0
    %v962 = vadd.f32 0.0, %v961
    %v963 = vpop.f32.mrb[0].mxu0
    %v964 = vadd.f32 0.0, %v963
    %965 = vdwg.mxu0
    %966 = vmatprep.subr.mxu0 %v466
    %967 = vmatpush1.msra.mxu0 %v465
    %968 = vmatprep.subr.mxu0 %v470
    %969 = vmatpush1.msra.mxu0 %v469
    %970 = vmatprep.subr.mxu0 %v474
    %971 = vmatpush1.msra.mxu0 %v473
    %972 = vmatprep.subr.mxu0 %v478
    %973 = vmatpush1.msra.mxu0 %v477
    %974 = vmatprep.subr.mxu0 %v482
    %975 = vmatpush1.msra.mxu0 %v481
    %976 = vmatprep.subr.mxu0 %v486
    %977 = vmatpush1.msra.mxu0 %v485
    %978 = vmatprep.subr.mxu0 %v490
    %979 = vmatpush1.msra.mxu0 %v489
    %980 = vmatprep.subr.mxu0 %v494
    %981 = vmatpush1.msra.mxu0 %v493
    %982 = vmatprep.subr.mxu0 %v498
    %983 = vmatpush1.msra.mxu0 %v497
    %984 = vmatprep.subr.mxu0 %v502
    %985 = vmatpush1.msra.mxu0 %v501
    %986 = vmatprep.subr.mxu0 %v506
    %987 = vmatpush1.msra.mxu0 %v505
    %988 = vmatprep.subr.mxu0 %v510
    %989 = vmatpush1.msra.mxu0 %v509
    %990 = vmatprep.subr.mxu0 %v514
    %991 = vmatpush1.msra.mxu0 %v513
    %992 = vmatprep.subr.mxu0 %v518
    %993 = vmatpush1.msra.mxu0 %v517
    %994 = vmatprep.subr.mxu0 %v522
    %995 = vmatpush1.msra.mxu0 %v521
    %996 = vmatprep.subr.mxu0 %v526
    %997 = vmatpush1.msra.mxu0 %v525
    %998 = vmatprep.subr.mxu0 0.0
    %999 = vmatpush1.msra.mxu0 0.0
    %1000 = vmatprep.subr.mxu0 0.0
    %1001 = vmatpush1.msra.mxu0 0.0
    %1002 = vmatprep.subr.mxu0 0.0
    %1003 = vmatpush1.msra.mxu0 0.0
    %1004 = vmatprep.subr.mxu0 0.0
    %1005 = vmatpush1.msra.mxu0 0.0
    %1006 = vmatprep.subr.mxu0 0.0
    %1007 = vmatpush1.msra.mxu0 0.0
    %1008 = vmatprep.subr.mxu0 0.0
    %1009 = vmatpush1.msra.mxu0 0.0
    %1010 = vmatprep.subr.mxu0 0.0
    %1011 = vmatpush1.msra.mxu0 0.0
    %1012 = vmatprep.subr.mxu0 0.0
    %1013 = vmatpush1.msra.mxu0 0.0
    %1014 = vmatprep.subr.mxu0 0.0
    %1015 = vmatpush1.msra.mxu0 0.0
    %1016 = vmatprep.subr.mxu0 0.0
    %1017 = vmatpush1.msra.mxu0 0.0
    %1018 = vmatprep.subr.mxu0 0.0
    %1019 = vmatpush1.msra.mxu0 0.0
    %1020 = vmatprep.subr.mxu0 0.0
    %1021 = vmatpush1.msra.mxu0 0.0
    %1022 = vmatprep.subr.mxu0 0.0
    %1023 = vmatpush1.msra.mxu0 0.0
    %1024 = vmatprep.subr.mxu0 0.0
    %1025 = vmatpush1.msra.mxu0 0.0
    %1026 = vmatprep.subr.mxu0 0.0
    %1027 = vmatpush1.msra.mxu0 0.0
    %1028 = vmatprep.subr.mxu0 0.0
    %1029 = vmatpush1.msra.mxu0 0.0
    %1030 = vmatprep.mubr.f32.mxu0 0.0
    %1031 = vmatmul.mubr.f32.gmra.mrb[0].mxu0 %v724
    %v1032 = vpop.f32.mrb[0].mxu0
    %v1033 = vadd.f32 0.0, %v1032
    %v1034 = vpop.f32.mrb[0].mxu0
    %v1035 = vadd.f32 0.0, %v1034
    %1036 = vdwg.mxu0
    %v1037 = vadd.f32 %v226, %v962
    %v1038 = vadd.f32 %v228, %v964
    %v1039 = vadd.f32 %v387, %v1033
    %v1040 = vadd.f32 %v389, %v1035
    %v1041 = vxor.u32 %v1037, 2147483648
    %v1042 = vxor.u32 %v1038, 2147483648
    %v1043 = vxor.u32 %v1040, 2147483648
    %v1044 = vmul.f32 %v1041, 1.442695
    %v1045 = vpow.pop %v1044
    %v1046 = vmul.f32 %v1042, 1.442695
    %v1047 = vpow.pop %v1046
    %v1048 = vmul.f32 %v1043, 1.442695
    %v1049 = vpow.pop %v1048
    %v1050 = vadd.f32 %v1045, 1.0
    %v1051 = vadd.f32 %v1047, 1.0
    %v1052 = vadd.f32 %v1049, 1.0
    %v1053 = vrcp.pop %v1050
    %v1054 = vmul.f32 1.0, %v1053
    %v1055 = vrcp.pop %v1051
    %v1056 = vmul.f32 1.0, %v1055
    %v1057 = vrcp.pop %v1052
    %v1058 = vmul.f32 1.0, %v1057
    %v1059 = vtanh.pop %v1039
    %v1060 = vmul.f32 %v1056, %v722
    %v1061 = vmul.f32 %v1054, %v1059
    %v1062 = vadd.f32 %v1060, %v1061
    %v1063 = vtanh.pop %v1062
    %v1064 = vmul.f32 %v1058, %v1063
    %1065 = vmatprep.subr.mxu0 %v464
    %1066 = vmatpush1.msra.mxu0 %v463
    %1067 = vmatprep.subr.mxu0 %v468
    %1068 = vmatpush1.msra.mxu0 %v467
    %1069 = vmatprep.subr.mxu0 %v472
    %1070 = vmatpush1.msra.mxu0 %v471
    %1071 = vmatprep.subr.mxu0 %v476
    %1072 = vmatpush1.msra.mxu0 %v475
    %1073 = vmatprep.subr.mxu0 %v480
    %1074 = vmatpush1.msra.mxu0 %v479
    %1075 = vmatprep.subr.mxu0 %v484
    %1076 = vmatpush1.msra.mxu0 %v483
    %1077 = vmatprep.subr.mxu0 %v488
    %1078 = vmatpush1.msra.mxu0 %v487
    %1079 = vmatprep.subr.mxu0 %v492
    %1080 = vmatpush1.msra.mxu0 %v491
    %1081 = vmatprep.subr.mxu0 %v496
    %1082 = vmatpush1.msra.mxu0 %v495
    %1083 = vmatprep.subr.mxu0 %v500
    %1084 = vmatpush1.msra.mxu0 %v499
    %1085 = vmatprep.subr.mxu0 %v504
    %1086 = vmatpush1.msra.mxu0 %v503
    %1087 = vmatprep.subr.mxu0 %v508
    %1088 = vmatpush1.msra.mxu0 %v507
    %1089 = vmatprep.subr.mxu0 %v512
    %1090 = vmatpush1.msra.mxu0 %v511
    %1091 = vmatprep.subr.mxu0 %v516
    %1092 = vmatpush1.msra.mxu0 %v515
    %1093 = vmatprep.subr.mxu0 %v520
    %1094 = vmatpush1.msra.mxu0 %v519
    %1095 = vmatprep.subr.mxu0 %v524
    %1096 = vmatpush1.msra.mxu0 %v523
    %1097 = vmatprep.subr.mxu0 0.0
    %1098 = vmatpush1.msra.mxu0 0.0
    %1099 = vmatprep.subr.mxu0 0.0
    %1100 = vmatpush1.msra.mxu0 0.0
    %1101 = vmatprep.subr.mxu0 0.0
    %1102 = vmatpush1.msra.mxu0 0.0
    %1103 = vmatprep.subr.mxu0 0.0
    %1104 = vmatpush1.msra.mxu0 0.0
    %1105 = vmatprep.subr.mxu0 0.0
    %1106 = vmatpush1.msra.mxu0 0.0
    %1107 = vmatprep.subr.mxu0 0.0
    %1108 = vmatpush1.msra.mxu0 0.0
    %1109 = vmatprep.subr.mxu0 0.0
    %1110 = vmatpush1.msra.mxu0 0.0
    %1111 = vmatprep.subr.mxu0 0.0
    %1112 = vmatpush1.msra.mxu0 0.0
    %1113 = vmatprep.subr.mxu0 0.0
    %1114 = vmatpush1.msra.mxu0 0.0
    %1115 = vmatprep.subr.mxu0 0.0
    %1116 = vmatpush1.msra.mxu0 0.0
    %1117 = vmatprep.subr.mxu0 0.0
    %1118 = vmatpush1.msra.mxu0 0.0
    %1119 = vmatprep.subr.mxu0 0.0
    %1120 = vmatpush1.msra.mxu0 0.0
    %1121 = vmatprep.subr.mxu0 0.0
    %1122 = vmatpush1.msra.mxu0 0.0
    %1123 = vmatprep.subr.mxu0 0.0
    %1124 = vmatpush1.msra.mxu0 0.0
    %1125 = vmatprep.subr.mxu0 0.0
    %1126 = vmatpush1.msra.mxu0 0.0
    %1127 = vmatprep.subr.mxu0 0.0
    %1128 = vmatpush1.msra.mxu0 0.0
    %1129 = vmatprep.mubr.f32.mxu0 0.0
    %1130 = vmatmul.mubr.f32.gmra.mrb[0].mxu0 %v894
    %v1131 = vpop.f32.mrb[0].mxu0
    %v1132 = vadd.f32 0.0, %v1131
    %v1133 = vpop.f32.mrb[0].mxu0
    %v1134 = vadd.f32 0.0, %v1133
    %1135 = vdwg.mxu0
    %1136 = vmatprep.subr.mxu0 %v466
    %1137 = vmatpush1.msra.mxu0 %v465
    %1138 = vmatprep.subr.mxu0 %v470
    %1139 = vmatpush1.msra.mxu0 %v469
    %1140 = vmatprep.subr.mxu0 %v474
    %1141 = vmatpush1.msra.mxu0 %v473
    %1142 = vmatprep.subr.mxu0 %v478
    %1143 = vmatpush1.msra.mxu0 %v477
    %1144 = vmatprep.subr.mxu0 %v482
    %1145 = vmatpush1.msra.mxu0 %v481
    %1146 = vmatprep.subr.mxu0 %v486
    %1147 = vmatpush1.msra.mxu0 %v485
    %1148 = vmatprep.subr.mxu0 %v490
    %1149 = vmatpush1.msra.mxu0 %v489
    %1150 = vmatprep.subr.mxu0 %v494
    %1151 = vmatpush1.msra.mxu0 %v493
    %1152 = vmatprep.subr.mxu0 %v498
    %1153 = vmatpush1.msra.mxu0 %v497
    %1154 = vmatprep.subr.mxu0 %v502
    %1155 = vmatpush1.msra.mxu0 %v501
    %1156 = vmatprep.subr.mxu0 %v506
    %1157 = vmatpush1.msra.mxu0 %v505
    %1158 = vmatprep.subr.mxu0 %v510
    %1159 = vmatpush1.msra.mxu0 %v509
    %1160 = vmatprep.subr.mxu0 %v514
    %1161 = vmatpush1.msra.mxu0 %v513
    %1162 = vmatprep.subr.mxu0 %v518
    %1163 = vmatpush1.msra.mxu0 %v517
    %1164 = vmatprep.subr.mxu0 %v522
    %1165 = vmatpush1.msra.mxu0 %v521
    %1166 = vmatprep.subr.mxu0 %v526
    %1167 = vmatpush1.msra.mxu0 %v525
    %1168 = vmatprep.subr.mxu0 0.0
    %1169 = vmatpush1.msra.mxu0 0.0
    %1170 = vmatprep.subr.mxu0 0.0
    %1171 = vmatpush1.msra.mxu0 0.0
    %1172 = vmatprep.subr.mxu0 0.0
    %1173 = vmatpush1.msra.mxu0 0.0
    %1174 = vmatprep.subr.mxu0 0.0
    %1175 = vmatpush1.msra.mxu0 0.0
    %1176 = vmatprep.subr.mxu0 0.0
    %1177 = vmatpush1.msra.mxu0 0.0
    %1178 = vmatprep.subr.mxu0 0.0
    %1179 = vmatpush1.msra.mxu0 0.0
    %1180 = vmatprep.subr.mxu0 0.0
    %1181 = vmatpush1.msra.mxu0 0.0
    %1182 = vmatprep.subr.mxu0 0.0
    %1183 = vmatpush1.msra.mxu0 0.0
    %1184 = vmatprep.subr.mxu0 0.0
    %1185 = vmatpush1.msra.mxu0 0.0
    %1186 = vmatprep.subr.mxu0 0.0
    %1187 = vmatpush1.msra.mxu0 0.0
    %1188 = vmatprep.subr.mxu0 0.0
    %1189 = vmatpush1.msra.mxu0 0.0
    %1190 = vmatprep.subr.mxu0 0.0
    %1191 = vmatpush1.msra.mxu0 0.0
    %1192 = vmatprep.subr.mxu0 0.0
    %1193 = vmatpush1.msra.mxu0 0.0
    %1194 = vmatprep.subr.mxu0 0.0
    %1195 = vmatpush1.msra.mxu0 0.0
    %1196 = vmatprep.subr.mxu0 0.0
    %1197 = vmatpush1.msra.mxu0 0.0
    %1198 = vmatprep.subr.mxu0 0.0
    %1199 = vmatpush1.msra.mxu0 0.0
    %1200 = vmatprep.mubr.f32.mxu0 0.0
    %1201 = vmatmul.mubr.f32.gmra.mrb[0].mxu0 %v894
    %v1202 = vpop.f32.mrb[0].mxu0
    %v1203 = vadd.f32 0.0, %v1202
    %v1204 = vpop.f32.mrb[0].mxu0
    %v1205 = vadd.f32 0.0, %v1204
    %1206 = vdwg.mxu0
    %v1207 = vadd.f32 %v232, %v1132
    %v1208 = vadd.f32 %v234, %v1134
    %v1209 = vadd.f32 %v393, %v1203
    %v1210 = vadd.f32 %v395, %v1205
    %v1211 = vxor.u32 %v1207, 2147483648
    %v1212 = vxor.u32 %v1208, 2147483648
    %v1213 = vxor.u32 %v1210, 2147483648
    %v1214 = vmul.f32 %v1211, 1.442695
    %v1215 = vpow.pop %v1214
    %v1216 = vmul.f32 %v1212, 1.442695
    %v1217 = vpow.pop %v1216
    %v1218 = vmul.f32 %v1213, 1.442695
    %v1219 = vpow.pop %v1218
    %v1220 = vadd.f32 %v1215, 1.0
    %v1221 = vadd.f32 %v1217, 1.0
    %v1222 = vadd.f32 %v1219, 1.0
    %v1223 = vrcp.pop %v1220
    %v1224 = vmul.f32 1.0, %v1223
    %v1225 = vrcp.pop %v1221
    %v1226 = vmul.f32 1.0, %v1225
    %v1227 = vrcp.pop %v1222
    %v1228 = vmul.f32 1.0, %v1227
    %v1229 = vtanh.pop %v1209
    %v1230 = vmul.f32 %v1226, %v892
    %v1231 = vmul.f32 %v1224, %v1229
    %v1232 = vadd.f32 %v1230, %v1231
    %v1233 = vtanh.pop %v1232
    %v1234 = vmul.f32 %v1228, %v1233
    %1235 = vmatprep.subr.mxu0 %v464
    %1236 = vmatpush1.msra.mxu0 %v463
    %1237 = vmatprep.subr.mxu0 %v468
    %1238 = vmatpush1.msra.mxu0 %v467
    %1239 = vmatprep.subr.mxu0 %v472
    %1240 = vmatpush1.msra.mxu0 %v471
    %1241 = vmatprep.subr.mxu0 %v476
    %1242 = vmatpush1.msra.mxu0 %v475
    %1243 = vmatprep.subr.mxu0 %v480
    %1244 = vmatpush1.msra.mxu0 %v479
    %1245 = vmatprep.subr.mxu0 %v484
    %1246 = vmatpush1.msra.mxu0 %v483
    %1247 = vmatprep.subr.mxu0 %v488
    %1248 = vmatpush1.msra.mxu0 %v487
    %1249 = vmatprep.subr.mxu0 %v492
    %1250 = vmatpush1.msra.mxu0 %v491
    %1251 = vmatprep.subr.mxu0 %v496
    %1252 = vmatpush1.msra.mxu0 %v495
    %1253 = vmatprep.subr.mxu0 %v500
    %1254 = vmatpush1.msra.mxu0 %v499
    %1255 = vmatprep.subr.mxu0 %v504
    %1256 = vmatpush1.msra.mxu0 %v503
    %1257 = vmatprep.subr.mxu0 %v508
    %1258 = vmatpush1.msra.mxu0 %v507
    %1259 = vmatprep.subr.mxu0 %v512
    %1260 = vmatpush1.msra.mxu0 %v511
    %1261 = vmatprep.subr.mxu0 %v516
    %1262 = vmatpush1.msra.mxu0 %v515
    %1263 = vmatprep.subr.mxu0 %v520
    %1264 = vmatpush1.msra.mxu0 %v519
    %1265 = vmatprep.subr.mxu0 %v524
    %1266 = vmatpush1.msra.mxu0 %v523
    %1267 = vmatprep.subr.mxu0 0.0
    %1268 = vmatpush1.msra.mxu0 0.0
    %1269 = vmatprep.subr.mxu0 0.0
    %1270 = vmatpush1.msra.mxu0 0.0
    %1271 = vmatprep.subr.mxu0 0.0
    %1272 = vmatpush1.msra.mxu0 0.0
    %1273 = vmatprep.subr.mxu0 0.0
    %1274 = vmatpush1.msra.mxu0 0.0
    %1275 = vmatprep.subr.mxu0 0.0
    %1276 = vmatpush1.msra.mxu0 0.0
    %1277 = vmatprep.subr.mxu0 0.0
    %1278 = vmatpush1.msra.mxu0 0.0
    %1279 = vmatprep.subr.mxu0 0.0
    %1280 = vmatpush1.msra.mxu0 0.0
    %1281 = vmatprep.subr.mxu0 0.0
    %1282 = vmatpush1.msra.mxu0 0.0
    %1283 = vmatprep.subr.mxu0 0.0
    %1284 = vmatpush1.msra.mxu0 0.0
    %1285 = vmatprep.subr.mxu0 0.0
    %1286 = vmatpush1.msra.mxu0 0.0
    %1287 = vmatprep.subr.mxu0 0.0
    %1288 = vmatpush1.msra.mxu0 0.0
    %1289 = vmatprep.subr.mxu0 0.0
    %1290 = vmatpush1.msra.mxu0 0.0
    %1291 = vmatprep.subr.mxu0 0.0
    %1292 = vmatpush1.msra.mxu0 0.0
    %1293 = vmatprep.subr.mxu0 0.0
    %1294 = vmatpush1.msra.mxu0 0.0
    %1295 = vmatprep.subr.mxu0 0.0
    %1296 = vmatpush1.msra.mxu0 0.0
    %1297 = vmatprep.subr.mxu0 0.0
    %1298 = vmatpush1.msra.mxu0 0.0
    %1299 = vmatprep.mubr.f32.mxu0 0.0
    %1300 = vmatmul.mubr.f32.gmra.mrb[0].mxu0 %v1064
    %v1301 = vpop.f32.mrb[0].mxu0
    %v1302 = vadd.f32 0.0, %v1301
    %v1303 = vpop.f32.mrb[0].mxu0
    %v1304 = vadd.f32 0.0, %v1303
    %1305 = vdwg.mxu0
    %1306 = vmatprep.subr.mxu0 %v466
    %1307 = vmatpush1.msra.mxu0 %v465
    %1308 = vmatprep.subr.mxu0 %v470
    %1309 = vmatpush1.msra.mxu0 %v469
    %1310 = vmatprep.subr.mxu0 %v474
    %1311 = vmatpush1.msra.mxu0 %v473
    %1312 = vmatprep.subr.mxu0 %v478
    %1313 = vmatpush1.msra.mxu0 %v477
    %1314 = vmatprep.subr.mxu0 %v482
    %1315 = vmatpush1.msra.mxu0 %v481
    %1316 = vmatprep.subr.mxu0 %v486
    %1317 = vmatpush1.msra.mxu0 %v485
    %1318 = vmatprep.subr.mxu0 %v490
    %1319 = vmatpush1.msra.mxu0 %v489
    %1320 = vmatprep.subr.mxu0 %v494
    %1321 = vmatpush1.msra.mxu0 %v493
    %1322 = vmatprep.subr.mxu0 %v498
    %1323 = vmatpush1.msra.mxu0 %v497
    %1324 = vmatprep.subr.mxu0 %v502
    %1325 = vmatpush1.msra.mxu0 %v501
    %1326 = vmatprep.subr.mxu0 %v506
    %1327 = vmatpush1.msra.mxu0 %v505
    %1328 = vmatprep.subr.mxu0 %v510
    %1329 = vmatpush1.msra.mxu0 %v509
    %1330 = vmatprep.subr.mxu0 %v514
    %1331 = vmatpush1.msra.mxu0 %v513
    %1332 = vmatprep.subr.mxu0 %v518
    %1333 = vmatpush1.msra.mxu0 %v517
    %1334 = vmatprep.subr.mxu0 %v522
    %1335 = vmatpush1.msra.mxu0 %v521
    %1336 = vmatprep.subr.mxu0 %v526
    %1337 = vmatpush1.msra.mxu0 %v525
    %1338 = vmatprep.subr.mxu0 0.0
    %1339 = vmatpush1.msra.mxu0 0.0
    %1340 = vmatprep.subr.mxu0 0.0
    %1341 = vmatpush1.msra.mxu0 0.0
    %1342 = vmatprep.subr.mxu0 0.0
    %1343 = vmatpush1.msra.mxu0 0.0
    %1344 = vmatprep.subr.mxu0 0.0
    %1345 = vmatpush1.msra.mxu0 0.0
    %1346 = vmatprep.subr.mxu0 0.0
    %1347 = vmatpush1.msra.mxu0 0.0
    %1348 = vmatprep.subr.mxu0 0.0
    %1349 = vmatpush1.msra.mxu0 0.0
    %1350 = vmatprep.subr.mxu0 0.0
    %1351 = vmatpush1.msra.mxu0 0.0
    %1352 = vmatprep.subr.mxu0 0.0
    %1353 = vmatpush1.msra.mxu0 0.0
    %1354 = vmatprep.subr.mxu0 0.0
    %1355 = vmatpush1.msra.mxu0 0.0
    %1356 = vmatprep.subr.mxu0 0.0
    %1357 = vmatpush1.msra.mxu0 0.0
    %1358 = vmatprep.subr.mxu0 0.0
    %1359 = vmatpush1.msra.mxu0 0.0
    %1360 = vmatprep.subr.mxu0 0.0
    %1361 = vmatpush1.msra.mxu0 0.0
    %1362 = vmatprep.subr.mxu0 0.0
    %1363 = vmatpush1.msra.mxu0 0.0
    %1364 = vmatprep.subr.mxu0 0.0
    %1365 = vmatpush1.msra.mxu0 0.0
    %1366 = vmatprep.subr.mxu0 0.0
    %1367 = vmatpush1.msra.mxu0 0.0
    %1368 = vmatprep.subr.mxu0 0.0
    %1369 = vmatpush1.msra.mxu0 0.0
    %1370 = vmatprep.mubr.f32.mxu0 0.0
    %1371 = vmatmul.mubr.f32.gmra.mrb[0].mxu0 %v1064
    %v1372 = vpop.f32.mrb[0].mxu0
    %v1373 = vadd.f32 0.0, %v1372
    %v1374 = vpop.f32.mrb[0].mxu0
    %v1375 = vadd.f32 0.0, %v1374
    %1376 = vdwg.mxu0
    %v1377 = vadd.f32 %v238, %v1302
    %v1378 = vadd.f32 %v240, %v1304
    %v1379 = vadd.f32 %v399, %v1373
    %v1380 = vadd.f32 %v401, %v1375
    %v1381 = vxor.u32 %v1377, 2147483648
    %v1382 = vxor.u32 %v1378, 2147483648
    %v1383 = vxor.u32 %v1380, 2147483648
    %v1384 = vmul.f32 %v1381, 1.442695
    %v1385 = vpow.pop %v1384
    %v1386 = vmul.f32 %v1382, 1.442695
    %v1387 = vpow.pop %v1386
    %v1388 = vmul.f32 %v1383, 1.442695
    %v1389 = vpow.pop %v1388
    %v1390 = vadd.f32 %v1385, 1.0
    %v1391 = vadd.f32 %v1387, 1.0
    %v1392 = vadd.f32 %v1389, 1.0
    %v1393 = vrcp.pop %v1390
    %v1394 = vmul.f32 1.0, %v1393
    %v1395 = vrcp.pop %v1391
    %v1396 = vmul.f32 1.0, %v1395
    %v1397 = vrcp.pop %v1392
    %v1398 = vmul.f32 1.0, %v1397
    %v1399 = vtanh.pop %v1379
    %v1400 = vmul.f32 %v1396, %v1062
    %v1401 = vmul.f32 %v1394, %v1399
    %v1402 = vadd.f32 %v1400, %v1401
    %v1403 = vtanh.pop %v1402
    %v1404 = vmul.f32 %v1398, %v1403
    %1405 = vmatprep.subr.mxu0 %v464
    %1406 = vmatpush1.msra.mxu0 %v463
    %1407 = vmatprep.subr.mxu0 %v468
    %1408 = vmatpush1.msra.mxu0 %v467
    %1409 = vmatprep.subr.mxu0 %v472
    %1410 = vmatpush1.msra.mxu0 %v471
    %1411 = vmatprep.subr.mxu0 %v476
    %1412 = vmatpush1.msra.mxu0 %v475
    %1413 = vmatprep.subr.mxu0 %v480
    %1414 = vmatpush1.msra.mxu0 %v479
    %1415 = vmatprep.subr.mxu0 %v484
    %1416 = vmatpush1.msra.mxu0 %v483
    %1417 = vmatprep.subr.mxu0 %v488
    %1418 = vmatpush1.msra.mxu0 %v487
    %1419 = vmatprep.subr.mxu0 %v492
    %1420 = vmatpush1.msra.mxu0 %v491
    %1421 = vmatprep.subr.mxu0 %v496
    %1422 = vmatpush1.msra.mxu0 %v495
    %1423 = vmatprep.subr.mxu0 %v500
    %1424 = vmatpush1.msra.mxu0 %v499
    %1425 = vmatprep.subr.mxu0 %v504
    %1426 = vmatpush1.msra.mxu0 %v503
    %1427 = vmatprep.subr.mxu0 %v508
    %1428 = vmatpush1.msra.mxu0 %v507
    %1429 = vmatprep.subr.mxu0 %v512
    %1430 = vmatpush1.msra.mxu0 %v511
    %1431 = vmatprep.subr.mxu0 %v516
    %1432 = vmatpush1.msra.mxu0 %v515
    %1433 = vmatprep.subr.mxu0 %v520
    %1434 = vmatpush1.msra.mxu0 %v519
    %1435 = vmatprep.subr.mxu0 %v524
    %1436 = vmatpush1.msra.mxu0 %v523
    %1437 = vmatprep.subr.mxu0 0.0
    %1438 = vmatpush1.msra.mxu0 0.0
    %1439 = vmatprep.subr.mxu0 0.0
    %1440 = vmatpush1.msra.mxu0 0.0
    %1441 = vmatprep.subr.mxu0 0.0
    %1442 = vmatpush1.msra.mxu0 0.0
    %1443 = vmatprep.subr.mxu0 0.0
    %1444 = vmatpush1.msra.mxu0 0.0
    %1445 = vmatprep.subr.mxu0 0.0
    %1446 = vmatpush1.msra.mxu0 0.0
    %1447 = vmatprep.subr.mxu0 0.0
    %1448 = vmatpush1.msra.mxu0 0.0
    %1449 = vmatprep.subr.mxu0 0.0
    %1450 = vmatpush1.msra.mxu0 0.0
    %1451 = vmatprep.subr.mxu0 0.0
    %1452 = vmatpush1.msra.mxu0 0.0
    %1453 = vmatprep.subr.mxu0 0.0
    %1454 = vmatpush1.msra.mxu0 0.0
    %1455 = vmatprep.subr.mxu0 0.0
    %1456 = vmatpush1.msra.mxu0 0.0
    %1457 = vmatprep.subr.mxu0 0.0
    %1458 = vmatpush1.msra.mxu0 0.0
    %1459 = vmatprep.subr.mxu0 0.0
    %1460 = vmatpush1.msra.mxu0 0.0
    %1461 = vmatprep.subr.mxu0 0.0
    %1462 = vmatpush1.msra.mxu0 0.0
    %1463 = vmatprep.subr.mxu0 0.0
    %1464 = vmatpush1.msra.mxu0 0.0
    %1465 = vmatprep.subr.mxu0 0.0
    %1466 = vmatpush1.msra.mxu0 0.0
    %1467 = vmatprep.subr.mxu0 0.0
    %1468 = vmatpush1.msra.mxu0 0.0
    %1469 = vmatprep.mubr.f32.mxu0 0.0
    %1470 = vmatmul.mubr.f32.gmra.mrb[0].mxu0 %v1234
    %v1471 = vpop.f32.mrb[0].mxu0
    %v1472 = vadd.f32 0.0, %v1471
    %v1473 = vpop.f32.mrb[0].mxu0
    %v1474 = vadd.f32 0.0, %v1473
    %1475 = vdwg.mxu0
    %1476 = vmatprep.subr.mxu0 %v466
    %1477 = vmatpush1.msra.mxu0 %v465
    %1478 = vmatprep.subr.mxu0 %v470
    %1479 = vmatpush1.msra.mxu0 %v469
    %1480 = vmatprep.subr.mxu0 %v474
    %1481 = vmatpush1.msra.mxu0 %v473
    %1482 = vmatprep.subr.mxu0 %v478
    %1483 = vmatpush1.msra.mxu0 %v477
    %1484 = vmatprep.subr.mxu0 %v482
    %1485 = vmatpush1.msra.mxu0 %v481
    %1486 = vmatprep.subr.mxu0 %v486
    %1487 = vmatpush1.msra.mxu0 %v485
    %1488 = vmatprep.subr.mxu0 %v490
    %1489 = vmatpush1.msra.mxu0 %v489
    %1490 = vmatprep.subr.mxu0 %v494
    %1491 = vmatpush1.msra.mxu0 %v493
    %1492 = vmatprep.subr.mxu0 %v498
    %1493 = vmatpush1.msra.mxu0 %v497
    %1494 = vmatprep.subr.mxu0 %v502
    %1495 = vmatpush1.msra.mxu0 %v501
    %1496 = vmatprep.subr.mxu0 %v506
    %1497 = vmatpush1.msra.mxu0 %v505
    %1498 = vmatprep.subr.mxu0 %v510
    %1499 = vmatpush1.msra.mxu0 %v509
    %1500 = vmatprep.subr.mxu0 %v514
    %1501 = vmatpush1.msra.mxu0 %v513
    %1502 = vmatprep.subr.mxu0 %v518
    %1503 = vmatpush1.msra.mxu0 %v517
    %1504 = vmatprep.subr.mxu0 %v522
    %1505 = vmatpush1.msra.mxu0 %v521
    %1506 = vmatprep.subr.mxu0 %v526
    %1507 = vmatpush1.msra.mxu0 %v525
    %1508 = vmatprep.subr.mxu0 0.0
    %1509 = vmatpush1.msra.mxu0 0.0
    %1510 = vmatprep.subr.mxu0 0.0
    %1511 = vmatpush1.msra.mxu0 0.0
    %1512 = vmatprep.subr.mxu0 0.0
    %1513 = vmatpush1.msra.mxu0 0.0
    %1514 = vmatprep.subr.mxu0 0.0
    %1515 = vmatpush1.msra.mxu0 0.0
    %1516 = vmatprep.subr.mxu0 0.0
    %1517 = vmatpush1.msra.mxu0 0.0
    %1518 = vmatprep.subr.mxu0 0.0
    %1519 = vmatpush1.msra.mxu0 0.0
    %1520 = vmatprep.subr.mxu0 0.0
    %1521 = vmatpush1.msra.mxu0 0.0
    %1522 = vmatprep.subr.mxu0 0.0
    %1523 = vmatpush1.msra.mxu0 0.0
    %1524 = vmatprep.subr.mxu0 0.0
    %1525 = vmatpush1.msra.mxu0 0.0
    %1526 = vmatprep.subr.mxu0 0.0
    %1527 = vmatpush1.msra.mxu0 0.0
    %1528 = vmatprep.subr.mxu0 0.0
    %1529 = vmatpush1.msra.mxu0 0.0
    %1530 = vmatprep.subr.mxu0 0.0
    %1531 = vmatpush1.msra.mxu0 0.0
    %1532 = vmatprep.subr.mxu0 0.0
    %1533 = vmatpush1.msra.mxu0 0.0
    %1534 = vmatprep.subr.mxu0 0.0
    %1535 = vmatpush1.msra.mxu0 0.0
    %1536 = vmatprep.subr.mxu0 0.0
    %1537 = vmatpush1.msra.mxu0 0.0
    %1538 = vmatprep.subr.mxu0 0.0
    %1539 = vmatpush1.msra.mxu0 0.0
    %1540 = vmatprep.mubr.f32.mxu0 0.0
    %1541 = vmatmul.mubr.f32.gmra.mrb[0].mxu0 %v1234
    %v1542 = vpop.f32.mrb[0].mxu0
    %v1543 = vadd.f32 0.0, %v1542
    %v1544 = vpop.f32.mrb[0].mxu0
    %v1545 = vadd.f32 0.0, %v1544
    %1546 = vdwg.mxu0
    %v1547 = vadd.f32 %v244, %v1472
    %v1548 = vadd.f32 %v246, %v1474
    %v1549 = vadd.f32 %v405, %v1543
    %v1550 = vadd.f32 %v407, %v1545
    %v1551 = vxor.u32 %v1547, 2147483648
    %v1552 = vxor.u32 %v1548, 2147483648
    %v1553 = vxor.u32 %v1550, 2147483648
    %v1554 = vmul.f32 %v1551, 1.442695
    %v1555 = vpow.pop %v1554
    %v1556 = vmul.f32 %v1552, 1.442695
    %v1557 = vpow.pop %v1556
    %v1558 = vmul.f32 %v1553, 1.442695
    %v1559 = vpow.pop %v1558
    %v1560 = vadd.f32 %v1555, 1.0
    %v1561 = vadd.f32 %v1557, 1.0
    %v1562 = vadd.f32 %v1559, 1.0
    %v1563 = vrcp.pop %v1560
    %v1564 = vmul.f32 1.0, %v1563
    %v1565 = vrcp.pop %v1561
    %v1566 = vmul.f32 1.0, %v1565
    %v1567 = vrcp.pop %v1562
    %v1568 = vmul.f32 1.0, %v1567
    %v1569 = vtanh.pop %v1549
    %v1570 = vmul.f32 %v1566, %v1232
    %v1571 = vmul.f32 %v1564, %v1569
    %v1572 = vadd.f32 %v1570, %v1571
    %v1573 = vtanh.pop %v1572
    %v1574 = vmul.f32 %v1568, %v1573
    %1575 = vmatprep.subr.mxu0 %v464
    %1576 = vmatpush1.msra.mxu0 %v463
    %1577 = vmatprep.subr.mxu0 %v468
    %1578 = vmatpush1.msra.mxu0 %v467
    %1579 = vmatprep.subr.mxu0 %v472
    %1580 = vmatpush1.msra.mxu0 %v471
    %1581 = vmatprep.subr.mxu0 %v476
    %1582 = vmatpush1.msra.mxu0 %v475
    %1583 = vmatprep.subr.mxu0 %v480
    %1584 = vmatpush1.msra.mxu0 %v479
    %1585 = vmatprep.subr.mxu0 %v484
    %1586 = vmatpush1.msra.mxu0 %v483
    %1587 = vmatprep.subr.mxu0 %v488
    %1588 = vmatpush1.msra.mxu0 %v487
    %1589 = vmatprep.subr.mxu0 %v492
    %1590 = vmatpush1.msra.mxu0 %v491
    %1591 = vmatprep.subr.mxu0 %v496
    %1592 = vmatpush1.msra.mxu0 %v495
    %1593 = vmatprep.subr.mxu0 %v500
    %1594 = vmatpush1.msra.mxu0 %v499
    %1595 = vmatprep.subr.mxu0 %v504
    %1596 = vmatpush1.msra.mxu0 %v503
    %1597 = vmatprep.subr.mxu0 %v508
    %1598 = vmatpush1.msra.mxu0 %v507
    %1599 = vmatprep.subr.mxu0 %v512
    %1600 = vmatpush1.msra.mxu0 %v511
    %1601 = vmatprep.subr.mxu0 %v516
    %1602 = vmatpush1.msra.mxu0 %v515
    %1603 = vmatprep.subr.mxu0 %v520
    %1604 = vmatpush1.msra.mxu0 %v519
    %1605 = vmatprep.subr.mxu0 %v524
    %1606 = vmatpush1.msra.mxu0 %v523
    %1607 = vmatprep.subr.mxu0 0.0
    %1608 = vmatpush1.msra.mxu0 0.0
    %1609 = vmatprep.subr.mxu0 0.0
    %1610 = vmatpush1.msra.mxu0 0.0
    %1611 = vmatprep.subr.mxu0 0.0
    %1612 = vmatpush1.msra.mxu0 0.0
    %1613 = vmatprep.subr.mxu0 0.0
    %1614 = vmatpush1.msra.mxu0 0.0
    %1615 = vmatprep.subr.mxu0 0.0
    %1616 = vmatpush1.msra.mxu0 0.0
    %1617 = vmatprep.subr.mxu0 0.0
    %1618 = vmatpush1.msra.mxu0 0.0
    %1619 = vmatprep.subr.mxu0 0.0
    %1620 = vmatpush1.msra.mxu0 0.0
    %1621 = vmatprep.subr.mxu0 0.0
    %1622 = vmatpush1.msra.mxu0 0.0
    %1623 = vmatprep.subr.mxu0 0.0
    %1624 = vmatpush1.msra.mxu0 0.0
    %1625 = vmatprep.subr.mxu0 0.0
    %1626 = vmatpush1.msra.mxu0 0.0
    %1627 = vmatprep.subr.mxu0 0.0
    %1628 = vmatpush1.msra.mxu0 0.0
    %1629 = vmatprep.subr.mxu0 0.0
    %1630 = vmatpush1.msra.mxu0 0.0
    %1631 = vmatprep.subr.mxu0 0.0
    %1632 = vmatpush1.msra.mxu0 0.0
    %1633 = vmatprep.subr.mxu0 0.0
    %1634 = vmatpush1.msra.mxu0 0.0
    %1635 = vmatprep.subr.mxu0 0.0
    %1636 = vmatpush1.msra.mxu0 0.0
    %1637 = vmatprep.subr.mxu0 0.0
    %1638 = vmatpush1.msra.mxu0 0.0
    %1639 = vmatprep.mubr.f32.mxu0 0.0
    %1640 = vmatmul.mubr.f32.gmra.mrb[0].mxu0 %v1404
    %v1641 = vpop.f32.mrb[0].mxu0
    %v1642 = vadd.f32 0.0, %v1641
    %v1643 = vpop.f32.mrb[0].mxu0
    %v1644 = vadd.f32 0.0, %v1643
    %1645 = vdwg.mxu0
    %1646 = vmatprep.subr.mxu0 %v466
    %1647 = vmatpush1.msra.mxu0 %v465
    %1648 = vmatprep.subr.mxu0 %v470
    %1649 = vmatpush1.msra.mxu0 %v469
    %1650 = vmatprep.subr.mxu0 %v474
    %1651 = vmatpush1.msra.mxu0 %v473
    %1652 = vmatprep.subr.mxu0 %v478
    %1653 = vmatpush1.msra.mxu0 %v477
    %1654 = vmatprep.subr.mxu0 %v482
    %1655 = vmatpush1.msra.mxu0 %v481
    %1656 = vmatprep.subr.mxu0 %v486
    %1657 = vmatpush1.msra.mxu0 %v485
    %1658 = vmatprep.subr.mxu0 %v490
    %1659 = vmatpush1.msra.mxu0 %v489
    %1660 = vmatprep.subr.mxu0 %v494
    %1661 = vmatpush1.msra.mxu0 %v493
    %1662 = vmatprep.subr.mxu0 %v498
    %1663 = vmatpush1.msra.mxu0 %v497
    %1664 = vmatprep.subr.mxu0 %v502
    %1665 = vmatpush1.msra.mxu0 %v501
    %1666 = vmatprep.subr.mxu0 %v506
    %1667 = vmatpush1.msra.mxu0 %v505
    %1668 = vmatprep.subr.mxu0 %v510
    %1669 = vmatpush1.msra.mxu0 %v509
    %1670 = vmatprep.subr.mxu0 %v514
    %1671 = vmatpush1.msra.mxu0 %v513
    %1672 = vmatprep.subr.mxu0 %v518
    %1673 = vmatpush1.msra.mxu0 %v517
    %1674 = vmatprep.subr.mxu0 %v522
    %1675 = vmatpush1.msra.mxu0 %v521
    %1676 = vmatprep.subr.mxu0 %v526
    %1677 = vmatpush1.msra.mxu0 %v525
    %1678 = vmatprep.subr.mxu0 0.0
    %1679 = vmatpush1.msra.mxu0 0.0
    %1680 = vmatprep.subr.mxu0 0.0
    %1681 = vmatpush1.msra.mxu0 0.0
    %1682 = vmatprep.subr.mxu0 0.0
    %1683 = vmatpush1.msra.mxu0 0.0
    %1684 = vmatprep.subr.mxu0 0.0
    %1685 = vmatpush1.msra.mxu0 0.0
    %1686 = vmatprep.subr.mxu0 0.0
    %1687 = vmatpush1.msra.mxu0 0.0
    %1688 = vmatprep.subr.mxu0 0.0
    %1689 = vmatpush1.msra.mxu0 0.0
    %1690 = vmatprep.subr.mxu0 0.0
    %1691 = vmatpush1.msra.mxu0 0.0
    %1692 = vmatprep.subr.mxu0 0.0
    %1693 = vmatpush1.msra.mxu0 0.0
    %1694 = vmatprep.subr.mxu0 0.0
    %1695 = vmatpush1.msra.mxu0 0.0
    %1696 = vmatprep.subr.mxu0 0.0
    %1697 = vmatpush1.msra.mxu0 0.0
    %1698 = vmatprep.subr.mxu0 0.0
    %1699 = vmatpush1.msra.mxu0 0.0
    %1700 = vmatprep.subr.mxu0 0.0
    %1701 = vmatpush1.msra.mxu0 0.0
    %1702 = vmatprep.subr.mxu0 0.0
    %1703 = vmatpush1.msra.mxu0 0.0
    %1704 = vmatprep.subr.mxu0 0.0
    %1705 = vmatpush1.msra.mxu0 0.0
    %1706 = vmatprep.subr.mxu0 0.0
    %1707 = vmatpush1.msra.mxu0 0.0
    %1708 = vmatprep.subr.mxu0 0.0
    %1709 = vmatpush1.msra.mxu0 0.0
    %1710 = vmatprep.mubr.f32.mxu0 0.0
    %1711 = vmatmul.mubr.f32.gmra.mrb[0].mxu0 %v1404
    %v1712 = vpop.f32.mrb[0].mxu0
    %v1713 = vadd.f32 0.0, %v1712
    %v1714 = vpop.f32.mrb[0].mxu0
    %v1715 = vadd.f32 0.0, %v1714
    %1716 = vdwg.mxu0
    %v1717 = vadd.f32 %v250, %v1642
    %v1718 = vadd.f32 %v252, %v1644
    %v1719 = vadd.f32 %v411, %v1713
    %v1720 = vadd.f32 %v413, %v1715
    %v1721 = vxor.u32 %v1717, 2147483648
    %v1722 = vxor.u32 %v1718, 2147483648
    %v1723 = vxor.u32 %v1720, 2147483648
    %v1724 = vmul.f32 %v1721, 1.442695
    %v1725 = vpow.pop %v1724
    %v1726 = vmul.f32 %v1722, 1.442695
    %v1727 = vpow.pop %v1726
    %v1728 = vmul.f32 %v1723, 1.442695
    %v1729 = vpow.pop %v1728
    %v1730 = vadd.f32 %v1725, 1.0
    %v1731 = vadd.f32 %v1727, 1.0
    %v1732 = vadd.f32 %v1729, 1.0
    %v1733 = vrcp.pop %v1730
    %v1734 = vmul.f32 1.0, %v1733
    %v1735 = vrcp.pop %v1731
    %v1736 = vmul.f32 1.0, %v1735
    %v1737 = vrcp.pop %v1732
    %v1738 = vmul.f32 1.0, %v1737
    %v1739 = vtanh.pop %v1719
    %v1740 = vmul.f32 %v1736, %v1402
    %v1741 = vmul.f32 %v1734, %v1739
    %v1742 = vadd.f32 %v1740, %v1741
    %v1743 = vtanh.pop %v1742
    %v1744 = vmul.f32 %v1738, %v1743
    %1745 = vmatprep.subr.mxu0 %v464
    %1746 = vmatpush1.msra.mxu0 %v463
    %1747 = vmatprep.subr.mxu0 %v468
    %1748 = vmatpush1.msra.mxu0 %v467
    %1749 = vmatprep.subr.mxu0 %v472
    %1750 = vmatpush1.msra.mxu0 %v471
    %1751 = vmatprep.subr.mxu0 %v476
    %1752 = vmatpush1.msra.mxu0 %v475
    %1753 = vmatprep.subr.mxu0 %v480
    %1754 = vmatpush1.msra.mxu0 %v479
    %1755 = vmatprep.subr.mxu0 %v484
    %1756 = vmatpush1.msra.mxu0 %v483
    %1757 = vmatprep.subr.mxu0 %v488
    %1758 = vmatpush1.msra.mxu0 %v487
    %1759 = vmatprep.subr.mxu0 %v492
    %1760 = vmatpush1.msra.mxu0 %v491
    %1761 = vmatprep.subr.mxu0 %v496
    %1762 = vmatpush1.msra.mxu0 %v495
    %1763 = vmatprep.subr.mxu0 %v500
    %1764 = vmatpush1.msra.mxu0 %v499
    %1765 = vmatprep.subr.mxu0 %v504
    %1766 = vmatpush1.msra.mxu0 %v503
    %1767 = vmatprep.subr.mxu0 %v508
    %1768 = vmatpush1.msra.mxu0 %v507
    %1769 = vmatprep.subr.mxu0 %v512
    %1770 = vmatpush1.msra.mxu0 %v511
    %1771 = vmatprep.subr.mxu0 %v516
    %1772 = vmatpush1.msra.mxu0 %v515
    %1773 = vmatprep.subr.mxu0 %v520
    %1774 = vmatpush1.msra.mxu0 %v519
    %1775 = vmatprep.subr.mxu0 %v524
    %1776 = vmatpush1.msra.mxu0 %v523
    %1777 = vmatprep.subr.mxu0 0.0
    %1778 = vmatpush1.msra.mxu0 0.0
    %1779 = vmatprep.subr.mxu0 0.0
    %1780 = vmatpush1.msra.mxu0 0.0
    %1781 = vmatprep.subr.mxu0 0.0
    %1782 = vmatpush1.msra.mxu0 0.0
    %1783 = vmatprep.subr.mxu0 0.0
    %1784 = vmatpush1.msra.mxu0 0.0
    %1785 = vmatprep.subr.mxu0 0.0
    %1786 = vmatpush1.msra.mxu0 0.0
    %1787 = vmatprep.subr.mxu0 0.0
    %1788 = vmatpush1.msra.mxu0 0.0
    %1789 = vmatprep.subr.mxu0 0.0
    %1790 = vmatpush1.msra.mxu0 0.0
    %1791 = vmatprep.subr.mxu0 0.0
    %1792 = vmatpush1.msra.mxu0 0.0
    %1793 = vmatprep.subr.mxu0 0.0
    %1794 = vmatpush1.msra.mxu0 0.0
    %1795 = vmatprep.subr.mxu0 0.0
    %1796 = vmatpush1.msra.mxu0 0.0
    %1797 = vmatprep.subr.mxu0 0.0
    %1798 = vmatpush1.msra.mxu0 0.0
    %1799 = vmatprep.subr.mxu0 0.0
    %1800 = vmatpush1.msra.mxu0 0.0
    %1801 = vmatprep.subr.mxu0 0.0
    %1802 = vmatpush1.msra.mxu0 0.0
    %1803 = vmatprep.subr.mxu0 0.0
    %1804 = vmatpush1.msra.mxu0 0.0
    %1805 = vmatprep.subr.mxu0 0.0
    %1806 = vmatpush1.msra.mxu0 0.0
    %1807 = vmatprep.subr.mxu0 0.0
    %1808 = vmatpush1.msra.mxu0 0.0
    %1809 = vmatprep.mubr.f32.mxu0 0.0
    %1810 = vmatmul.mubr.f32.gmra.mrb[0].mxu0 %v1574
    %v1811 = vpop.f32.mrb[0].mxu0
    %v1812 = vadd.f32 0.0, %v1811
    %v1813 = vpop.f32.mrb[0].mxu0
    %v1814 = vadd.f32 0.0, %v1813
    %1815 = vdwg.mxu0
    %1816 = vmatprep.subr.mxu0 %v466
    %1817 = vmatpush1.msra.mxu0 %v465
    %1818 = vmatprep.subr.mxu0 %v470
    %1819 = vmatpush1.msra.mxu0 %v469
    %1820 = vmatprep.subr.mxu0 %v474
    %1821 = vmatpush1.msra.mxu0 %v473
    %1822 = vmatprep.subr.mxu0 %v478
    %1823 = vmatpush1.msra.mxu0 %v477
    %1824 = vmatprep.subr.mxu0 %v482
    %1825 = vmatpush1.msra.mxu0 %v481
    %1826 = vmatprep.subr.mxu0 %v486
    %1827 = vmatpush1.msra.mxu0 %v485
    %1828 = vmatprep.subr.mxu0 %v490
    %1829 = vmatpush1.msra.mxu0 %v489
    %1830 = vmatprep.subr.mxu0 %v494
    %1831 = vmatpush1.msra.mxu0 %v493
    %1832 = vmatprep.subr.mxu0 %v498
    %1833 = vmatpush1.msra.mxu0 %v497
    %1834 = vmatprep.subr.mxu0 %v502
    %1835 = vmatpush1.msra.mxu0 %v501
    %1836 = vmatprep.subr.mxu0 %v506
    %1837 = vmatpush1.msra.mxu0 %v505
    %1838 = vmatprep.subr.mxu0 %v510
    %1839 = vmatpush1.msra.mxu0 %v509
    %1840 = vmatprep.subr.mxu0 %v514
    %1841 = vmatpush1.msra.mxu0 %v513
    %1842 = vmatprep.subr.mxu0 %v518
    %1843 = vmatpush1.msra.mxu0 %v517
    %1844 = vmatprep.subr.mxu0 %v522
    %1845 = vmatpush1.msra.mxu0 %v521
    %1846 = vmatprep.subr.mxu0 %v526
    %1847 = vmatpush1.msra.mxu0 %v525
    %1848 = vmatprep.subr.mxu0 0.0
    %1849 = vmatpush1.msra.mxu0 0.0
    %1850 = vmatprep.subr.mxu0 0.0
    %1851 = vmatpush1.msra.mxu0 0.0
    %1852 = vmatprep.subr.mxu0 0.0
    %1853 = vmatpush1.msra.mxu0 0.0
    %1854 = vmatprep.subr.mxu0 0.0
    %1855 = vmatpush1.msra.mxu0 0.0
    %1856 = vmatprep.subr.mxu0 0.0
    %1857 = vmatpush1.msra.mxu0 0.0
    %1858 = vmatprep.subr.mxu0 0.0
    %1859 = vmatpush1.msra.mxu0 0.0
    %1860 = vmatprep.subr.mxu0 0.0
    %1861 = vmatpush1.msra.mxu0 0.0
    %1862 = vmatprep.subr.mxu0 0.0
    %1863 = vmatpush1.msra.mxu0 0.0
    %1864 = vmatprep.subr.mxu0 0.0
    %1865 = vmatpush1.msra.mxu0 0.0
    %1866 = vmatprep.subr.mxu0 0.0
    %1867 = vmatpush1.msra.mxu0 0.0
    %1868 = vmatprep.subr.mxu0 0.0
    %1869 = vmatpush1.msra.mxu0 0.0
    %1870 = vmatprep.subr.mxu0 0.0
    %1871 = vmatpush1.msra.mxu0 0.0
    %1872 = vmatprep.subr.mxu0 0.0
    %1873 = vmatpush1.msra.mxu0 0.0
    %1874 = vmatprep.subr.mxu0 0.0
    %1875 = vmatpush1.msra.mxu0 0.0
    %1876 = vmatprep.subr.mxu0 0.0
    %1877 = vmatpush1.msra.mxu0 0.0
    %1878 = vmatprep.subr.mxu0 0.0
    %1879 = vmatpush1.msra.mxu0 0.0
    %1880 = vmatprep.mubr.f32.mxu0 0.0
    %1881 = vmatmul.mubr.f32.gmra.mrb[0].mxu0 %v1574
    %v1882 = vpop.f32.mrb[0].mxu0
    %v1883 = vadd.f32 0.0, %v1882
    %v1884 = vpop.f32.mrb[0].mxu0
    %v1885 = vadd.f32 0.0, %v1884
    %1886 = vdwg.mxu0
    %v1887 = vadd.f32 %v256, %v1812
    %v1888 = vadd.f32 %v258, %v1814
    %v1889 = vadd.f32 %v417, %v1883
    %v1890 = vadd.f32 %v419, %v1885
    %v1891 = vxor.u32 %v1887, 2147483648
    %v1892 = vxor.u32 %v1888, 2147483648
    %v1893 = vxor.u32 %v1890, 2147483648
    %v1894 = vmul.f32 %v1891, 1.442695
    %v1895 = vpow.pop %v1894
    %v1896 = vmul.f32 %v1892, 1.442695
    %v1897 = vpow.pop %v1896
    %v1898 = vmul.f32 %v1893, 1.442695
    %v1899 = vpow.pop %v1898
    %v1900 = vadd.f32 %v1895, 1.0
    %v1901 = vadd.f32 %v1897, 1.0
    %v1902 = vadd.f32 %v1899, 1.0
    %v1903 = vrcp.pop %v1900
    %v1904 = vmul.f32 1.0, %v1903
    %v1905 = vrcp.pop %v1901
    %v1906 = vmul.f32 1.0, %v1905
    %v1907 = vrcp.pop %v1902
    %v1908 = vmul.f32 1.0, %v1907
    %v1909 = vtanh.pop %v1889
    %v1910 = vmul.f32 %v1906, %v1572
    %v1911 = vmul.f32 %v1904, %v1909
    %v1912 = vadd.f32 %v1910, %v1911
    %v1913 = vtanh.pop %v1912
    %v1914 = vmul.f32 %v1908, %v1913
    %1915 = vmatprep.subr.mxu0 %v464
    %1916 = vmatpush1.msra.mxu0 %v463
    %1917 = vmatprep.subr.mxu0 %v468
    %1918 = vmatpush1.msra.mxu0 %v467
    %1919 = vmatprep.subr.mxu0 %v472
    %1920 = vmatpush1.msra.mxu0 %v471
    %1921 = vmatprep.subr.mxu0 %v476
    %1922 = vmatpush1.msra.mxu0 %v475
    %1923 = vmatprep.subr.mxu0 %v480
    %1924 = vmatpush1.msra.mxu0 %v479
    %1925 = vmatprep.subr.mxu0 %v484
    %1926 = vmatpush1.msra.mxu0 %v483
    %1927 = vmatprep.subr.mxu0 %v488
    %1928 = vmatpush1.msra.mxu0 %v487
    %1929 = vmatprep.subr.mxu0 %v492
    %1930 = vmatpush1.msra.mxu0 %v491
    %1931 = vmatprep.subr.mxu0 %v496
    %1932 = vmatpush1.msra.mxu0 %v495
    %1933 = vmatprep.subr.mxu0 %v500
    %1934 = vmatpush1.msra.mxu0 %v499
    %1935 = vmatprep.subr.mxu0 %v504
    %1936 = vmatpush1.msra.mxu0 %v503
    %1937 = vmatprep.subr.mxu0 %v508
    %1938 = vmatpush1.msra.mxu0 %v507
    %1939 = vmatprep.subr.mxu0 %v512
    %1940 = vmatpush1.msra.mxu0 %v511
    %1941 = vmatprep.subr.mxu0 %v516
    %1942 = vmatpush1.msra.mxu0 %v515
    %1943 = vmatprep.subr.mxu0 %v520
    %1944 = vmatpush1.msra.mxu0 %v519
    %1945 = vmatprep.subr.mxu0 %v524
    %1946 = vmatpush1.msra.mxu0 %v523
    %1947 = vmatprep.subr.mxu0 0.0
    %1948 = vmatpush1.msra.mxu0 0.0
    %1949 = vmatprep.subr.mxu0 0.0
    %1950 = vmatpush1.msra.mxu0 0.0
    %1951 = vmatprep.subr.mxu0 0.0
    %1952 = vmatpush1.msra.mxu0 0.0
    %1953 = vmatprep.subr.mxu0 0.0
    %1954 = vmatpush1.msra.mxu0 0.0
    %1955 = vmatprep.subr.mxu0 0.0
    %1956 = vmatpush1.msra.mxu0 0.0
    %1957 = vmatprep.subr.mxu0 0.0
    %1958 = vmatpush1.msra.mxu0 0.0
    %1959 = vmatprep.subr.mxu0 0.0
    %1960 = vmatpush1.msra.mxu0 0.0
    %1961 = vmatprep.subr.mxu0 0.0
    %1962 = vmatpush1.msra.mxu0 0.0
    %1963 = vmatprep.subr.mxu0 0.0
    %1964 = vmatpush1.msra.mxu0 0.0
    %1965 = vmatprep.subr.mxu0 0.0
    %1966 = vmatpush1.msra.mxu0 0.0
    %1967 = vmatprep.subr.mxu0 0.0
    %1968 = vmatpush1.msra.mxu0 0.0
    %1969 = vmatprep.subr.mxu0 0.0
    %1970 = vmatpush1.msra.mxu0 0.0
    %1971 = vmatprep.subr.mxu0 0.0
    %1972 = vmatpush1.msra.mxu0 0.0
    %1973 = vmatprep.subr.mxu0 0.0
    %1974 = vmatpush1.msra.mxu0 0.0
    %1975 = vmatprep.subr.mxu0 0.0
    %1976 = vmatpush1.msra.mxu0 0.0
    %1977 = vmatprep.subr.mxu0 0.0
    %1978 = vmatpush1.msra.mxu0 0.0
    %1979 = vmatprep.mubr.f32.mxu0 0.0
    %1980 = vmatmul.mubr.f32.gmra.mrb[0].mxu0 %v1744
    %v1981 = vpop.f32.mrb[0].mxu0
    %v1982 = vadd.f32 0.0, %v1981
    %v1983 = vpop.f32.mrb[0].mxu0
    %v1984 = vadd.f32 0.0, %v1983
    %1985 = vdwg.mxu0
    %1986 = vmatprep.subr.mxu0 %v466
    %1987 = vmatpush1.msra.mxu0 %v465
    %1988 = vmatprep.subr.mxu0 %v470
    %1989 = vmatpush1.msra.mxu0 %v469
    %1990 = vmatprep.subr.mxu0 %v474
    %1991 = vmatpush1.msra.mxu0 %v473
    %1992 = vmatprep.subr.mxu0 %v478
    %1993 = vmatpush1.msra.mxu0 %v477
    %1994 = vmatprep.subr.mxu0 %v482
    %1995 = vmatpush1.msra.mxu0 %v481
    %1996 = vmatprep.subr.mxu0 %v486
    %1997 = vmatpush1.msra.mxu0 %v485
    %1998 = vmatprep.subr.mxu0 %v490
    %1999 = vmatpush1.msra.mxu0 %v489
    %2000 = vmatprep.subr.mxu0 %v494
    %2001 = vmatpush1.msra.mxu0 %v493
    %2002 = vmatprep.subr.mxu0 %v498
    %2003 = vmatpush1.msra.mxu0 %v497
    %2004 = vmatprep.subr.mxu0 %v502
    %2005 = vmatpush1.msra.mxu0 %v501
    %2006 = vmatprep.subr.mxu0 %v506
    %2007 = vmatpush1.msra.mxu0 %v505
    %2008 = vmatprep.subr.mxu0 %v510
    %2009 = vmatpush1.msra.mxu0 %v509
    %2010 = vmatprep.subr.mxu0 %v514
    %2011 = vmatpush1.msra.mxu0 %v513
    %2012 = vmatprep.subr.mxu0 %v518
    %2013 = vmatpush1.msra.mxu0 %v517
    %2014 = vmatprep.subr.mxu0 %v522
    %2015 = vmatpush1.msra.mxu0 %v521
    %2016 = vmatprep.subr.mxu0 %v526
    %2017 = vmatpush1.msra.mxu0 %v525
    %2018 = vmatprep.subr.mxu0 0.0
    %2019 = vmatpush1.msra.mxu0 0.0
    %2020 = vmatprep.subr.mxu0 0.0
    %2021 = vmatpush1.msra.mxu0 0.0
    %2022 = vmatprep.subr.mxu0 0.0
    %2023 = vmatpush1.msra.mxu0 0.0
    %2024 = vmatprep.subr.mxu0 0.0
    %2025 = vmatpush1.msra.mxu0 0.0
    %2026 = vmatprep.subr.mxu0 0.0
    %2027 = vmatpush1.msra.mxu0 0.0
    %2028 = vmatprep.subr.mxu0 0.0
    %2029 = vmatpush1.msra.mxu0 0.0
    %2030 = vmatprep.subr.mxu0 0.0
    %2031 = vmatpush1.msra.mxu0 0.0
    %2032 = vmatprep.subr.mxu0 0.0
    %2033 = vmatpush1.msra.mxu0 0.0
    %2034 = vmatprep.subr.mxu0 0.0
    %2035 = vmatpush1.msra.mxu0 0.0
    %2036 = vmatprep.subr.mxu0 0.0
    %2037 = vmatpush1.msra.mxu0 0.0
    %2038 = vmatprep.subr.mxu0 0.0
    %2039 = vmatpush1.msra.mxu0 0.0
    %2040 = vmatprep.subr.mxu0 0.0
    %2041 = vmatpush1.msra.mxu0 0.0
    %2042 = vmatprep.subr.mxu0 0.0
    %2043 = vmatpush1.msra.mxu0 0.0
    %2044 = vmatprep.subr.mxu0 0.0
    %2045 = vmatpush1.msra.mxu0 0.0
    %2046 = vmatprep.subr.mxu0 0.0
    %2047 = vmatpush1.msra.mxu0 0.0
    %2048 = vmatprep.subr.mxu0 0.0
    %2049 = vmatpush1.msra.mxu0 0.0
    %2050 = vmatprep.mubr.f32.mxu0 0.0
    %2051 = vmatmul.mubr.f32.gmra.mrb[0].mxu0 %v1744
    %v2052 = vpop.f32.mrb[0].mxu0
    %v2053 = vadd.f32 0.0, %v2052
    %v2054 = vpop.f32.mrb[0].mxu0
    %v2055 = vadd.f32 0.0, %v2054
    %2056 = vdwg.mxu0
    %v2057 = vadd.f32 %v262, %v1982
    %v2058 = vadd.f32 %v264, %v1984
    %v2059 = vadd.f32 %v423, %v2053
    %v2060 = vadd.f32 %v425, %v2055
    %v2061 = vxor.u32 %v2057, 2147483648
    %v2062 = vxor.u32 %v2058, 2147483648
    %v2063 = vxor.u32 %v2060, 2147483648
    %v2064 = vmul.f32 %v2061, 1.442695
    %v2065 = vpow.pop %v2064
    %v2066 = vmul.f32 %v2062, 1.442695
    %v2067 = vpow.pop %v2066
    %v2068 = vmul.f32 %v2063, 1.442695
    %v2069 = vpow.pop %v2068
    %v2070 = vadd.f32 %v2065, 1.0
    %v2071 = vadd.f32 %v2067, 1.0
    %v2072 = vadd.f32 %v2069, 1.0
    %v2073 = vrcp.pop %v2070
    %v2074 = vmul.f32 1.0, %v2073
    %v2075 = vrcp.pop %v2071
    %v2076 = vmul.f32 1.0, %v2075
    %v2077 = vrcp.pop %v2072
    %v2078 = vmul.f32 1.0, %v2077
    %v2079 = vtanh.pop %v2059
    %v2080 = vmul.f32 %v2076, %v1742
    %v2081 = vmul.f32 %v2074, %v2079
    %v2082 = vadd.f32 %v2080, %v2081
    %v2083 = vtanh.pop %v2082
    %v2084 = vmul.f32 %v2078, %v2083
    %2085 = vmatprep.subr.mxu0 %v464
    %2086 = vmatpush1.msra.mxu0 %v463
    %2087 = vmatprep.subr.mxu0 %v468
    %2088 = vmatpush1.msra.mxu0 %v467
    %2089 = vmatprep.subr.mxu0 %v472
    %2090 = vmatpush1.msra.mxu0 %v471
    %2091 = vmatprep.subr.mxu0 %v476
    %2092 = vmatpush1.msra.mxu0 %v475
    %2093 = vmatprep.subr.mxu0 %v480
    %2094 = vmatpush1.msra.mxu0 %v479
    %2095 = vmatprep.subr.mxu0 %v484
    %2096 = vmatpush1.msra.mxu0 %v483
    %2097 = vmatprep.subr.mxu0 %v488
    %2098 = vmatpush1.msra.mxu0 %v487
    %2099 = vmatprep.subr.mxu0 %v492
    %2100 = vmatpush1.msra.mxu0 %v491
    %2101 = vmatprep.subr.mxu0 %v496
    %2102 = vmatpush1.msra.mxu0 %v495
    %2103 = vmatprep.subr.mxu0 %v500
    %2104 = vmatpush1.msra.mxu0 %v499
    %2105 = vmatprep.subr.mxu0 %v504
    %2106 = vmatpush1.msra.mxu0 %v503
    %2107 = vmatprep.subr.mxu0 %v508
    %2108 = vmatpush1.msra.mxu0 %v507
    %2109 = vmatprep.subr.mxu0 %v512
    %2110 = vmatpush1.msra.mxu0 %v511
    %2111 = vmatprep.subr.mxu0 %v516
    %2112 = vmatpush1.msra.mxu0 %v515
    %2113 = vmatprep.subr.mxu0 %v520
    %2114 = vmatpush1.msra.mxu0 %v519
    %2115 = vmatprep.subr.mxu0 %v524
    %2116 = vmatpush1.msra.mxu0 %v523
    %2117 = vmatprep.subr.mxu0 0.0
    %2118 = vmatpush1.msra.mxu0 0.0
    %2119 = vmatprep.subr.mxu0 0.0
    %2120 = vmatpush1.msra.mxu0 0.0
    %2121 = vmatprep.subr.mxu0 0.0
    %2122 = vmatpush1.msra.mxu0 0.0
    %2123 = vmatprep.subr.mxu0 0.0
    %2124 = vmatpush1.msra.mxu0 0.0
    %2125 = vmatprep.subr.mxu0 0.0
    %2126 = vmatpush1.msra.mxu0 0.0
    %2127 = vmatprep.subr.mxu0 0.0
    %2128 = vmatpush1.msra.mxu0 0.0
    %2129 = vmatprep.subr.mxu0 0.0
    %2130 = vmatpush1.msra.mxu0 0.0
    %2131 = vmatprep.subr.mxu0 0.0
    %2132 = vmatpush1.msra.mxu0 0.0
    %2133 = vmatprep.subr.mxu0 0.0
    %2134 = vmatpush1.msra.mxu0 0.0
    %2135 = vmatprep.subr.mxu0 0.0
    %2136 = vmatpush1.msra.mxu0 0.0
    %2137 = vmatprep.subr.mxu0 0.0
    %2138 = vmatpush1.msra.mxu0 0.0
    %2139 = vmatprep.subr.mxu0 0.0
    %2140 = vmatpush1.msra.mxu0 0.0
    %2141 = vmatprep.subr.mxu0 0.0
    %2142 = vmatpush1.msra.mxu0 0.0
    %2143 = vmatprep.subr.mxu0 0.0
    %2144 = vmatpush1.msra.mxu0 0.0
    %2145 = vmatprep.subr.mxu0 0.0
    %2146 = vmatpush1.msra.mxu0 0.0
    %2147 = vmatprep.subr.mxu0 0.0
    %2148 = vmatpush1.msra.mxu0 0.0
    %2149 = vmatprep.mubr.f32.mxu0 0.0
    %2150 = vmatmul.mubr.f32.gmra.mrb[0].mxu0 %v1914
    %v2151 = vpop.f32.mrb[0].mxu0
    %v2152 = vadd.f32 0.0, %v2151
    %v2153 = vpop.f32.mrb[0].mxu0
    %v2154 = vadd.f32 0.0, %v2153
    %2155 = vdwg.mxu0
    %2156 = vmatprep.subr.mxu0 %v466
    %2157 = vmatpush1.msra.mxu0 %v465
    %2158 = vmatprep.subr.mxu0 %v470
    %2159 = vmatpush1.msra.mxu0 %v469
    %2160 = vmatprep.subr.mxu0 %v474
    %2161 = vmatpush1.msra.mxu0 %v473
    %2162 = vmatprep.subr.mxu0 %v478
    %2163 = vmatpush1.msra.mxu0 %v477
    %2164 = vmatprep.subr.mxu0 %v482
    %2165 = vmatpush1.msra.mxu0 %v481
    %2166 = vmatprep.subr.mxu0 %v486
    %2167 = vmatpush1.msra.mxu0 %v485
    %2168 = vmatprep.subr.mxu0 %v490
    %2169 = vmatpush1.msra.mxu0 %v489
    %2170 = vmatprep.subr.mxu0 %v494
    %2171 = vmatpush1.msra.mxu0 %v493
    %2172 = vmatprep.subr.mxu0 %v498
    %2173 = vmatpush1.msra.mxu0 %v497
    %2174 = vmatprep.subr.mxu0 %v502
    %2175 = vmatpush1.msra.mxu0 %v501
    %2176 = vmatprep.subr.mxu0 %v506
    %2177 = vmatpush1.msra.mxu0 %v505
    %2178 = vmatprep.subr.mxu0 %v510
    %2179 = vmatpush1.msra.mxu0 %v509
    %2180 = vmatprep.subr.mxu0 %v514
    %2181 = vmatpush1.msra.mxu0 %v513
    %2182 = vmatprep.subr.mxu0 %v518
    %2183 = vmatpush1.msra.mxu0 %v517
    %2184 = vmatprep.subr.mxu0 %v522
    %2185 = vmatpush1.msra.mxu0 %v521
    %2186 = vmatprep.subr.mxu0 %v526
    %2187 = vmatpush1.msra.mxu0 %v525
    %2188 = vmatprep.subr.mxu0 0.0
    %2189 = vmatpush1.msra.mxu0 0.0
    %2190 = vmatprep.subr.mxu0 0.0
    %2191 = vmatpush1.msra.mxu0 0.0
    %2192 = vmatprep.subr.mxu0 0.0
    %2193 = vmatpush1.msra.mxu0 0.0
    %2194 = vmatprep.subr.mxu0 0.0
    %2195 = vmatpush1.msra.mxu0 0.0
    %2196 = vmatprep.subr.mxu0 0.0
    %2197 = vmatpush1.msra.mxu0 0.0
    %2198 = vmatprep.subr.mxu0 0.0
    %2199 = vmatpush1.msra.mxu0 0.0
    %2200 = vmatprep.subr.mxu0 0.0
    %2201 = vmatpush1.msra.mxu0 0.0
    %2202 = vmatprep.subr.mxu0 0.0
    %2203 = vmatpush1.msra.mxu0 0.0
    %2204 = vmatprep.subr.mxu0 0.0
    %2205 = vmatpush1.msra.mxu0 0.0
    %2206 = vmatprep.subr.mxu0 0.0
    %2207 = vmatpush1.msra.mxu0 0.0
    %2208 = vmatprep.subr.mxu0 0.0
    %2209 = vmatpush1.msra.mxu0 0.0
    %2210 = vmatprep.subr.mxu0 0.0
    %2211 = vmatpush1.msra.mxu0 0.0
    %2212 = vmatprep.subr.mxu0 0.0
    %2213 = vmatpush1.msra.mxu0 0.0
    %2214 = vmatprep.subr.mxu0 0.0
    %2215 = vmatpush1.msra.mxu0 0.0
    %2216 = vmatprep.subr.mxu0 0.0
    %2217 = vmatpush1.msra.mxu0 0.0
    %2218 = vmatprep.subr.mxu0 0.0
    %2219 = vmatpush1.msra.mxu0 0.0
    %2220 = vmatprep.mubr.f32.mxu0 0.0
    %2221 = vmatmul.mubr.f32.gmra.mrb[0].mxu0 %v1914
    %v2222 = vpop.f32.mrb[0].mxu0
    %v2223 = vadd.f32 0.0, %v2222
    %v2224 = vpop.f32.mrb[0].mxu0
    %v2225 = vadd.f32 0.0, %v2224
    %2226 = vdwg.mxu0
    %v2227 = vadd.f32 %v268, %v2152
    %v2228 = vadd.f32 %v270, %v2154
    %v2229 = vadd.f32 %v429, %v2223
    %v2230 = vadd.f32 %v431, %v2225
    %v2231 = vxor.u32 %v2227, 2147483648
    %v2232 = vxor.u32 %v2228, 2147483648
    %v2233 = vxor.u32 %v2230, 2147483648
    %v2234 = vmul.f32 %v2231, 1.442695
    %v2235 = vpow.pop %v2234
    %v2236 = vmul.f32 %v2232, 1.442695
    %v2237 = vpow.pop %v2236
    %v2238 = vmul.f32 %v2233, 1.442695
    %v2239 = vpow.pop %v2238
    %v2240 = vadd.f32 %v2235, 1.0
    %v2241 = vadd.f32 %v2237, 1.0
    %v2242 = vadd.f32 %v2239, 1.0
    %v2243 = vrcp.pop %v2240
    %v2244 = vmul.f32 1.0, %v2243
    %v2245 = vrcp.pop %v2241
    %v2246 = vmul.f32 1.0, %v2245
    %v2247 = vrcp.pop %v2242
    %v2248 = vmul.f32 1.0, %v2247
    %v2249 = vtanh.pop %v2229
    %v2250 = vmul.f32 %v2246, %v1912
    %v2251 = vmul.f32 %v2244, %v2249
    %v2252 = vadd.f32 %v2250, %v2251
    %v2253 = vtanh.pop %v2252
    %v2254 = vmul.f32 %v2248, %v2253
    %2255 = vmatprep.subr.mxu0 %v464
    %2256 = vmatpush1.msra.mxu0 %v463
    %2257 = vmatprep.subr.mxu0 %v468
    %2258 = vmatpush1.msra.mxu0 %v467
    %2259 = vmatprep.subr.mxu0 %v472
    %2260 = vmatpush1.msra.mxu0 %v471
    %2261 = vmatprep.subr.mxu0 %v476
    %2262 = vmatpush1.msra.mxu0 %v475
    %2263 = vmatprep.subr.mxu0 %v480
    %2264 = vmatpush1.msra.mxu0 %v479
    %2265 = vmatprep.subr.mxu0 %v484
    %2266 = vmatpush1.msra.mxu0 %v483
    %2267 = vmatprep.subr.mxu0 %v488
    %2268 = vmatpush1.msra.mxu0 %v487
    %2269 = vmatprep.subr.mxu0 %v492
    %2270 = vmatpush1.msra.mxu0 %v491
    %2271 = vmatprep.subr.mxu0 %v496
    %2272 = vmatpush1.msra.mxu0 %v495
    %2273 = vmatprep.subr.mxu0 %v500
    %2274 = vmatpush1.msra.mxu0 %v499
    %2275 = vmatprep.subr.mxu0 %v504
    %2276 = vmatpush1.msra.mxu0 %v503
    %2277 = vmatprep.subr.mxu0 %v508
    %2278 = vmatpush1.msra.mxu0 %v507
    %2279 = vmatprep.subr.mxu0 %v512
    %2280 = vmatpush1.msra.mxu0 %v511
    %2281 = vmatprep.subr.mxu0 %v516
    %2282 = vmatpush1.msra.mxu0 %v515
    %2283 = vmatprep.subr.mxu0 %v520
    %2284 = vmatpush1.msra.mxu0 %v519
    %2285 = vmatprep.subr.mxu0 %v524
    %2286 = vmatpush1.msra.mxu0 %v523
    %2287 = vmatprep.subr.mxu0 0.0
    %2288 = vmatpush1.msra.mxu0 0.0
    %2289 = vmatprep.subr.mxu0 0.0
    %2290 = vmatpush1.msra.mxu0 0.0
    %2291 = vmatprep.subr.mxu0 0.0
    %2292 = vmatpush1.msra.mxu0 0.0
    %2293 = vmatprep.subr.mxu0 0.0
    %2294 = vmatpush1.msra.mxu0 0.0
    %2295 = vmatprep.subr.mxu0 0.0
    %2296 = vmatpush1.msra.mxu0 0.0
    %2297 = vmatprep.subr.mxu0 0.0
    %2298 = vmatpush1.msra.mxu0 0.0
    %2299 = vmatprep.subr.mxu0 0.0
    %2300 = vmatpush1.msra.mxu0 0.0
    %2301 = vmatprep.subr.mxu0 0.0
    %2302 = vmatpush1.msra.mxu0 0.0
    %2303 = vmatprep.subr.mxu0 0.0
    %2304 = vmatpush1.msra.mxu0 0.0
    %2305 = vmatprep.subr.mxu0 0.0
    %2306 = vmatpush1.msra.mxu0 0.0
    %2307 = vmatprep.subr.mxu0 0.0
    %2308 = vmatpush1.msra.mxu0 0.0
    %2309 = vmatprep.subr.mxu0 0.0
    %2310 = vmatpush1.msra.mxu0 0.0
    %2311 = vmatprep.subr.mxu0 0.0
    %2312 = vmatpush1.msra.mxu0 0.0
    %2313 = vmatprep.subr.mxu0 0.0
    %2314 = vmatpush1.msra.mxu0 0.0
    %2315 = vmatprep.subr.mxu0 0.0
    %2316 = vmatpush1.msra.mxu0 0.0
    %2317 = vmatprep.subr.mxu0 0.0
    %2318 = vmatpush1.msra.mxu0 0.0
    %2319 = vmatprep.mubr.f32.mxu0 0.0
    %2320 = vmatmul.mubr.f32.gmra.mrb[0].mxu0 %v2084
    %v2321 = vpop.f32.mrb[0].mxu0
    %v2322 = vadd.f32 0.0, %v2321
    %v2323 = vpop.f32.mrb[0].mxu0
    %v2324 = vadd.f32 0.0, %v2323
    %2325 = vdwg.mxu0
    %2326 = vmatprep.subr.mxu0 %v466
    %2327 = vmatpush1.msra.mxu0 %v465
    %2328 = vmatprep.subr.mxu0 %v470
    %2329 = vmatpush1.msra.mxu0 %v469
    %2330 = vmatprep.subr.mxu0 %v474
    %2331 = vmatpush1.msra.mxu0 %v473
    %2332 = vmatprep.subr.mxu0 %v478
    %2333 = vmatpush1.msra.mxu0 %v477
    %2334 = vmatprep.subr.mxu0 %v482
    %2335 = vmatpush1.msra.mxu0 %v481
    %2336 = vmatprep.subr.mxu0 %v486
    %2337 = vmatpush1.msra.mxu0 %v485
    %2338 = vmatprep.subr.mxu0 %v490
    %2339 = vmatpush1.msra.mxu0 %v489
    %2340 = vmatprep.subr.mxu0 %v494
    %2341 = vmatpush1.msra.mxu0 %v493
    %2342 = vmatprep.subr.mxu0 %v498
    %2343 = vmatpush1.msra.mxu0 %v497
    %2344 = vmatprep.subr.mxu0 %v502
    %2345 = vmatpush1.msra.mxu0 %v501
    %2346 = vmatprep.subr.mxu0 %v506
    %2347 = vmatpush1.msra.mxu0 %v505
    %2348 = vmatprep.subr.mxu0 %v510
    %2349 = vmatpush1.msra.mxu0 %v509
    %2350 = vmatprep.subr.mxu0 %v514
    %2351 = vmatpush1.msra.mxu0 %v513
    %2352 = vmatprep.subr.mxu0 %v518
    %2353 = vmatpush1.msra.mxu0 %v517
    %2354 = vmatprep.subr.mxu0 %v522
    %2355 = vmatpush1.msra.mxu0 %v521
    %2356 = vmatprep.subr.mxu0 %v526
    %2357 = vmatpush1.msra.mxu0 %v525
    %2358 = vmatprep.subr.mxu0 0.0
    %2359 = vmatpush1.msra.mxu0 0.0
    %2360 = vmatprep.subr.mxu0 0.0
    %2361 = vmatpush1.msra.mxu0 0.0
    %2362 = vmatprep.subr.mxu0 0.0
    %2363 = vmatpush1.msra.mxu0 0.0
    %2364 = vmatprep.subr.mxu0 0.0
    %2365 = vmatpush1.msra.mxu0 0.0
    %2366 = vmatprep.subr.mxu0 0.0
    %2367 = vmatpush1.msra.mxu0 0.0
    %2368 = vmatprep.subr.mxu0 0.0
    %2369 = vmatpush1.msra.mxu0 0.0
    %2370 = vmatprep.subr.mxu0 0.0
    %2371 = vmatpush1.msra.mxu0 0.0
    %2372 = vmatprep.subr.mxu0 0.0
    %2373 = vmatpush1.msra.mxu0 0.0
    %2374 = vmatprep.subr.mxu0 0.0
    %2375 = vmatpush1.msra.mxu0 0.0
    %2376 = vmatprep.subr.mxu0 0.0
    %2377 = vmatpush1.msra.mxu0 0.0
    %2378 = vmatprep.subr.mxu0 0.0
    %2379 = vmatpush1.msra.mxu0 0.0
    %2380 = vmatprep.subr.mxu0 0.0
    %2381 = vmatpush1.msra.mxu0 0.0
    %2382 = vmatprep.subr.mxu0 0.0
    %2383 = vmatpush1.msra.mxu0 0.0
    %2384 = vmatprep.subr.mxu0 0.0
    %2385 = vmatpush1.msra.mxu0 0.0
    %2386 = vmatprep.subr.mxu0 0.0
    %2387 = vmatpush1.msra.mxu0 0.0
    %2388 = vmatprep.subr.mxu0 0.0
    %2389 = vmatpush1.msra.mxu0 0.0
    %2390 = vmatprep.mubr.f32.mxu0 0.0
    %2391 = vmatmul.mubr.f32.gmra.mrb[0].mxu0 %v2084
    %v2392 = vpop.f32.mrb[0].mxu0
    %v2393 = vadd.f32 0.0, %v2392
    %v2394 = vpop.f32.mrb[0].mxu0
    %v2395 = vadd.f32 0.0, %v2394
    %2396 = vdwg.mxu0
    %v2397 = vadd.f32 %v274, %v2322
    %v2398 = vadd.f32 %v276, %v2324
    %v2399 = vadd.f32 %v435, %v2393
    %v2400 = vadd.f32 %v437, %v2395
    %v2401 = vxor.u32 %v2397, 2147483648
    %v2402 = vxor.u32 %v2398, 2147483648
    %v2403 = vxor.u32 %v2400, 2147483648
    %v2404 = vmul.f32 %v2401, 1.442695
    %v2405 = vpow.pop %v2404
    %v2406 = vmul.f32 %v2402, 1.442695
    %v2407 = vpow.pop %v2406
    %v2408 = vmul.f32 %v2403, 1.442695
    %v2409 = vpow.pop %v2408
    %v2410 = vadd.f32 %v2405, 1.0
    %v2411 = vadd.f32 %v2407, 1.0
    %v2412 = vadd.f32 %v2409, 1.0
    %v2413 = vrcp.pop %v2410
    %v2414 = vmul.f32 1.0, %v2413
    %v2415 = vrcp.pop %v2411
    %v2416 = vmul.f32 1.0, %v2415
    %v2417 = vrcp.pop %v2412
    %v2418 = vmul.f32 1.0, %v2417
    %v2419 = vtanh.pop %v2399
    %v2420 = vmul.f32 %v2416, %v2082
    %v2421 = vmul.f32 %v2414, %v2419
    %v2422 = vadd.f32 %v2420, %v2421
    %v2423 = vtanh.pop %v2422
    %v2424 = vmul.f32 %v2418, %v2423
    %2425 = vmatprep.subr.mxu0 %v464
    %2426 = vmatpush1.msra.mxu0 %v463
    %2427 = vmatprep.subr.mxu0 %v468
    %2428 = vmatpush1.msra.mxu0 %v467
    %2429 = vmatprep.subr.mxu0 %v472
    %2430 = vmatpush1.msra.mxu0 %v471
    %2431 = vmatprep.subr.mxu0 %v476
    %2432 = vmatpush1.msra.mxu0 %v475
    %2433 = vmatprep.subr.mxu0 %v480
    %2434 = vmatpush1.msra.mxu0 %v479
    %2435 = vmatprep.subr.mxu0 %v484
    %2436 = vmatpush1.msra.mxu0 %v483
    %2437 = vmatprep.subr.mxu0 %v488
    %2438 = vmatpush1.msra.mxu0 %v487
    %2439 = vmatprep.subr.mxu0 %v492
    %2440 = vmatpush1.msra.mxu0 %v491
    %2441 = vmatprep.subr.mxu0 %v496
    %2442 = vmatpush1.msra.mxu0 %v495
    %2443 = vmatprep.subr.mxu0 %v500
    %2444 = vmatpush1.msra.mxu0 %v499
    %2445 = vmatprep.subr.mxu0 %v504
    %2446 = vmatpush1.msra.mxu0 %v503
    %2447 = vmatprep.subr.mxu0 %v508
    %2448 = vmatpush1.msra.mxu0 %v507
    %2449 = vmatprep.subr.mxu0 %v512
    %2450 = vmatpush1.msra.mxu0 %v511
    %2451 = vmatprep.subr.mxu0 %v516
    %2452 = vmatpush1.msra.mxu0 %v515
    %2453 = vmatprep.subr.mxu0 %v520
    %2454 = vmatpush1.msra.mxu0 %v519
    %2455 = vmatprep.subr.mxu0 %v524
    %2456 = vmatpush1.msra.mxu0 %v523
    %2457 = vmatprep.subr.mxu0 0.0
    %2458 = vmatpush1.msra.mxu0 0.0
    %2459 = vmatprep.subr.mxu0 0.0
    %2460 = vmatpush1.msra.mxu0 0.0
    %2461 = vmatprep.subr.mxu0 0.0
    %2462 = vmatpush1.msra.mxu0 0.0
    %2463 = vmatprep.subr.mxu0 0.0
    %2464 = vmatpush1.msra.mxu0 0.0
    %2465 = vmatprep.subr.mxu0 0.0
    %2466 = vmatpush1.msra.mxu0 0.0
    %2467 = vmatprep.subr.mxu0 0.0
    %2468 = vmatpush1.msra.mxu0 0.0
    %2469 = vmatprep.subr.mxu0 0.0
    %2470 = vmatpush1.msra.mxu0 0.0
    %2471 = vmatprep.subr.mxu0 0.0
    %2472 = vmatpush1.msra.mxu0 0.0
    %2473 = vmatprep.subr.mxu0 0.0
    %2474 = vmatpush1.msra.mxu0 0.0
    %2475 = vmatprep.subr.mxu0 0.0
    %2476 = vmatpush1.msra.mxu0 0.0
    %2477 = vmatprep.subr.mxu0 0.0
    %2478 = vmatpush1.msra.mxu0 0.0
    %2479 = vmatprep.subr.mxu0 0.0
    %2480 = vmatpush1.msra.mxu0 0.0
    %2481 = vmatprep.subr.mxu0 0.0
    %2482 = vmatpush1.msra.mxu0 0.0
    %2483 = vmatprep.subr.mxu0 0.0
    %2484 = vmatpush1.msra.mxu0 0.0
    %2485 = vmatprep.subr.mxu0 0.0
    %2486 = vmatpush1.msra.mxu0 0.0
    %2487 = vmatprep.subr.mxu0 0.0
    %2488 = vmatpush1.msra.mxu0 0.0
    %2489 = vmatprep.mubr.f32.mxu0 0.0
    %2490 = vmatmul.mubr.f32.gmra.mrb[0].mxu0 %v2254
    %v2491 = vpop.f32.mrb[0].mxu0
    %v2492 = vadd.f32 0.0, %v2491
    %v2493 = vpop.f32.mrb[0].mxu0
    %v2494 = vadd.f32 0.0, %v2493
    %2495 = vdwg.mxu0
    %2496 = vmatprep.subr.mxu0 %v466
    %2497 = vmatpush1.msra.mxu0 %v465
    %2498 = vmatprep.subr.mxu0 %v470
    %2499 = vmatpush1.msra.mxu0 %v469
    %2500 = vmatprep.subr.mxu0 %v474
    %2501 = vmatpush1.msra.mxu0 %v473
    %2502 = vmatprep.subr.mxu0 %v478
    %2503 = vmatpush1.msra.mxu0 %v477
    %2504 = vmatprep.subr.mxu0 %v482
    %2505 = vmatpush1.msra.mxu0 %v481
    %2506 = vmatprep.subr.mxu0 %v486
    %2507 = vmatpush1.msra.mxu0 %v485
    %2508 = vmatprep.subr.mxu0 %v490
    %2509 = vmatpush1.msra.mxu0 %v489
    %2510 = vmatprep.subr.mxu0 %v494
    %2511 = vmatpush1.msra.mxu0 %v493
    %2512 = vmatprep.subr.mxu0 %v498
    %2513 = vmatpush1.msra.mxu0 %v497
    %2514 = vmatprep.subr.mxu0 %v502
    %2515 = vmatpush1.msra.mxu0 %v501
    %2516 = vmatprep.subr.mxu0 %v506
    %2517 = vmatpush1.msra.mxu0 %v505
    %2518 = vmatprep.subr.mxu0 %v510
    %2519 = vmatpush1.msra.mxu0 %v509
    %2520 = vmatprep.subr.mxu0 %v514
    %2521 = vmatpush1.msra.mxu0 %v513
    %2522 = vmatprep.subr.mxu0 %v518
    %2523 = vmatpush1.msra.mxu0 %v517
    %2524 = vmatprep.subr.mxu0 %v522
    %2525 = vmatpush1.msra.mxu0 %v521
    %2526 = vmatprep.subr.mxu0 %v526
    %2527 = vmatpush1.msra.mxu0 %v525
    %2528 = vmatprep.subr.mxu0 0.0
    %2529 = vmatpush1.msra.mxu0 0.0
    %2530 = vmatprep.subr.mxu0 0.0
    %2531 = vmatpush1.msra.mxu0 0.0
    %2532 = vmatprep.subr.mxu0 0.0
    %2533 = vmatpush1.msra.mxu0 0.0
    %2534 = vmatprep.subr.mxu0 0.0
    %2535 = vmatpush1.msra.mxu0 0.0
    %2536 = vmatprep.subr.mxu0 0.0
    %2537 = vmatpush1.msra.mxu0 0.0
    %2538 = vmatprep.subr.mxu0 0.0
    %2539 = vmatpush1.msra.mxu0 0.0
    %2540 = vmatprep.subr.mxu0 0.0
    %2541 = vmatpush1.msra.mxu0 0.0
    %2542 = vmatprep.subr.mxu0 0.0
    %2543 = vmatpush1.msra.mxu0 0.0
    %2544 = vmatprep.subr.mxu0 0.0
    %2545 = vmatpush1.msra.mxu0 0.0
    %2546 = vmatprep.subr.mxu0 0.0
    %2547 = vmatpush1.msra.mxu0 0.0
    %2548 = vmatprep.subr.mxu0 0.0
    %2549 = vmatpush1.msra.mxu0 0.0
    %2550 = vmatprep.subr.mxu0 0.0
    %2551 = vmatpush1.msra.mxu0 0.0
    %2552 = vmatprep.subr.mxu0 0.0
    %2553 = vmatpush1.msra.mxu0 0.0
    %2554 = vmatprep.subr.mxu0 0.0
    %2555 = vmatpush1.msra.mxu0 0.0
    %2556 = vmatprep.subr.mxu0 0.0
    %2557 = vmatpush1.msra.mxu0 0.0
    %2558 = vmatprep.subr.mxu0 0.0
    %2559 = vmatpush1.msra.mxu0 0.0
    %2560 = vmatprep.mubr.f32.mxu0 0.0
    %2561 = vmatmul.mubr.f32.gmra.mrb[0].mxu0 %v2254
    %v2562 = vpop.f32.mrb[0].mxu0
    %v2563 = vadd.f32 0.0, %v2562
    %v2564 = vpop.f32.mrb[0].mxu0
    %v2565 = vadd.f32 0.0, %v2564
    %2566 = vdwg.mxu0
    %v2567 = vadd.f32 %v280, %v2492
    %v2568 = vadd.f32 %v282, %v2494
    %v2569 = vadd.f32 %v441, %v2563
    %v2570 = vadd.f32 %v443, %v2565
    %v2571 = vxor.u32 %v2567, 2147483648
    %v2572 = vxor.u32 %v2568, 2147483648
    %v2573 = vxor.u32 %v2570, 2147483648
    %v2574 = vmul.f32 %v2571, 1.442695
    %v2575 = vpow.pop %v2574
    %v2576 = vmul.f32 %v2572, 1.442695
    %v2577 = vpow.pop %v2576
    %v2578 = vmul.f32 %v2573, 1.442695
    %v2579 = vpow.pop %v2578
    %v2580 = vadd.f32 %v2575, 1.0
    %v2581 = vadd.f32 %v2577, 1.0
    %v2582 = vadd.f32 %v2579, 1.0
    %v2583 = vrcp.pop %v2580
    %v2584 = vmul.f32 1.0, %v2583
    %v2585 = vrcp.pop %v2581
    %v2586 = vmul.f32 1.0, %v2585
    %v2587 = vrcp.pop %v2582
    %v2588 = vmul.f32 1.0, %v2587
    %v2589 = vtanh.pop %v2569
    %v2590 = vmul.f32 %v2586, %v2252
    %v2591 = vmul.f32 %v2584, %v2589
    %v2592 = vadd.f32 %v2590, %v2591
    %v2593 = vtanh.pop %v2592
    %v2594 = vmul.f32 %v2588, %v2593
    %2595 = vmatprep.subr.mxu0 %v464
    %2596 = vmatpush1.msra.mxu0 %v463
    %2597 = vmatprep.subr.mxu0 %v468
    %2598 = vmatpush1.msra.mxu0 %v467
    %2599 = vmatprep.subr.mxu0 %v472
    %2600 = vmatpush1.msra.mxu0 %v471
    %2601 = vmatprep.subr.mxu0 %v476
    %2602 = vmatpush1.msra.mxu0 %v475
    %2603 = vmatprep.subr.mxu0 %v480
    %2604 = vmatpush1.msra.mxu0 %v479
    %2605 = vmatprep.subr.mxu0 %v484
    %2606 = vmatpush1.msra.mxu0 %v483
    %2607 = vmatprep.subr.mxu0 %v488
    %2608 = vmatpush1.msra.mxu0 %v487
    %2609 = vmatprep.subr.mxu0 %v492
    %2610 = vmatpush1.msra.mxu0 %v491
    %2611 = vmatprep.subr.mxu0 %v496
    %2612 = vmatpush1.msra.mxu0 %v495
    %2613 = vmatprep.subr.mxu0 %v500
    %2614 = vmatpush1.msra.mxu0 %v499
    %2615 = vmatprep.subr.mxu0 %v504
    %2616 = vmatpush1.msra.mxu0 %v503
    %2617 = vmatprep.subr.mxu0 %v508
    %2618 = vmatpush1.msra.mxu0 %v507
    %2619 = vmatprep.subr.mxu0 %v512
    %2620 = vmatpush1.msra.mxu0 %v511
    %2621 = vmatprep.subr.mxu0 %v516
    %2622 = vmatpush1.msra.mxu0 %v515
    %2623 = vmatprep.subr.mxu0 %v520
    %2624 = vmatpush1.msra.mxu0 %v519
    %2625 = vmatprep.subr.mxu0 %v524
    %2626 = vmatpush1.msra.mxu0 %v523
    %2627 = vmatprep.subr.mxu0 0.0
    %2628 = vmatpush1.msra.mxu0 0.0
    %2629 = vmatprep.subr.mxu0 0.0
    %2630 = vmatpush1.msra.mxu0 0.0
    %2631 = vmatprep.subr.mxu0 0.0
    %2632 = vmatpush1.msra.mxu0 0.0
    %2633 = vmatprep.subr.mxu0 0.0
    %2634 = vmatpush1.msra.mxu0 0.0
    %2635 = vmatprep.subr.mxu0 0.0
    %2636 = vmatpush1.msra.mxu0 0.0
    %2637 = vmatprep.subr.mxu0 0.0
    %2638 = vmatpush1.msra.mxu0 0.0
    %2639 = vmatprep.subr.mxu0 0.0
    %2640 = vmatpush1.msra.mxu0 0.0
    %2641 = vmatprep.subr.mxu0 0.0
    %2642 = vmatpush1.msra.mxu0 0.0
    %2643 = vmatprep.subr.mxu0 0.0
    %2644 = vmatpush1.msra.mxu0 0.0
    %2645 = vmatprep.subr.mxu0 0.0
    %2646 = vmatpush1.msra.mxu0 0.0
    %2647 = vmatprep.subr.mxu0 0.0
    %2648 = vmatpush1.msra.mxu0 0.0
    %2649 = vmatprep.subr.mxu0 0.0
    %2650 = vmatpush1.msra.mxu0 0.0
    %2651 = vmatprep.subr.mxu0 0.0
    %2652 = vmatpush1.msra.mxu0 0.0
    %2653 = vmatprep.subr.mxu0 0.0
    %2654 = vmatpush1.msra.mxu0 0.0
    %2655 = vmatprep.subr.mxu0 0.0
    %2656 = vmatpush1.msra.mxu0 0.0
    %2657 = vmatprep.subr.mxu0 0.0
    %2658 = vmatpush1.msra.mxu0 0.0
    %2659 = vmatprep.mubr.f32.mxu0 0.0
    %2660 = vmatmul.mubr.f32.gmra.mrb[0].mxu0 %v2424
    %v2661 = vpop.f32.mrb[0].mxu0
    %v2662 = vadd.f32 0.0, %v2661
    %v2663 = vpop.f32.mrb[0].mxu0
    %v2664 = vadd.f32 0.0, %v2663
    %2665 = vdwg.mxu0
    %2666 = vmatprep.subr.mxu0 %v466
    %2667 = vmatpush1.msra.mxu0 %v465
    %2668 = vmatprep.subr.mxu0 %v470
    %2669 = vmatpush1.msra.mxu0 %v469
    %2670 = vmatprep.subr.mxu0 %v474
    %2671 = vmatpush1.msra.mxu0 %v473
    %2672 = vmatprep.subr.mxu0 %v478
    %2673 = vmatpush1.msra.mxu0 %v477
    %2674 = vmatprep.subr.mxu0 %v482
    %2675 = vmatpush1.msra.mxu0 %v481
    %2676 = vmatprep.subr.mxu0 %v486
    %2677 = vmatpush1.msra.mxu0 %v485
    %2678 = vmatprep.subr.mxu0 %v490
    %2679 = vmatpush1.msra.mxu0 %v489
    %2680 = vmatprep.subr.mxu0 %v494
    %2681 = vmatpush1.msra.mxu0 %v493
    %2682 = vmatprep.subr.mxu0 %v498
    %2683 = vmatpush1.msra.mxu0 %v497
    %2684 = vmatprep.subr.mxu0 %v502
    %2685 = vmatpush1.msra.mxu0 %v501
    %2686 = vmatprep.subr.mxu0 %v506
    %2687 = vmatpush1.msra.mxu0 %v505
    %2688 = vmatprep.subr.mxu0 %v510
    %2689 = vmatpush1.msra.mxu0 %v509
    %2690 = vmatprep.subr.mxu0 %v514
    %2691 = vmatpush1.msra.mxu0 %v513
    %2692 = vmatprep.subr.mxu0 %v518
    %2693 = vmatpush1.msra.mxu0 %v517
    %2694 = vmatprep.subr.mxu0 %v522
    %2695 = vmatpush1.msra.mxu0 %v521
    %2696 = vmatprep.subr.mxu0 %v526
    %2697 = vmatpush1.msra.mxu0 %v525
    %2698 = vmatprep.subr.mxu0 0.0
    %2699 = vmatpush1.msra.mxu0 0.0
    %2700 = vmatprep.subr.mxu0 0.0
    %2701 = vmatpush1.msra.mxu0 0.0
    %2702 = vmatprep.subr.mxu0 0.0
    %2703 = vmatpush1.msra.mxu0 0.0
    %2704 = vmatprep.subr.mxu0 0.0
    %2705 = vmatpush1.msra.mxu0 0.0
    %2706 = vmatprep.subr.mxu0 0.0
    %2707 = vmatpush1.msra.mxu0 0.0
    %2708 = vmatprep.subr.mxu0 0.0
    %2709 = vmatpush1.msra.mxu0 0.0
    %2710 = vmatprep.subr.mxu0 0.0
    %2711 = vmatpush1.msra.mxu0 0.0
    %2712 = vmatprep.subr.mxu0 0.0
    %2713 = vmatpush1.msra.mxu0 0.0
    %2714 = vmatprep.subr.mxu0 0.0
    %2715 = vmatpush1.msra.mxu0 0.0
    %2716 = vmatprep.subr.mxu0 0.0
    %2717 = vmatpush1.msra.mxu0 0.0
    %2718 = vmatprep.subr.mxu0 0.0
    %2719 = vmatpush1.msra.mxu0 0.0
    %2720 = vmatprep.subr.mxu0 0.0
    %2721 = vmatpush1.msra.mxu0 0.0
    %2722 = vmatprep.subr.mxu0 0.0
    %2723 = vmatpush1.msra.mxu0 0.0
    %2724 = vmatprep.subr.mxu0 0.0
    %2725 = vmatpush1.msra.mxu0 0.0
    %2726 = vmatprep.subr.mxu0 0.0
    %2727 = vmatpush1.msra.mxu0 0.0
    %2728 = vmatprep.subr.mxu0 0.0
    %2729 = vmatpush1.msra.mxu0 0.0
    %2730 = vmatprep.mubr.f32.mxu0 0.0
    %2731 = vmatmul.mubr.f32.gmra.mrb[0].mxu0 %v2424
    %v2732 = vpop.f32.mrb[0].mxu0
    %v2733 = vadd.f32 0.0, %v2732
    %v2734 = vpop.f32.mrb[0].mxu0
    %v2735 = vadd.f32 0.0, %v2734
    %2736 = vdwg.mxu0
    %v2737 = vadd.f32 %v286, %v2662
    %v2738 = vadd.f32 %v288, %v2664
    %v2739 = vadd.f32 %v447, %v2733
    %v2740 = vadd.f32 %v449, %v2735
    %v2741 = vxor.u32 %v2737, 2147483648
    %v2742 = vxor.u32 %v2738, 2147483648
    %v2743 = vxor.u32 %v2740, 2147483648
    %v2744 = vmul.f32 %v2741, 1.442695
    %v2745 = vpow.pop %v2744
    %v2746 = vmul.f32 %v2742, 1.442695
    %v2747 = vpow.pop %v2746
    %v2748 = vmul.f32 %v2743, 1.442695
    %v2749 = vpow.pop %v2748
    %v2750 = vadd.f32 %v2745, 1.0
    %v2751 = vadd.f32 %v2747, 1.0
    %v2752 = vadd.f32 %v2749, 1.0
    %v2753 = vrcp.pop %v2750
    %v2754 = vmul.f32 1.0, %v2753
    %v2755 = vrcp.pop %v2751
    %v2756 = vmul.f32 1.0, %v2755
    %v2757 = vrcp.pop %v2752
    %v2758 = vmul.f32 1.0, %v2757
    %v2759 = vtanh.pop %v2739
    %v2760 = vmul.f32 %v2756, %v2422
    %v2761 = vmul.f32 %v2754, %v2759
    %v2762 = vadd.f32 %v2760, %v2761
    %v2763 = vtanh.pop %v2762
    %v2764 = vmul.f32 %v2758, %v2763
    %2765 = vmatprep.subr.mxu0 %v464
    %2766 = vmatpush1.msra.mxu0 %v463
    %2767 = vmatprep.subr.mxu0 %v468
    %2768 = vmatpush1.msra.mxu0 %v467
    %2769 = vmatprep.subr.mxu0 %v472
    %2770 = vmatpush1.msra.mxu0 %v471
    %2771 = vmatprep.subr.mxu0 %v476
    %2772 = vmatpush1.msra.mxu0 %v475
    %2773 = vmatprep.subr.mxu0 %v480
    %2774 = vmatpush1.msra.mxu0 %v479
    %2775 = vmatprep.subr.mxu0 %v484
    %2776 = vmatpush1.msra.mxu0 %v483
    %2777 = vmatprep.subr.mxu0 %v488
    %2778 = vmatpush1.msra.mxu0 %v487
    %2779 = vmatprep.subr.mxu0 %v492
    %2780 = vmatpush1.msra.mxu0 %v491
    %2781 = vmatprep.subr.mxu0 %v496
    %2782 = vmatpush1.msra.mxu0 %v495
    %2783 = vmatprep.subr.mxu0 %v500
    %2784 = vmatpush1.msra.mxu0 %v499
    %2785 = vmatprep.subr.mxu0 %v504
    %2786 = vmatpush1.msra.mxu0 %v503
    %2787 = vmatprep.subr.mxu0 %v508
    %2788 = vmatpush1.msra.mxu0 %v507
    %2789 = vmatprep.subr.mxu0 %v512
    %2790 = vmatpush1.msra.mxu0 %v511
    %2791 = vmatprep.subr.mxu0 %v516
    %2792 = vmatpush1.msra.mxu0 %v515
    %2793 = vmatprep.subr.mxu0 %v520
    %2794 = vmatpush1.msra.mxu0 %v519
    %2795 = vmatprep.subr.mxu0 %v524
    %2796 = vmatpush1.msra.mxu0 %v523
    %2797 = vmatprep.subr.mxu0 0.0
    %2798 = vmatpush1.msra.mxu0 0.0
    %2799 = vmatprep.subr.mxu0 0.0
    %2800 = vmatpush1.msra.mxu0 0.0
    %2801 = vmatprep.subr.mxu0 0.0
    %2802 = vmatpush1.msra.mxu0 0.0
    %2803 = vmatprep.subr.mxu0 0.0
    %2804 = vmatpush1.msra.mxu0 0.0
    %2805 = vmatprep.subr.mxu0 0.0
    %2806 = vmatpush1.msra.mxu0 0.0
    %2807 = vmatprep.subr.mxu0 0.0
    %2808 = vmatpush1.msra.mxu0 0.0
    %2809 = vmatprep.subr.mxu0 0.0
    %2810 = vmatpush1.msra.mxu0 0.0
    %2811 = vmatprep.subr.mxu0 0.0
    %2812 = vmatpush1.msra.mxu0 0.0
    %2813 = vmatprep.subr.mxu0 0.0
    %2814 = vmatpush1.msra.mxu0 0.0
    %2815 = vmatprep.subr.mxu0 0.0
    %2816 = vmatpush1.msra.mxu0 0.0
    %2817 = vmatprep.subr.mxu0 0.0
    %2818 = vmatpush1.msra.mxu0 0.0
    %2819 = vmatprep.subr.mxu0 0.0
    %2820 = vmatpush1.msra.mxu0 0.0
    %2821 = vmatprep.subr.mxu0 0.0
    %2822 = vmatpush1.msra.mxu0 0.0
    %2823 = vmatprep.subr.mxu0 0.0
    %2824 = vmatpush1.msra.mxu0 0.0
    %2825 = vmatprep.subr.mxu0 0.0
    %2826 = vmatpush1.msra.mxu0 0.0
    %2827 = vmatprep.subr.mxu0 0.0
    %2828 = vmatpush1.msra.mxu0 0.0
    %2829 = vmatprep.mubr.f32.mxu0 0.0
    %2830 = vmatmul.mubr.f32.gmra.mrb[0].mxu0 %v2594
    %v2831 = vpop.f32.mrb[0].mxu0
    %v2832 = vadd.f32 0.0, %v2831
    %v2833 = vpop.f32.mrb[0].mxu0
    %v2834 = vadd.f32 0.0, %v2833
    %2835 = vdwg.mxu0
    %2836 = vmatprep.subr.mxu0 %v466
    %2837 = vmatpush1.msra.mxu0 %v465
    %2838 = vmatprep.subr.mxu0 %v470
    %2839 = vmatpush1.msra.mxu0 %v469
    %2840 = vmatprep.subr.mxu0 %v474
    %2841 = vmatpush1.msra.mxu0 %v473
    %2842 = vmatprep.subr.mxu0 %v478
    %2843 = vmatpush1.msra.mxu0 %v477
    %2844 = vmatprep.subr.mxu0 %v482
    %2845 = vmatpush1.msra.mxu0 %v481
    %2846 = vmatprep.subr.mxu0 %v486
    %2847 = vmatpush1.msra.mxu0 %v485
    %2848 = vmatprep.subr.mxu0 %v490
    %2849 = vmatpush1.msra.mxu0 %v489
    %2850 = vmatprep.subr.mxu0 %v494
    %2851 = vmatpush1.msra.mxu0 %v493
    %2852 = vmatprep.subr.mxu0 %v498
    %2853 = vmatpush1.msra.mxu0 %v497
    %2854 = vmatprep.subr.mxu0 %v502
    %2855 = vmatpush1.msra.mxu0 %v501
    %2856 = vmatprep.subr.mxu0 %v506
    %2857 = vmatpush1.msra.mxu0 %v505
    %2858 = vmatprep.subr.mxu0 %v510
    %2859 = vmatpush1.msra.mxu0 %v509
    %2860 = vmatprep.subr.mxu0 %v514
    %2861 = vmatpush1.msra.mxu0 %v513
    %2862 = vmatprep.subr.mxu0 %v518
    %2863 = vmatpush1.msra.mxu0 %v517
    %2864 = vmatprep.subr.mxu0 %v522
    %2865 = vmatpush1.msra.mxu0 %v521
    %2866 = vmatprep.subr.mxu0 %v526
    %2867 = vmatpush1.msra.mxu0 %v525
    %2868 = vmatprep.subr.mxu0 0.0
    %2869 = vmatpush1.msra.mxu0 0.0
    %2870 = vmatprep.subr.mxu0 0.0
    %2871 = vmatpush1.msra.mxu0 0.0
    %2872 = vmatprep.subr.mxu0 0.0
    %2873 = vmatpush1.msra.mxu0 0.0
    %2874 = vmatprep.subr.mxu0 0.0
    %2875 = vmatpush1.msra.mxu0 0.0
    %2876 = vmatprep.subr.mxu0 0.0
    %2877 = vmatpush1.msra.mxu0 0.0
    %2878 = vmatprep.subr.mxu0 0.0
    %2879 = vmatpush1.msra.mxu0 0.0
    %2880 = vmatprep.subr.mxu0 0.0
    %2881 = vmatpush1.msra.mxu0 0.0
    %2882 = vmatprep.subr.mxu0 0.0
    %2883 = vmatpush1.msra.mxu0 0.0
    %2884 = vmatprep.subr.mxu0 0.0
    %2885 = vmatpush1.msra.mxu0 0.0
    %2886 = vmatprep.subr.mxu0 0.0
    %2887 = vmatpush1.msra.mxu0 0.0
    %2888 = vmatprep.subr.mxu0 0.0
    %2889 = vmatpush1.msra.mxu0 0.0
    %2890 = vmatprep.subr.mxu0 0.0
    %2891 = vmatpush1.msra.mxu0 0.0
    %2892 = vmatprep.subr.mxu0 0.0
    %2893 = vmatpush1.msra.mxu0 0.0
    %2894 = vmatprep.subr.mxu0 0.0
    %2895 = vmatpush1.msra.mxu0 0.0
    %2896 = vmatprep.subr.mxu0 0.0
    %2897 = vmatpush1.msra.mxu0 0.0
    %2898 = vmatprep.subr.mxu0 0.0
    %2899 = vmatpush1.msra.mxu0 0.0
    %2900 = vmatprep.mubr.f32.mxu0 0.0
    %2901 = vmatmul.mubr.f32.gmra.mrb[0].mxu0 %v2594
    %v2902 = vpop.f32.mrb[0].mxu0
    %v2903 = vadd.f32 0.0, %v2902
    %v2904 = vpop.f32.mrb[0].mxu0
    %v2905 = vadd.f32 0.0, %v2904
    %2906 = vdwg.mxu0
    %v2907 = vadd.f32 %v292, %v2832
    %v2908 = vadd.f32 %v294, %v2834
    %v2909 = vadd.f32 %v453, %v2903
    %v2910 = vadd.f32 %v455, %v2905
    %v2911 = vxor.u32 %v2907, 2147483648
    %v2912 = vxor.u32 %v2908, 2147483648
    %v2913 = vxor.u32 %v2910, 2147483648
    %v2914 = vmul.f32 %v2911, 1.442695
    %v2915 = vpow.pop %v2914
    %v2916 = vmul.f32 %v2912, 1.442695
    %v2917 = vpow.pop %v2916
    %v2918 = vmul.f32 %v2913, 1.442695
    %v2919 = vpow.pop %v2918
    %v2920 = vadd.f32 %v2915, 1.0
    %v2921 = vadd.f32 %v2917, 1.0
    %v2922 = vadd.f32 %v2919, 1.0
    %v2923 = vrcp.pop %v2920
    %v2924 = vmul.f32 1.0, %v2923
    %v2925 = vrcp.pop %v2921
    %v2926 = vmul.f32 1.0, %v2925
    %v2927 = vrcp.pop %v2922
    %v2928 = vmul.f32 1.0, %v2927
    %v2929 = vtanh.pop %v2909
    %v2930 = vmul.f32 %v2926, %v2592
    %v2931 = vmul.f32 %v2924, %v2929
    %v2932 = vadd.f32 %v2930, %v2931
    %v2933 = vtanh.pop %v2932
    %v2934 = vmul.f32 %v2928, %v2933
    %2935 = vmatprep.subr.mxu0 %v464
    %2936 = vmatpush1.msra.mxu0 %v463
    %2937 = vmatprep.subr.mxu0 %v468
    %2938 = vmatpush1.msra.mxu0 %v467
    %2939 = vmatprep.subr.mxu0 %v472
    %2940 = vmatpush1.msra.mxu0 %v471
    %2941 = vmatprep.subr.mxu0 %v476
    %2942 = vmatpush1.msra.mxu0 %v475
    %2943 = vmatprep.subr.mxu0 %v480
    %2944 = vmatpush1.msra.mxu0 %v479
    %2945 = vmatprep.subr.mxu0 %v484
    %2946 = vmatpush1.msra.mxu0 %v483
    %2947 = vmatprep.subr.mxu0 %v488
    %2948 = vmatpush1.msra.mxu0 %v487
    %2949 = vmatprep.subr.mxu0 %v492
    %2950 = vmatpush1.msra.mxu0 %v491
    %2951 = vmatprep.subr.mxu0 %v496
    %2952 = vmatpush1.msra.mxu0 %v495
    %2953 = vmatprep.subr.mxu0 %v500
    %2954 = vmatpush1.msra.mxu0 %v499
    %2955 = vmatprep.subr.mxu0 %v504
    %2956 = vmatpush1.msra.mxu0 %v503
    %2957 = vmatprep.subr.mxu0 %v508
    %2958 = vmatpush1.msra.mxu0 %v507
    %2959 = vmatprep.subr.mxu0 %v512
    %2960 = vmatpush1.msra.mxu0 %v511
    %2961 = vmatprep.subr.mxu0 %v516
    %2962 = vmatpush1.msra.mxu0 %v515
    %2963 = vmatprep.subr.mxu0 %v520
    %2964 = vmatpush1.msra.mxu0 %v519
    %2965 = vmatprep.subr.mxu0 %v524
    %2966 = vmatpush1.msra.mxu0 %v523
    %2967 = vmatprep.subr.mxu0 0.0
    %2968 = vmatpush1.msra.mxu0 0.0
    %2969 = vmatprep.subr.mxu0 0.0
    %2970 = vmatpush1.msra.mxu0 0.0
    %2971 = vmatprep.subr.mxu0 0.0
    %2972 = vmatpush1.msra.mxu0 0.0
    %2973 = vmatprep.subr.mxu0 0.0
    %2974 = vmatpush1.msra.mxu0 0.0
    %2975 = vmatprep.subr.mxu0 0.0
    %2976 = vmatpush1.msra.mxu0 0.0
    %2977 = vmatprep.subr.mxu0 0.0
    %2978 = vmatpush1.msra.mxu0 0.0
    %2979 = vmatprep.subr.mxu0 0.0
    %2980 = vmatpush1.msra.mxu0 0.0
    %2981 = vmatprep.subr.mxu0 0.0
    %2982 = vmatpush1.msra.mxu0 0.0
    %2983 = vmatprep.subr.mxu0 0.0
    %2984 = vmatpush1.msra.mxu0 0.0
    %2985 = vmatprep.subr.mxu0 0.0
    %2986 = vmatpush1.msra.mxu0 0.0
    %2987 = vmatprep.subr.mxu0 0.0
    %2988 = vmatpush1.msra.mxu0 0.0
    %2989 = vmatprep.subr.mxu0 0.0
    %2990 = vmatpush1.msra.mxu0 0.0
    %2991 = vmatprep.subr.mxu0 0.0
    %2992 = vmatpush1.msra.mxu0 0.0
    %2993 = vmatprep.subr.mxu0 0.0
    %2994 = vmatpush1.msra.mxu0 0.0
    %2995 = vmatprep.subr.mxu0 0.0
    %2996 = vmatpush1.msra.mxu0 0.0
    %2997 = vmatprep.subr.mxu0 0.0
    %2998 = vmatpush1.msra.mxu0 0.0
    %2999 = vmatprep.mubr.f32.mxu0 0.0
    %3000 = vmatmul.mubr.f32.gmra.mrb[0].mxu0 %v2764
    %v3001 = vpop.f32.mrb[0].mxu0
    %v3002 = vadd.f32 0.0, %v3001
    %v3003 = vpop.f32.mrb[0].mxu0
    %v3004 = vadd.f32 0.0, %v3003
    %3005 = vdwg.mxu0
    %3006 = vmatprep.subr.mxu0 %v466
    %3007 = vmatpush1.msra.mxu0 %v465
    %3008 = vmatprep.subr.mxu0 %v470
    %3009 = vmatpush1.msra.mxu0 %v469
    %3010 = vmatprep.subr.mxu0 %v474
    %3011 = vmatpush1.msra.mxu0 %v473
    %3012 = vmatprep.subr.mxu0 %v478
    %3013 = vmatpush1.msra.mxu0 %v477
    %3014 = vmatprep.subr.mxu0 %v482
    %3015 = vmatpush1.msra.mxu0 %v481
    %3016 = vmatprep.subr.mxu0 %v486
    %3017 = vmatpush1.msra.mxu0 %v485
    %3018 = vmatprep.subr.mxu0 %v490
    %3019 = vmatpush1.msra.mxu0 %v489
    %3020 = vmatprep.subr.mxu0 %v494
    %3021 = vmatpush1.msra.mxu0 %v493
    %3022 = vmatprep.subr.mxu0 %v498
    %3023 = vmatpush1.msra.mxu0 %v497
    %3024 = vmatprep.subr.mxu0 %v502
    %3025 = vmatpush1.msra.mxu0 %v501
    %3026 = vmatprep.subr.mxu0 %v506
    %3027 = vmatpush1.msra.mxu0 %v505
    %3028 = vmatprep.subr.mxu0 %v510
    %3029 = vmatpush1.msra.mxu0 %v509
    %3030 = vmatprep.subr.mxu0 %v514
    %3031 = vmatpush1.msra.mxu0 %v513
    %3032 = vmatprep.subr.mxu0 %v518
    %3033 = vmatpush1.msra.mxu0 %v517
    %3034 = vmatprep.subr.mxu0 %v522
    %3035 = vmatpush1.msra.mxu0 %v521
    %3036 = vmatprep.subr.mxu0 %v526
    %3037 = vmatpush1.msra.mxu0 %v525
    %3038 = vmatprep.subr.mxu0 0.0
    %3039 = vmatpush1.msra.mxu0 0.0
    %3040 = vmatprep.subr.mxu0 0.0
    %3041 = vmatpush1.msra.mxu0 0.0
    %3042 = vmatprep.subr.mxu0 0.0
    %3043 = vmatpush1.msra.mxu0 0.0
    %3044 = vmatprep.subr.mxu0 0.0
    %3045 = vmatpush1.msra.mxu0 0.0
    %3046 = vmatprep.subr.mxu0 0.0
    %3047 = vmatpush1.msra.mxu0 0.0
    %3048 = vmatprep.subr.mxu0 0.0
    %3049 = vmatpush1.msra.mxu0 0.0
    %3050 = vmatprep.subr.mxu0 0.0
    %3051 = vmatpush1.msra.mxu0 0.0
    %3052 = vmatprep.subr.mxu0 0.0
    %3053 = vmatpush1.msra.mxu0 0.0
    %3054 = vmatprep.subr.mxu0 0.0
    %3055 = vmatpush1.msra.mxu0 0.0
    %3056 = vmatprep.subr.mxu0 0.0
    %3057 = vmatpush1.msra.mxu0 0.0
    %3058 = vmatprep.subr.mxu0 0.0
    %3059 = vmatpush1.msra.mxu0 0.0
    %3060 = vmatprep.subr.mxu0 0.0
    %3061 = vmatpush1.msra.mxu0 0.0
    %3062 = vmatprep.subr.mxu0 0.0
    %3063 = vmatpush1.msra.mxu0 0.0
    %3064 = vmatprep.subr.mxu0 0.0
    %3065 = vmatpush1.msra.mxu0 0.0
    %3066 = vmatprep.subr.mxu0 0.0
    %3067 = vmatpush1.msra.mxu0 0.0
    %3068 = vmatprep.subr.mxu0 0.0
    %3069 = vmatpush1.msra.mxu0 0.0
    %3070 = vmatprep.mubr.f32.mxu0 0.0
    %3071 = vmatmul.mubr.f32.gmra.mrb[0].mxu0 %v2764
    %v3072 = vpop.f32.mrb[0].mxu0
    %v3073 = vadd.f32 0.0, %v3072
    %v3074 = vpop.f32.mrb[0].mxu0
    %v3075 = vadd.f32 0.0, %v3074
    %3076 = vdwg.mxu0
    %v3077 = vadd.f32 %v298, %v3002
    %v3078 = vadd.f32 %v300, %v3004
    %v3079 = vadd.f32 %v459, %v3073
    %v3080 = vadd.f32 %v461, %v3075
    %v3081 = vxor.u32 %v3077, 2147483648
    %v3082 = vxor.u32 %v3078, 2147483648
    %v3083 = vxor.u32 %v3080, 2147483648
    %v3084 = vmul.f32 %v3081, 1.442695
    %v3085 = vpow.pop %v3084
    %v3086 = vmul.f32 %v3082, 1.442695
    %v3087 = vpow.pop %v3086
    %v3088 = vmul.f32 %v3083, 1.442695
    %v3089 = vpow.pop %v3088
    %v3090 = vadd.f32 %v3085, 1.0
    %v3091 = vadd.f32 %v3087, 1.0
    %v3092 = vadd.f32 %v3089, 1.0
    %v3093 = vrcp.pop %v3090
    %v3094 = vmul.f32 1.0, %v3093
    %v3095 = vrcp.pop %v3091
    %v3096 = vmul.f32 1.0, %v3095
    %v3097 = vrcp.pop %v3092
    %v3098 = vmul.f32 1.0, %v3097
    %v3099 = vtanh.pop %v3079
    %v3100 = vmul.f32 %v3096, %v2762
    %v3101 = vmul.f32 %v3094, %v3099
    %v3102 = vadd.f32 %v3100, %v3101
    %v3103 = vtanh.pop %v3102
    %v3104 = vmul.f32 %v3098, %v3103
    %v3105 = vld [vmem:[%s4] sm:$0x1]
    %v3107 = vlaneseq
    %v3108 = vshrl.u32 %v3107, 7
    %v3109 = vsub.s32 0, %v3108
    %v3110 = vrot.slane %v3105, %v3109
    %v3112 = vmul.f32 %v2934, %v3110
    %v3113 = vmul.f32 %v3104, %v3110
    %3114 = vadd.xlane.f32.xlu0 %v3112
    %v3115 = vpop.xlane.xlu0 %3114
    %3116 = vadd.xlane.f32.xlu0 %v3113
    %v3117 = vpop.xlane.xlu0 %3116
    %v3118 = vld [vmem:[#allocation2] sm:$0x1]
    %v3120 = vlaneseq
    %v3121 = vshrl.u32 %v3120, 7
    %v3122 = vsub.s32 0, %v3121
    %v3123 = vrot.slane %v3118, %v3122
    %v3125 = vadd.f32 %v3115, %v3123
    %v3126 = vadd.f32 %v3117, %v3123
    %vm3127 = vcmask 7168
    %3128 = vst.msk [vmem:[%s6] sm:$0xff] %vm3127, %v3125
    %3129 = vst.msk [vmem:[%s6 + $0x8] sm:$0xff] %vm3127, %v3126
    // Predicated region
    $region30: #{tpu_custom_call.1} parent=1 // pred_check
      _
    $region31: #{tpu_custom_call.1} parent=1 // pred_check_branch
      %3131 = sbr.rel (0) target = $region33
    $region32: #{tpu_custom_call.1} parent=1 // pred_region
      _
    $region33: #{tpu_custom_call.1} parent=1 // pred_fallthru
      _
    // Predicated region
    $region34: #{tpu_custom_call.1} parent=1 // pred_check
      _
    $region35: #{tpu_custom_call.1} parent=1 // pred_check_branch
      %3133 = sbr.rel (0) target = $region37
    $region36: #{tpu_custom_call.1} parent=1 // pred_region
      _
    $region37: #{tpu_custom_call.1} parent=1 // pred_fallthru
      _
    %3134 = vsyncpa [#allocation4], 1

</llo_original>
